<compile_context>
chip_gen: v7x
topology: tpu7x:2x2x1
jax: 0.10.0
libtpu: 0.0.40
codegen_flags: <defaults>
</compile_context>

<pallas_src>
import functools

import jax
import jax.numpy as jnp
from jax.experimental import pallas as pl
from jax.experimental.pallas import tpu as pltpu

BN_EPS = 1e-5
_LANE = 128
_SUBLANE = 16   # flattened-spatial rows rounded to this (bf16 tile rows)


def _round_up(x, k):
    return (x + k - 1) // k * k


def _vmem_limit_bytes():
    # ~75% of physical VMEM: 96 MiB on v5e/v6e (128 MiB), 48 MiB on v7x (64 MiB).
    try:
        cap = int(pltpu.get_tpu_info().vmem_capacity_bytes)
    except Exception:                       # conservative fallback
        cap = 64 * 1024 * 1024
    return max(32 * 1024 * 1024, min(96 * 1024 * 1024, (cap * 3) // 4))


def _compiler_params(vmem_limit):
    return pltpu.CompilerParams(
        dimension_semantics=("parallel",),
        vmem_limit_bytes=vmem_limit,
    )


def _pick_sample_block(n_samples, per_sample_bytes, budget_bytes):
    """Largest divisor B of n_samples fitting the VMEM budget with >= 2 steps."""
    best = 1
    for cand in range(1, n_samples + 1):
        if n_samples % cand:
            continue
        if n_samples >= 2 and n_samples // cand < 2:
            break
        if cand * per_sample_bytes <= budget_bytes:
            best = cand
    return best


# ----------------------------- Pallas kernels ------------------------------

def _conv3x3_stats_kernel(xp_ref, w_ref, y_ref, st_ref, acc_ref, *, h, w, wp):
    """3x3 conv (stride 1, pad 1) on flattened, spatially padded samples.

    xp_ref : (B, n, Cip) bf16  flattened padded input, row p = y'*wp + x'
    w_ref  : (9, Cip, Cop) bf16, tap k = dy*3 + dx
    y_ref  : (B, n, Cop) bf16  raw conv out; valid at rows with
             (p // wp) < h and (p % wp) < w, garbage elsewhere
    st_ref : (B, 8, Cop) f32   row0 = sum over valid rows, row1 = sum of
             squared deviations from the per-sample mean
    acc_ref: (n, Cop) f32 scratch accumulator
    """
    nb, n, cop = y_ref.shape

    row = jax.lax.broadcasted_iota(jnp.int32, (n, cop), 0)
    valid = (row < h * wp) & ((row % wp) < w)
    inv_cnt = 1.0 / float(h * w)

    for b in range(nb):
        xflat = xp_ref[b]                                  # (n, Cip) bf16
        for dy in range(3):
            zsum = None
            for dx in range(3):
                z = jnp.dot(xflat, w_ref[dy * 3 + dx],
                            preferred_element_type=jnp.float32)
                shift = dy * wp + dx
                if shift:
                    # out[p] += z[p + shift]; wrapped rows are invalid anyway.
                    z = pltpu.roll(z, n - shift, axis=0)
                zsum = z if zsum is None else zsum + z
            if dy == 0:
                acc_ref[...] = zsum
            else:
                acc_ref[...] += zsum

        acc = acc_ref[...]
        y_ref[b] = acc.astype(y_ref.dtype)

        ssum = jnp.sum(jnp.where(valid, acc, 0.0), axis=0, keepdims=True)
        mu = ssum * inv_cnt
        dev = acc - mu
        ssd = jnp.sum(jnp.where(valid, dev * dev, 0.0), axis=0, keepdims=True)
        st_ref[b] = jnp.concatenate(
            [ssum, ssd, jnp.zeros((6, cop), jnp.float32)], axis=0)


def _bn1_relu_pad_kernel(y_ref, sc_ref, sh_ref, o_ref, *, h, w, wp):
    """BN scale/shift + ReLU, zero invalid rows, shift into padded coords so
    the output is directly conv2's flattened spatially padded input."""
    nb, n, cop = y_ref.shape
    row = jax.lax.broadcasted_iota(jnp.int32, (n, cop), 0)
    valid = (row < h * wp) & ((row % wp) < w)
    sc = sc_ref[...]
    sh = sh_ref[...]
    for b in range(nb):
        v = jnp.maximum(y_ref[b].astype(jnp.float32) * sc + sh, 0.0)
        v = jnp.where(valid, v, 0.0)
        v = pltpu.roll(v, wp + 1, axis=0)   # valid block -> rows [1:h+1, 1:w+1]
        o_ref[b] = v.astype(o_ref.dtype)


def _bn2_add_relu_kernel(y_ref, r_ref, sc_ref, sh_ref, o_ref, *, wp):
    """BN scale/shift + residual add + ReLU.  The residual is conv1's padded
    flat bf16 input, rolled back by (wp + 1) to line up with valid rows."""
    nb, n, _ = y_ref.shape
    sc = sc_ref[...]
    sh = sh_ref[...]
    for b in range(nb):
        res = pltpu.roll(r_ref[b].astype(jnp.float32), n - (wp + 1), axis=0)
        v = y_ref[b].astype(jnp.float32) * sc + sh + res
        o_ref[b] = jnp.maximum(v, 0.0).astype(o_ref.dtype)


# ------------------------------ pallas wrappers -----------------------------

def _conv3x3_stats(xp_flat, w_mat, h, w, nb, vmem_limit):
    n_samp, n, cip = xp_flat.shape
    cop = w_mat.shape[-1]
    kern = functools.partial(_conv3x3_stats_kernel, h=h, w=w, wp=w + 2)
    return pl.pallas_call(
        kern,
        out_shape=(jax.ShapeDtypeStruct((n_samp, n, cop), jnp.bfloat16),
                   jax.ShapeDtypeStruct((n_samp, 8, cop), jnp.float32)),
        grid=(n_samp // nb,),
        in_specs=[
            pl.BlockSpec((nb, n, cip), lambda i: (i, 0, 0)),
            pl.BlockSpec((9, cip, cop), lambda i: (0, 0, 0)),
        ],
        out_specs=(
            pl.BlockSpec((nb, n, cop), lambda i: (i, 0, 0)),
            pl.BlockSpec((nb, 8, cop), lambda i: (i, 0, 0)),
        ),
        scratch_shapes=[pltpu.VMEM((n, cop), jnp.float32)],
        compiler_params=_compiler_params(vmem_limit),
    )(xp_flat, w_mat)


def _bn1_relu_pad(y_raw, scale, shift, h, w, nb, vmem_limit):
    n_samp, n, cop = y_raw.shape
    kern = functools.partial(_bn1_relu_pad_kernel, h=h, w=w, wp=w + 2)
    return pl.pallas_call(
        kern,
        out_shape=jax.ShapeDtypeStruct((n_samp, n, cop), jnp.bfloat16),
        grid=(n_samp // nb,),
        in_specs=[
            pl.BlockSpec((nb, n, cop), lambda i: (i, 0, 0)),
            pl.BlockSpec((1, cop), lambda i: (0, 0)),
            pl.BlockSpec((1, cop), lambda i: (0, 0)),
        ],
        out_specs=pl.BlockSpec((nb, n, cop), lambda i: (i, 0, 0)),
        compiler_params=_compiler_params(vmem_limit),
    )(y_raw, scale, shift)


def _bn2_add_relu(y_raw, residual_flat, scale, shift, w, nb, vmem_limit):
    n_samp, n, cop = y_raw.shape
    cres = residual_flat.shape[-1]
    kern = functools.partial(_bn2_add_relu_kernel, wp=w + 2)
    return pl.pallas_call(
        kern,
        out_shape=jax.ShapeDtypeStruct((n_samp, n, cop), jnp.float32),
        grid=(n_samp // nb,),
        in_specs=[
            pl.BlockSpec((nb, n, cop), lambda i: (i, 0, 0)),
            pl.BlockSpec((nb, n, cres), lambda i: (i, 0, 0)),
            pl.BlockSpec((1, cop), lambda i: (0, 0)),
            pl.BlockSpec((1, cop), lambda i: (0, 0)),
        ],
        out_specs=pl.BlockSpec((nb, n, cop), lambda i: (i, 0, 0)),
        compiler_params=_compiler_params(vmem_limit),
    )(y_raw, residual_flat, scale, shift)


# ------------------------------- glue (JAX) --------------------------------

def _prep_weight(w_oihw, ci_pad, co_pad):
    # (O, I, 3, 3) -> (9, ci_pad, co_pad) bf16 with k = dy*3 + dx; zero padded.
    o, i = w_oihw.shape[0], w_oihw.shape[1]
    wm = jnp.transpose(w_oihw, (2, 3, 1, 0)).reshape(9, i, o)
    wm = jnp.pad(wm, ((0, 0), (0, ci_pad - i), (0, co_pad - o)))
    return wm.astype(jnp.bfloat16)


def _bn_scale_shift(stats, gamma, beta, h, w, cop):
    """Per-channel BN scale/shift from per-sample (sum, centred SSD) stats
    using the numerically stable parallel-variance combine."""
    n_samp = stats.shape[0]
    cnt = float(h * w)
    m = float(n_samp) * cnt
    s_i = stats[:, 0, :]                 # (N, cop) per-sample sums
    ssd_i = stats[:, 1, :]               # (N, cop) per-sample centred SSD
    mean = jnp.sum(s_i, axis=0) / m
    mu_i = s_i / cnt
    var = (jnp.sum(ssd_i, axis=0)
           + cnt * jnp.sum(jnp.square(mu_i - mean[None, :]), axis=0)) / m
    var = jnp.maximum(var, 0.0)          # biased batch variance
    g = jnp.pad(gamma.astype(jnp.float32), (0, cop - gamma.shape[0]))
    b = jnp.pad(beta.astype(jnp.float32), (0, cop - beta.shape[0]))
    scale = g * jax.lax.rsqrt(var + BN_EPS)
    shift = b - mean * scale
    return scale.reshape(1, cop), shift.reshape(1, cop)


@jax.jit
def residual_block(x_nchw, w1, w2, g1, b1, g2, b2):
    n, c, h, w = x_nchw.shape
    planes = w1.shape[0]
    # Residual add without downsample requires inplanes == planes.
    assert c == planes and w2.shape[:2] == (planes, planes)

    cip = _round_up(c, _LANE)
    cop = _round_up(planes, _LANE)
    assert cip == cop
    hp, wp = h + 2, w + 2
    nflat = hp * wp
    npad = _round_up(nflat, _SUBLANE)
    vmem_limit = _vmem_limit_bytes()

    # Samples per conv grid step, within ~70% of the scoped VMEM budget.
    per_sample = npad * (4 * cip + 16 * cop)            # dbl-buffered I/O + headroom
    fixed = 2 * 9 * cip * cop * 2 + npad * cop * 4      # weights + f32 scratch
    nb = _pick_sample_block(n, per_sample,
                            max(int(vmem_limit * 0.7) - fixed, per_sample))

    # ---- input prep: NHWC, channel pad to cip, spatial pad, flatten ----
    x_nhwc = jnp.transpose(x_nchw, (0, 2, 3, 1))
    xc = jnp.pad(x_nhwc, ((0, 0), (0, 0), (0, 0), (0, cip - c)))
    x_pad = jnp.pad(xc, ((0, 0), (1, 1), (1, 1), (0, 0))).astype(jnp.bfloat16)
    x_flat = jnp.pad(x_pad.reshape(n, nflat, cip),
                     ((0, 0), (0, npad - nflat), (0, 0)))

    w1m = _prep_weight(w1, cip, cop)
    w2m = _prep_weight(w2, cop, cop)

    # ---- stage 1: conv1 -> bn1 -> relu (emitted in conv2's padded coords) ----
    y1_raw, st1 = _conv3x3_stats(x_flat, w1m, h, w, nb, vmem_limit)
    sc1, sh1 = _bn_scale_shift(st1, g1, b1, h, w, cop)
    x2_flat = _bn1_relu_pad(y1_raw, sc1, sh1, h, w, nb, vmem_limit)

    # ---- stage 2: conv2 -> bn2 -> +residual -> relu ----
    y2_raw, st2 = _conv3x3_stats(x2_flat, w2m, h, w, nb, vmem_limit)
    sc2, sh2 = _bn_scale_shift(st2, g2, b2, h, w, cop)
    out_wide = _bn2_add_relu(y2_raw, x_flat, sc2, sh2, w, nb, vmem_limit)

    out = out_wide[:, :nflat, :].reshape(n, hp, wp, cop)[:, :h, :w, :planes]
    return jnp.transpose(out, (0, 3, 1, 2))             # back to NCHW


# ----------------------------- pure-JAX reference ---------------------------

def _reference(x, w1, w2, g1, b1, g2, b2):
    dn = ("NCHW", "OIHW", "NCHW")

    def conv(inp, wt):
        return jax.lax.conv_general_dilated(
            inp, wt, window_strides=(1, 1), padding=((1, 1), (1, 1)),
            dimension_numbers=dn)

    def bn(y, g, b):
        mean = jnp.mean(y, axis=(0, 2, 3), keepdims=True)
        var = jnp.mean(jnp.square(y - mean), axis=(0, 2, 3), keepdims=True)
        return ((y - mean) * jax.lax.rsqrt(var + BN_EPS)
                * g.reshape(1, -1, 1, 1) + b.reshape(1, -1, 1, 1))

    out = jax.nn.relu(bn(conv(x, w1), g1, b1))
    out = bn(conv(out, w2), g2, b2)
    return jax.nn.relu(out + x)


# ---------------------------------- main ------------------------------------

if __name__ == "__main__":
    # Small shapes consistent with the module (inplanes == planes, stride=1).
    N, C, H, W = 2, 8, 8, 8

    key = jax.random.PRNGKey(0)
    kx, kw1, kw2, kg1, kb1, kg2, kb2 = jax.random.split(key, 7)

    x = jax.random.normal(kx, (N, C, H, W), dtype=jnp.float32)
    w1 = 0.1 * jax.random.normal(kw1, (C, C, 3, 3), dtype=jnp.float32)
    w2 = 0.1 * jax.random.normal(kw2, (C, C, 3, 3), dtype=jnp.float32)
    g1 = 1.0 + 0.1 * jax.random.normal(kg1, (C,), dtype=jnp.float32)
    b1 = 0.1 * jax.random.normal(kb1, (C,), dtype=jnp.float32)
    g2 = 1.0 + 0.1 * jax.random.normal(kg2, (C,), dtype=jnp.float32)
    b2 = 0.1 * jax.random.normal(kb2, (C,), dtype=jnp.float32)

    out = residual_block(x, w1, w2, g1, b1, g2, b2)
    out = jax.block_until_ready(out)

    ref = _reference(x, w1, w2, g1, b1, g2, b2)
    assert out.shape == (N, C, H, W), out.shape
    # bf16 MXU operands / bf16 residual (f32 accumulate + BN): 2e-2 tolerance.
    assert jnp.allclose(out, ref, rtol=2e-2, atol=2e-2), (
        float(jnp.max(jnp.abs(out - ref))))

    print("KERNEL_OK")
</pallas_src>

<mosaic_0001>
module attributes {stable_mosaic.version = 11 : i64} {
  func.func @_conv3x3_stats_kernel(%arg0: i32, %arg1: memref<1x112x128xbf16, #tpu.memory_space<vmem>>, %arg2: memref<9x128x128xbf16, #tpu.memory_space<vmem>>, %arg3: memref<1x112x128xbf16, #tpu.memory_space<vmem>>, %arg4: memref<1x8x128xf32, #tpu.memory_space<vmem>>, %arg5: memref<112x128xf32, #tpu.memory_space<vmem>>) attributes {dimension_semantics = [#tpu.dimension_semantics<parallel>], iteration_bounds = array<i64: 2>, scalar_prefetch = 0 : i64, scratch_operands = 1 : i64, tpu.core_type = #tpu.core_type<tc>, window_params = [{transform_indices = @transform_0, window_bounds = array<i64: 1, 112, 128>}, {pipeline_mode = #tpu.pipeline_mode<synchronous>, transform_indices = @transform_1, window_bounds = array<i64: 9, 128, 128>}, {transform_indices = @transform_2, window_bounds = array<i64: 1, 112, 128>}, {transform_indices = @transform_3, window_bounds = array<i64: 1, 8, 128>}]} {
    %0 = tpu.iota {dimensions = array<i32: 0>} : vector<112x128xi32>
    %c80_i32 = arith.constant 80 : i32
    %1 = vector.broadcast %c80_i32 : i32 to vector<112x128xi32>
    %2 = arith.cmpi slt, %0, %1 : vector<112x128xi32>
    %c10_i32 = arith.constant 10 : i32
    %c0_i32 = arith.constant 0 : i32
    %3 = arith.cmpi eq, %c10_i32, %c0_i32 : i32
    %c1_i32 = arith.constant 1 : i32
    %4 = arith.select %3, %c1_i32, %c10_i32 : i32
    %5 = vector.broadcast %4 : i32 to vector<112x128xi32>
    %6 = arith.remsi %0, %5 : vector<112x128xi32>
    %c0_i32_0 = arith.constant 0 : i32
    %7 = vector.broadcast %c0_i32_0 : i32 to vector<112x128xi32>
    %8 = arith.cmpi ne, %6, %7 : vector<112x128xi32>
    %c0_i32_1 = arith.constant 0 : i32
    %9 = vector.broadcast %c0_i32_1 : i32 to vector<112x128xi32>
    %10 = arith.cmpi slt, %6, %9 : vector<112x128xi32>
    %c0_i32_2 = arith.constant 0 : i32
    %11 = arith.cmpi slt, %4, %c0_i32_2 : i32
    %12 = vector.broadcast %11 : i1 to vector<112x128xi1>
    %13 = vector.broadcast %12 : vector<112x128xi1> to vector<112x128xi1>
    %14 = arith.xori %10, %13 : vector<112x128xi1>
    %15 = arith.andi %14, %8 : vector<112x128xi1>
    %16 = vector.broadcast %4 : i32 to vector<112x128xi32>
    %17 = arith.addi %6, %16 : vector<112x128xi32>
    %18 = arith.select %15, %17, %6 : vector<112x128xi1>, vector<112x128xi32>
    %c8_i32 = arith.constant 8 : i32
    %19 = vector.broadcast %c8_i32 : i32 to vector<112x128xi32>
    %20 = arith.cmpi slt, %18, %19 : vector<112x128xi32>
    %21 = arith.andi %2, %20 : vector<112x128xi1>
    %c0 = arith.constant 0 : index
    %c0_3 = arith.constant 0 : index
    %c0_4 = arith.constant 0 : index
    %22 = vector.load %arg1[%c0, %c0_3, %c0_4] : memref<1x112x128xbf16, #tpu.memory_space<vmem>>, vector<1x112x128xbf16>
    %23 = vector.shape_cast %22 : vector<1x112x128xbf16> to vector<112x128xbf16>
    %c0_5 = arith.constant 0 : index
    %c0_6 = arith.constant 0 : index
    %c0_7 = arith.constant 0 : index
    %24 = vector.load %arg2[%c0_5, %c0_6, %c0_7] : memref<9x128x128xbf16, #tpu.memory_space<vmem>>, vector<1x128x128xbf16>
    %25 = vector.shape_cast %24 : vector<1x128x128xbf16> to vector<128x128xbf16>
    %cst = arith.constant dense<0.000000e+00> : vector<112x128xf32>
    %26 = tpu.matmul %23, %25, %cst {dimension_numbers = #tpu.dot_dimension_numbers<[1], [0], [0], [1], [0, 0, 1, 1], [], []>} : vector<112x128xbf16>, vector<128x128xbf16>, vector<112x128xf32> -> vector<112x128xf32>
    %c1 = arith.constant 1 : index
    %c0_8 = arith.constant 0 : index
    %c0_9 = arith.constant 0 : index
    %27 = vector.load %arg2[%c1, %c0_8, %c0_9] : memref<9x128x128xbf16, #tpu.memory_space<vmem>>, vector<1x128x128xbf16>
    %28 = vector.shape_cast %27 : vector<1x128x128xbf16> to vector<128x128xbf16>
    %cst_10 = arith.constant dense<0.000000e+00> : vector<112x128xf32>
    %29 = tpu.matmul %23, %28, %cst_10 {dimension_numbers = #tpu.dot_dimension_numbers<[1], [0], [0], [1], [0, 0, 1, 1], [], []>} : vector<112x128xbf16>, vector<128x128xbf16>, vector<112x128xf32> -> vector<112x128xf32>
    %c111_i32 = arith.constant 111 : i32
    %30 = tpu.dynamic_rotate %29 by %c111_i32 dim 0 : vector<112x128xf32>, i32 -> vector<112x128xf32>
    %31 = arith.addf %26, %30 : vector<112x128xf32>
    %c2 = arith.constant 2 : index
    %c0_11 = arith.constant 0 : index
    %c0_12 = arith.constant 0 : index
    %32 = vector.load %arg2[%c2, %c0_11, %c0_12] : memref<9x128x128xbf16, #tpu.memory_space<vmem>>, vector<1x128x128xbf16>
    %33 = vector.shape_cast %32 : vector<1x128x128xbf16> to vector<128x128xbf16>
    %cst_13 = arith.constant dense<0.000000e+00> : vector<112x128xf32>
    %34 = tpu.matmul %23, %33, %cst_13 {dimension_numbers = #tpu.dot_dimension_numbers<[1], [0], [0], [1], [0, 0, 1, 1], [], []>} : vector<112x128xbf16>, vector<128x128xbf16>, vector<112x128xf32> -> vector<112x128xf32>
    %c110_i32 = arith.constant 110 : i32
    %35 = tpu.dynamic_rotate %34 by %c110_i32 dim 0 : vector<112x128xf32>, i32 -> vector<112x128xf32>
    %36 = arith.addf %31, %35 : vector<112x128xf32>
    %c0_14 = arith.constant 0 : index
    %c0_15 = arith.constant 0 : index
    %37 = vector.load %arg5[%c0_14, %c0_15] : memref<112x128xf32, #tpu.memory_space<vmem>>, vector<112x128xf32>
    tpu.vector_store %arg5[%c0_14, %c0_15], %36 {strides = array<i32>} : memref<112x128xf32, #tpu.memory_space<vmem>>, vector<112x128xf32>,
    %c3 = arith.constant 3 : index
    %c0_16 = arith.constant 0 : index
    %c0_17 = arith.constant 0 : index
    %38 = vector.load %arg2[%c3, %c0_16, %c0_17] : memref<9x128x128xbf16, #tpu.memory_space<vmem>>, vector<1x128x128xbf16>
    %39 = vector.shape_cast %38 : vector<1x128x128xbf16> to vector<128x128xbf16>
    %cst_18 = arith.constant dense<0.000000e+00> : vector<112x128xf32>
    %40 = tpu.matmul %23, %39, %cst_18 {dimension_numbers = #tpu.dot_dimension_numbers<[1], [0], [0], [1], [0, 0, 1, 1], [], []>} : vector<112x128xbf16>, vector<128x128xbf16>, vector<112x128xf32> -> vector<112x128xf32>
    %c102_i32 = arith.constant 102 : i32
    %41 = tpu.dynamic_rotate %40 by %c102_i32 dim 0 : vector<112x128xf32>, i32 -> vector<112x128xf32>
    %c4 = arith.constant 4 : index
    %c0_19 = arith.constant 0 : index
    %c0_20 = arith.constant 0 : index
    %42 = vector.load %arg2[%c4, %c0_19, %c0_20] : memref<9x128x128xbf16, #tpu.memory_space<vmem>>, vector<1x128x128xbf16>
    %43 = vector.shape_cast %42 : vector<1x128x128xbf16> to vector<128x128xbf16>
    %cst_21 = arith.constant dense<0.000000e+00> : vector<112x128xf32>
    %44 = tpu.matmul %23, %43, %cst_21 {dimension_numbers = #tpu.dot_dimension_numbers<[1], [0], [0], [1], [0, 0, 1, 1], [], []>} : vector<112x128xbf16>, vector<128x128xbf16>, vector<112x128xf32> -> vector<112x128xf32>
    %c101_i32 = arith.constant 101 : i32
    %45 = tpu.dynamic_rotate %44 by %c101_i32 dim 0 : vector<112x128xf32>, i32 -> vector<112x128xf32>
    %46 = arith.addf %41, %45 : vector<112x128xf32>
    %c5 = arith.constant 5 : index
    %c0_22 = arith.constant 0 : index
    %c0_23 = arith.constant 0 : index
    %47 = vector.load %arg2[%c5, %c0_22, %c0_23] : memref<9x128x128xbf16, #tpu.memory_space<vmem>>, vector<1x128x128xbf16>
    %48 = vector.shape_cast %47 : vector<1x128x128xbf16> to vector<128x128xbf16>
    %cst_24 = arith.constant dense<0.000000e+00> : vector<112x128xf32>
    %49 = tpu.matmul %23, %48, %cst_24 {dimension_numbers = #tpu.dot_dimension_numbers<[1], [0], [0], [1], [0, 0, 1, 1], [], []>} : vector<112x128xbf16>, vector<128x128xbf16>, vector<112x128xf32> -> vector<112x128xf32>
    %c100_i32 = arith.constant 100 : i32
    %50 = tpu.dynamic_rotate %49 by %c100_i32 dim 0 : vector<112x128xf32>, i32 -> vector<112x128xf32>
    %51 = arith.addf %46, %50 : vector<112x128xf32>
    %c0_25 = arith.constant 0 : index
    %c0_26 = arith.constant 0 : index
    %52 = vector.load %arg5[%c0_25, %c0_26] : memref<112x128xf32, #tpu.memory_space<vmem>>, vector<112x128xf32>
    %53 = arith.addf %52, %51 : vector<112x128xf32>
    %c0_27 = arith.constant 0 : index
    %c0_28 = arith.constant 0 : index
    %54 = vector.load %arg5[%c0_27, %c0_28] : memref<112x128xf32, #tpu.memory_space<vmem>>, vector<112x128xf32>
    tpu.vector_store %arg5[%c0_27, %c0_28], %53 {strides = array<i32>} : memref<112x128xf32, #tpu.memory_space<vmem>>, vector<112x128xf32>,
    %c6 = arith.constant 6 : index
    %c0_29 = arith.constant 0 : index
    %c0_30 = arith.constant 0 : index
    %55 = vector.load %arg2[%c6, %c0_29, %c0_30] : memref<9x128x128xbf16, #tpu.memory_space<vmem>>, vector<1x128x128xbf16>
    %56 = vector.shape_cast %55 : vector<1x128x128xbf16> to vector<128x128xbf16>
    %cst_31 = arith.constant dense<0.000000e+00> : vector<112x128xf32>
    %57 = tpu.matmul %23, %56, %cst_31 {dimension_numbers = #tpu.dot_dimension_numbers<[1], [0], [0], [1], [0, 0, 1, 1], [], []>} : vector<112x128xbf16>, vector<128x128xbf16>, vector<112x128xf32> -> vector<112x128xf32>
    %c92_i32 = arith.constant 92 : i32
    %58 = tpu.dynamic_rotate %57 by %c92_i32 dim 0 : vector<112x128xf32>, i32 -> vector<112x128xf32>
    %c7 = arith.constant 7 : index
    %c0_32 = arith.constant 0 : index
    %c0_33 = arith.constant 0 : index
    %59 = vector.load %arg2[%c7, %c0_32, %c0_33] : memref<9x128x128xbf16, #tpu.memory_space<vmem>>, vector<1x128x128xbf16>
    %60 = vector.shape_cast %59 : vector<1x128x128xbf16> to vector<128x128xbf16>
    %cst_34 = arith.constant dense<0.000000e+00> : vector<112x128xf32>
    %61 = tpu.matmul %23, %60, %cst_34 {dimension_numbers = #tpu.dot_dimension_numbers<[1], [0], [0], [1], [0, 0, 1, 1], [], []>} : vector<112x128xbf16>, vector<128x128xbf16>, vector<112x128xf32> -> vector<112x128xf32>
    %c91_i32 = arith.constant 91 : i32
    %62 = tpu.dynamic_rotate %61 by %c91_i32 dim 0 : vector<112x128xf32>, i32 -> vector<112x128xf32>
    %63 = arith.addf %58, %62 : vector<112x128xf32>
    %c8 = arith.constant 8 : index
    %c0_35 = arith.constant 0 : index
    %c0_36 = arith.constant 0 : index
    %64 = vector.load %arg2[%c8, %c0_35, %c0_36] : memref<9x128x128xbf16, #tpu.memory_space<vmem>>, vector<1x128x128xbf16>
    %65 = vector.shape_cast %64 : vector<1x128x128xbf16> to vector<128x128xbf16>
    %cst_37 = arith.constant dense<0.000000e+00> : vector<112x128xf32>
    %66 = tpu.matmul %23, %65, %cst_37 {dimension_numbers = #tpu.dot_dimension_numbers<[1], [0], [0], [1], [0, 0, 1, 1], [], []>} : vector<112x128xbf16>, vector<128x128xbf16>, vector<112x128xf32> -> vector<112x128xf32>
    %c90_i32 = arith.constant 90 : i32
    %67 = tpu.dynamic_rotate %66 by %c90_i32 dim 0 : vector<112x128xf32>, i32 -> vector<112x128xf32>
    %68 = arith.addf %63, %67 : vector<112x128xf32>
    %c0_38 = arith.constant 0 : index
    %c0_39 = arith.constant 0 : index
    %69 = vector.load %arg5[%c0_38, %c0_39] : memref<112x128xf32, #tpu.memory_space<vmem>>, vector<112x128xf32>
    %70 = arith.addf %69, %68 : vector<112x128xf32>
    %c0_40 = arith.constant 0 : index
    %c0_41 = arith.constant 0 : index
    %71 = vector.load %arg5[%c0_40, %c0_41] : memref<112x128xf32, #tpu.memory_space<vmem>>, vector<112x128xf32>
    tpu.vector_store %arg5[%c0_40, %c0_41], %70 {strides = array<i32>} : memref<112x128xf32, #tpu.memory_space<vmem>>, vector<112x128xf32>,
    %c0_42 = arith.constant 0 : index
    %c0_43 = arith.constant 0 : index
    %72 = vector.load %arg5[%c0_42, %c0_43] : memref<112x128xf32, #tpu.memory_space<vmem>>, vector<112x128xf32>
    %73 = arith.truncf %72 : vector<112x128xf32> to vector<112x128xbf16>
    %c0_44 = arith.constant 0 : index
    %c0_45 = arith.constant 0 : index
    %c0_46 = arith.constant 0 : index
    %74 = vector.load %arg3[%c0_44, %c0_45, %c0_46] : memref<1x112x128xbf16, #tpu.memory_space<vmem>>, vector<1x112x128xbf16>
    %75 = vector.shape_cast %74 : vector<1x112x128xbf16> to vector<112x128xbf16>
    %76 = vector.shape_cast %73 : vector<112x128xbf16> to vector<1x112x128xbf16>
    tpu.vector_store %arg3[%c0_44, %c0_45, %c0_46], %76 {strides = array<i32>} : memref<1x112x128xbf16, #tpu.memory_space<vmem>>, vector<1x112x128xbf16>,
    %cst_47 = arith.constant 0.000000e+00 : f32
    %77 = vector.broadcast %cst_47 : f32 to vector<112x128xf32>
    %78 = arith.select %21, %72, %77 : vector<112x128xi1>, vector<112x128xf32>
    %cst_48 = arith.constant dense<0.000000e+00> : vector<128xf32>
    %79 = vector.multi_reduction <add>, %78, %cst_48 [0] : vector<112x128xf32> to vector<128xf32>
    %80 = vector.shape_cast %79 : vector<128xf32> to vector<1x128xf32>
    %cst_49 = arith.constant 1.562500e-02 : f32
    %81 = vector.broadcast %cst_49 : f32 to vector<1x128xf32>
    %82 = arith.mulf %80, %81 : vector<1x128xf32>
    %83 = vector.broadcast %82 : vector<1x128xf32> to vector<112x128xf32>
    %84 = arith.subf %72, %83 : vector<112x128xf32>
    %85 = arith.mulf %84, %84 : vector<112x128xf32>
    %cst_50 = arith.constant 0.000000e+00 : f32
    %86 = vector.broadcast %cst_50 : f32 to vector<112x128xf32>
    %87 = arith.select %21, %85, %86 : vector<112x128xi1>, vector<112x128xf32>
    %cst_51 = arith.constant dense<0.000000e+00> : vector<128xf32>
    %88 = vector.multi_reduction <add>, %87, %cst_51 [0] : vector<112x128xf32> to vector<128xf32>
    %89 = vector.shape_cast %88 : vector<128xf32> to vector<1x128xf32>
    %cst_52 = arith.constant 0.000000e+00 : f32
    %90 = vector.broadcast %cst_52 : f32 to vector<6x128xf32>
    %91 = tpu.concatenate %80, %89, %90 in 0 : vector<1x128xf32>, vector<1x128xf32>, vector<6x128xf32> -> vector<8x128xf32>
    %c0_53 = arith.constant 0 : index
    %c0_54 = arith.constant 0 : index
    %c0_55 = arith.constant 0 : index
    %92 = vector.load %arg4[%c0_53, %c0_54, %c0_55] : memref<1x8x128xf32, #tpu.memory_space<vmem>>, vector<1x8x128xf32>
    %93 = vector.shape_cast %92 : vector<1x8x128xf32> to vector<8x128xf32>
    %94 = vector.shape_cast %91 : vector<8x128xf32> to vector<1x8x128xf32>
    tpu.vector_store %arg4[%c0_53, %c0_54, %c0_55], %94 {strides = array<i32>} : memref<1x8x128xf32, #tpu.memory_space<vmem>>, vector<1x8x128xf32>,
    return
  }
  func.func @transform_0(%arg0: i32) -> (i32, i32, i32) {
    %c0_i32 = arith.constant 0 : i32
    %c0_i32_0 = arith.constant 0 : i32
    %c0_i32_1 = arith.constant 0 : i32
    return %arg0, %c0_i32, %c0_i32_0 : i32, i32, i32
  }
  func.func @transform_1(%arg0: i32) -> (i32, i32, i32) {
    %c0_i32 = arith.constant 0 : i32
    %c0_i32_0 = arith.constant 0 : i32
    %c0_i32_1 = arith.constant 0 : i32
    %c0_i32_2 = arith.constant 0 : i32
    return %c0_i32, %c0_i32_0, %c0_i32_1 : i32, i32, i32
  }
  func.func @transform_2(%arg0: i32) -> (i32, i32, i32) {
    %c0_i32 = arith.constant 0 : i32
    %c0_i32_0 = arith.constant 0 : i32
    %c0_i32_1 = arith.constant 0 : i32
    return %arg0, %c0_i32, %c0_i32_0 : i32, i32, i32
  }
  func.func @transform_3(%arg0: i32) -> (i32, i32, i32) {
    %c0_i32 = arith.constant 0 : i32
    %c0_i32_0 = arith.constant 0 : i32
    %c0_i32_1 = arith.constant 0 : i32
    return %arg0, %c0_i32, %c0_i32_0 : i32, i32, i32
  }
}

module attributes {stable_mosaic.version = 11 : i64} {
  func.func @_bn1_relu_pad_kernel(%arg0: i32, %arg1: memref<1x112x128xbf16, #tpu.memory_space<vmem>>, %arg2: memref<1x128xf32, #tpu.memory_space<vmem>>, %arg3: memref<1x128xf32, #tpu.memory_space<vmem>>, %arg4: memref<1x112x128xbf16, #tpu.memory_space<vmem>>) attributes {dimension_semantics = [#tpu.dimension_semantics<parallel>], iteration_bounds = array<i64: 2>, scalar_prefetch = 0 : i64, scratch_operands = 0 : i64, tpu.core_type = #tpu.core_type<tc>, window_params = [{transform_indices = @transform_0, window_bounds = array<i64: 1, 112, 128>}, {pipeline_mode = #tpu.pipeline_mode<synchronous>, transform_indices = @transform_1, window_bounds = array<i64: 1, 128>}, {pipeline_mode = #tpu.pipeline_mode<synchronous>, transform_indices = @transform_2, window_bounds = array<i64: 1, 128>}, {transform_indices = @transform_3, window_bounds = array<i64: 1, 112, 128>}]} {
    %0 = tpu.iota {dimensions = array<i32: 0>} : vector<112x128xi32>
    %c80_i32 = arith.constant 80 : i32
    %1 = vector.broadcast %c80_i32 : i32 to vector<112x128xi32>
    %2 = arith.cmpi slt, %0, %1 : vector<112x128xi32>
    %c10_i32 = arith.constant 10 : i32
    %c0_i32 = arith.constant 0 : i32
    %3 = arith.cmpi eq, %c10_i32, %c0_i32 : i32
    %c1_i32 = arith.constant 1 : i32
    %4 = arith.select %3, %c1_i32, %c10_i32 : i32
    %5 = vector.broadcast %4 : i32 to vector<112x128xi32>
    %6 = arith.remsi %0, %5 : vector<112x128xi32>
    %c0_i32_0 = arith.constant 0 : i32
    %7 = vector.broadcast %c0_i32_0 : i32 to vector<112x128xi32>
    %8 = arith.cmpi ne, %6, %7 : vector<112x128xi32>
    %c0_i32_1 = arith.constant 0 : i32
    %9 = vector.broadcast %c0_i32_1 : i32 to vector<112x128xi32>
    %10 = arith.cmpi slt, %6, %9 : vector<112x128xi32>
    %c0_i32_2 = arith.constant 0 : i32
    %11 = arith.cmpi slt, %4, %c0_i32_2 : i32
    %12 = vector.broadcast %11 : i1 to vector<112x128xi1>
    %13 = vector.broadcast %12 : vector<112x128xi1> to vector<112x128xi1>
    %14 = arith.xori %10, %13 : vector<112x128xi1>
    %15 = arith.andi %14, %8 : vector<112x128xi1>
    %16 = vector.broadcast %4 : i32 to vector<112x128xi32>
    %17 = arith.addi %6, %16 : vector<112x128xi32>
    %18 = arith.select %15, %17, %6 : vector<112x128xi1>, vector<112x128xi32>
    %c8_i32 = arith.constant 8 : i32
    %19 = vector.broadcast %c8_i32 : i32 to vector<112x128xi32>
    %20 = arith.cmpi slt, %18, %19 : vector<112x128xi32>
    %21 = arith.andi %2, %20 : vector<112x128xi1>
    %c0 = arith.constant 0 : index
    %c0_3 = arith.constant 0 : index
    %22 = vector.load %arg2[%c0, %c0_3] : memref<1x128xf32, #tpu.memory_space<vmem>>, vector<1x128xf32>
    %c0_4 = arith.constant 0 : index
    %c0_5 = arith.constant 0 : index
    %23 = vector.load %arg3[%c0_4, %c0_5] : memref<1x128xf32, #tpu.memory_space<vmem>>, vector<1x128xf32>
    %c0_6 = arith.constant 0 : index
    %c0_7 = arith.constant 0 : index
    %c0_8 = arith.constant 0 : index
    %24 = vector.load %arg1[%c0_6, %c0_7, %c0_8] : memref<1x112x128xbf16, #tpu.memory_space<vmem>>, vector<1x112x128xbf16>
    %25 = vector.shape_cast %24 : vector<1x112x128xbf16> to vector<112x128xbf16>
    %26 = arith.extf %25 : vector<112x128xbf16> to vector<112x128xf32>
    %27 = vector.broadcast %22 : vector<1x128xf32> to vector<112x128xf32>
    %28 = arith.mulf %26, %27 : vector<112x128xf32>
    %29 = vector.broadcast %23 : vector<1x128xf32> to vector<112x128xf32>
    %30 = arith.addf %28, %29 : vector<112x128xf32>
    %cst = arith.constant 0.000000e+00 : f32
    %31 = vector.broadcast %cst : f32 to vector<112x128xf32>
    %32 = arith.maximumf %30, %31 : vector<112x128xf32>
    %cst_9 = arith.constant 0.000000e+00 : f32
    %33 = vector.broadcast %cst_9 : f32 to vector<112x128xf32>
    %34 = arith.select %21, %32, %33 : vector<112x128xi1>, vector<112x128xf32>
    %c11_i32 = arith.constant 11 : i32
    %35 = tpu.dynamic_rotate %34 by %c11_i32 dim 0 : vector<112x128xf32>, i32 -> vector<112x128xf32>
    %36 = arith.truncf %35 : vector<112x128xf32> to vector<112x128xbf16>
    %c0_10 = arith.constant 0 : index
    %c0_11 = arith.constant 0 : index
    %c0_12 = arith.constant 0 : index
    %37 = vector.load %arg4[%c0_10, %c0_11, %c0_12] : memref<1x112x128xbf16, #tpu.memory_space<vmem>>, vector<1x112x128xbf16>
    %38 = vector.shape_cast %37 : vector<1x112x128xbf16> to vector<112x128xbf16>
    %39 = vector.shape_cast %36 : vector<112x128xbf16> to vector<1x112x128xbf16>
    tpu.vector_store %arg4[%c0_10, %c0_11, %c0_12], %39 {strides = array<i32>} : memref<1x112x128xbf16, #tpu.memory_space<vmem>>, vector<1x112x128xbf16>,
    return
  }
  func.func @transform_0(%arg0: i32) -> (i32, i32, i32) {
    %c0_i32 = arith.constant 0 : i32
    %c0_i32_0 = arith.constant 0 : i32
    %c0_i32_1 = arith.constant 0 : i32
    return %arg0, %c0_i32, %c0_i32_0 : i32, i32, i32
  }
  func.func @transform_1(%arg0: i32) -> (i32, i32) {
    %c0_i32 = arith.constant 0 : i32
    %c0_i32_0 = arith.constant 0 : i32
    %c0_i32_1 = arith.constant 0 : i32
    return %c0_i32, %c0_i32_0 : i32, i32
  }
  func.func @transform_2(%arg0: i32) -> (i32, i32) {
    %c0_i32 = arith.constant 0 : i32
    %c0_i32_0 = arith.constant 0 : i32
    %c0_i32_1 = arith.constant 0 : i32
    return %c0_i32, %c0_i32_0 : i32, i32
  }
  func.func @transform_3(%arg0: i32) -> (i32, i32, i32) {
    %c0_i32 = arith.constant 0 : i32
    %c0_i32_0 = arith.constant 0 : i32
    %c0_i32_1 = arith.constant 0 : i32
    return %arg0, %c0_i32, %c0_i32_0 : i32, i32, i32
  }
}

module attributes {stable_mosaic.version = 11 : i64} {
  func.func @_bn2_add_relu_kernel(%arg0: i32, %arg1: memref<1x112x128xbf16, #tpu.memory_space<vmem>>, %arg2: memref<1x112x128xbf16, #tpu.memory_space<vmem>>, %arg3: memref<1x128xf32, #tpu.memory_space<vmem>>, %arg4: memref<1x128xf32, #tpu.memory_space<vmem>>, %arg5: memref<1x112x128xf32, #tpu.memory_space<vmem>>) attributes {dimension_semantics = [#tpu.dimension_semantics<parallel>], iteration_bounds = array<i64: 2>, scalar_prefetch = 0 : i64, scratch_operands = 0 : i64, tpu.core_type = #tpu.core_type<tc>, window_params = [{transform_indices = @transform_0, window_bounds = array<i64: 1, 112, 128>}, {transform_indices = @transform_1, window_bounds = array<i64: 1, 112, 128>}, {pipeline_mode = #tpu.pipeline_mode<synchronous>, transform_indices = @transform_2, window_bounds = array<i64: 1, 128>}, {pipeline_mode = #tpu.pipeline_mode<synchronous>, transform_indices = @transform_3, window_bounds = array<i64: 1, 128>}, {transform_indices = @transform_4, window_bounds = array<i64: 1, 112, 128>}]} {
    %c0 = arith.constant 0 : index
    %c0_0 = arith.constant 0 : index
    %0 = vector.load %arg3[%c0, %c0_0] : memref<1x128xf32, #tpu.memory_space<vmem>>, vector<1x128xf32>
    %c0_1 = arith.constant 0 : index
    %c0_2 = arith.constant 0 : index
    %1 = vector.load %arg4[%c0_1, %c0_2] : memref<1x128xf32, #tpu.memory_space<vmem>>, vector<1x128xf32>
    %c0_3 = arith.constant 0 : index
    %c0_4 = arith.constant 0 : index
    %c0_5 = arith.constant 0 : index
    %2 = vector.load %arg2[%c0_3, %c0_4, %c0_5] : memref<1x112x128xbf16, #tpu.memory_space<vmem>>, vector<1x112x128xbf16>
    %3 = vector.shape_cast %2 : vector<1x112x128xbf16> to vector<112x128xbf16>
    %4 = arith.extf %3 : vector<112x128xbf16> to vector<112x128xf32>
    %c101_i32 = arith.constant 101 : i32
    %5 = tpu.dynamic_rotate %4 by %c101_i32 dim 0 : vector<112x128xf32>, i32 -> vector<112x128xf32>
    %c0_6 = arith.constant 0 : index
    %c0_7 = arith.constant 0 : index
    %c0_8 = arith.constant 0 : index
    %6 = vector.load %arg1[%c0_6, %c0_7, %c0_8] : memref<1x112x128xbf16, #tpu.memory_space<vmem>>, vector<1x112x128xbf16>
    %7 = vector.shape_cast %6 : vector<1x112x128xbf16> to vector<112x128xbf16>
    %8 = arith.extf %7 : vector<112x128xbf16> to vector<112x128xf32>
    %9 = vector.broadcast %0 : vector<1x128xf32> to vector<112x128xf32>
    %10 = arith.mulf %8, %9 : vector<112x128xf32>
    %11 = vector.broadcast %1 : vector<1x128xf32> to vector<112x128xf32>
    %12 = arith.addf %10, %11 : vector<112x128xf32>
    %13 = arith.addf %12, %5 : vector<112x128xf32>
    %cst = arith.constant 0.000000e+00 : f32
    %14 = vector.broadcast %cst : f32 to vector<112x128xf32>
    %15 = arith.maximumf %13, %14 : vector<112x128xf32>
    %c0_9 = arith.constant 0 : index
    %c0_10 = arith.constant 0 : index
    %c0_11 = arith.constant 0 : index
    %16 = vector.load %arg5[%c0_9, %c0_10, %c0_11] : memref<1x112x128xf32, #tpu.memory_space<vmem>>, vector<1x112x128xf32>
    %17 = vector.shape_cast %16 : vector<1x112x128xf32> to vector<112x128xf32>
    %18 = vector.shape_cast %15 : vector<112x128xf32> to vector<1x112x128xf32>
    tpu.vector_store %arg5[%c0_9, %c0_10, %c0_11], %18 {strides = array<i32>} : memref<1x112x128xf32, #tpu.memory_space<vmem>>, vector<1x112x128xf32>,
    return
  }
  func.func @transform_0(%arg0: i32) -> (i32, i32, i32) {
    %c0_i32 = arith.constant 0 : i32
    %c0_i32_0 = arith.constant 0 : i32
    %c0_i32_1 = arith.constant 0 : i32
    return %arg0, %c0_i32, %c0_i32_0 : i32, i32, i32
  }
  func.func @transform_1(%arg0: i32) -> (i32, i32, i32) {
    %c0_i32 = arith.constant 0 : i32
    %c0_i32_0 = arith.constant 0 : i32
    %c0_i32_1 = arith.constant 0 : i32
    return %arg0, %c0_i32, %c0_i32_0 : i32, i32, i32
  }
  func.func @transform_2(%arg0: i32) -> (i32, i32) {
    %c0_i32 = arith.constant 0 : i32
    %c0_i32_0 = arith.constant 0 : i32
    %c0_i32_1 = arith.constant 0 : i32
    return %c0_i32, %c0_i32_0 : i32, i32
  }
  func.func @transform_3(%arg0: i32) -> (i32, i32) {
    %c0_i32 = arith.constant 0 : i32
    %c0_i32_0 = arith.constant 0 : i32
    %c0_i32_1 = arith.constant 0 : i32
    return %c0_i32, %c0_i32_0 : i32, i32
  }
  func.func @transform_4(%arg0: i32) -> (i32, i32, i32) {
    %c0_i32 = arith.constant 0 : i32
    %c0_i32_0 = arith.constant 0 : i32
    %c0_i32_1 = arith.constant 0 : i32
    return %arg0, %c0_i32, %c0_i32_0 : i32, i32, i32
  }
}

</mosaic_0001>

<llo_original>
// kernel: residual_block.5
$region0: #{residual_block.5}
  #allocation0 [shape = 'u32[]', space=smem, size = 0x4, offset = 0x4, fixed_abs, tag = 'smem constant byte address 0x4 - core index']
  #allocation1 [shape = 'u32[144,128]{1,0:T(1,128)}', space=vmem, size = 0x12000, scoped, tag = 'internal scratch']
  %s0 = inlined_call_operand.vmem [shape: bf16[2,112,128], index: 0, kind: input, shape index: {}]
  %s1 = inlined_call_operand.vmem [shape: f32[1,128], index: 1, kind: input, shape index: {}]
  %s2 = inlined_call_operand.vmem [shape: f32[1,128], index: 2, kind: input, shape index: {}]
  %s3 = inlined_call_operand.vmem [shape: bf16[2,112,128], index: 3, kind: output, shape index: {}]
  %s4 = sld [smem:[#allocation0]]
  $region45: #{residual_block.5} parent=0
    _
  %s6 = ssub.s32 1, %s4
  %s7 = scalar_select 0, %s6, %s4
  loop: start=0, step=1, limit=4
  $region2: #{residual_block.5} parent=0 // loop_pre_header
    _
  $region3: #{residual_block.5} parent=0 // loop_header
    %s9 = sphi 0, %s13
    %p10 = scmp.ge.s32.totalorder %s9, 4
    %s19 = sphi 0, %s21
    %s22 = sphi 0, %s19
    %s23 = sphi 0, %s22
    %s39 = sphi 0, %s23
    %s43 = sphi 0, %s43
    %s45 = sphi 0, %s43
    %s46 = sphi 0, %s45
    %s60 = sphi 0, %s46
    %s64 = sphi 0, %s64
    %s66 = sphi 0, %s64
    %s67 = sphi 0, %s66
    %s81 = sphi 0, %s67
    %s87 = sphi 0, %s89
    %s90 = sphi 0, %s87
    %s91 = sphi 0, %s90
    %s107 = sphi 0, %s91
  $region4: #{residual_block.5} parent=0 // loop_header_branch
    %12 = sbr.rel (%p10) target = $region8
  $region5: #{residual_block.5} parent=0 // loop_body
    %s14 = ssub.s32 %s9, 1
    %s15 = ssub.s32 %s9, 2
    %s16 = sadd.s32 %s9, 1
    %s17 = ssub.s32 %s9, %s16
    %p18 = scmp.eq.s32.totalorder %s17, 0
    %s20 = sadd.s32 %s19, 1
    %s21 = scalar_select %p18, %s19, %s20
    %p24 = pneg %p18
    %p25 = scmp.eq.s32.totalorder %s9, 1
    %p26 = por %p24, %p25
    %p27 = scmp.ne.s32.totalorder %s19, %s22
    %p28 = scmp.eq.s32.totalorder %s9, 0
    %p29 = por %p27, %p28
    %p30 = scmp.ne.s32.totalorder %s19, %s22
    %p31 = scmp.eq.s32.totalorder %s14, 1
    %p32 = por %p30, %p31
    %p33 = scmp.ne.s32.totalorder %s22, %s23
    %p34 = scmp.eq.s32.totalorder %s14, 0
    %p35 = por %p33, %p34
    %p36 = scmp.ne.s32.totalorder %s22, %s23
    %p37 = scmp.eq.s32.totalorder %s15, 1
    %p38 = por %p36, %p37
    %p40 = scmp.ne.s32.totalorder %s23, %s39
    %p41 = scmp.eq.s32.totalorder %s15, 0
    %p42 = por %p40, %p41
    %s44 = sadd.s32 %s43, 1
    %p47 = scmp.eq.s32.totalorder %s9, 1
    %p48 = scmp.ne.s32.totalorder %s43, %s45
    %p49 = scmp.eq.s32.totalorder %s9, 0
    %p50 = por %p48, %p49
    %p51 = scmp.ne.s32.totalorder %s43, %s45
    %p52 = scmp.eq.s32.totalorder %s14, 1
    %p53 = por %p51, %p52
    %p54 = scmp.ne.s32.totalorder %s45, %s46
    %p55 = scmp.eq.s32.totalorder %s14, 0
    %p56 = por %p54, %p55
    %p57 = scmp.ne.s32.totalorder %s45, %s46
    %p58 = scmp.eq.s32.totalorder %s15, 1
    %p59 = por %p57, %p58
    %p61 = scmp.ne.s32.totalorder %s46, %s60
    %p62 = scmp.eq.s32.totalorder %s15, 0
    %p63 = por %p61, %p62
    %s65 = sadd.s32 %s64, 1
    %p68 = scmp.eq.s32.totalorder %s9, 1
    %p69 = scmp.ne.s32.totalorder %s64, %s66
    %p70 = scmp.eq.s32.totalorder %s9, 0
    %p71 = por %p69, %p70
    %p72 = scmp.ne.s32.totalorder %s64, %s66
    %p73 = scmp.eq.s32.totalorder %s14, 1
    %p74 = por %p72, %p73
    %p75 = scmp.ne.s32.totalorder %s66, %s67
    %p76 = scmp.eq.s32.totalorder %s14, 0
    %p77 = por %p75, %p76
    %p78 = scmp.ne.s32.totalorder %s66, %s67
    %p79 = scmp.eq.s32.totalorder %s15, 1
    %p80 = por %p78, %p79
    %p82 = scmp.ne.s32.totalorder %s67, %s81
    %p83 = scmp.eq.s32.totalorder %s15, 0
    %p84 = por %p82, %p83
    %s85 = ssub.s32 %s9, %s16
    %p86 = scmp.eq.s32.totalorder %s85, 0
    %s88 = sadd.s32 %s87, 1
    %s89 = scalar_select %p86, %s87, %s88
    %p92 = pneg %p86
    %p93 = scmp.eq.s32.totalorder %s9, 1
    %p94 = por %p92, %p93
    %p95 = scmp.ne.s32.totalorder %s87, %s90
    %p96 = scmp.eq.s32.totalorder %s9, 0
    %p97 = por %p95, %p96
    %p98 = scmp.ne.s32.totalorder %s87, %s90
    %p99 = scmp.eq.s32.totalorder %s14, 1
    %p100 = por %p98, %p99
    %p101 = scmp.ne.s32.totalorder %s90, %s91
    %p102 = scmp.eq.s32.totalorder %s14, 0
    %p103 = por %p101, %p102
    %p104 = scmp.ne.s32.totalorder %s90, %s91
    %p105 = scmp.eq.s32.totalorder %s15, 1
    %p106 = por %p104, %p105
    %p108 = scmp.ne.s32.totalorder %s91, %s107
    %p109 = scmp.eq.s32.totalorder %s15, 0
    %p110 = por %p108, %p109
    %p111 = scmp.le.s32.totalorder 1, %s9
    %p112 = scmp.lt.s32.totalorder %s9, 3
    %p113 = pnand %p111, %p112
    %p114 = pneg %p113
    // Predicated region
    $region9: #{residual_block.5} parent=5 // pred_check
      _
    $region10: #{residual_block.5} parent=5 // pred_check_branch
      %116 = sbr.rel (%p113) target = $region12
    $region11: #{residual_block.5} parent=5 // pred_region
      %s117 = ssub.s32 %s9, 1
      // Predicated region
      $region13: #{residual_block.5} parent=11 // pred_check
        %p118 = pneg %p56
      $region14: #{residual_block.5} parent=11 // pred_check_branch
        %120 = sbr.rel (%p118) target = $region16
      $region15: #{residual_block.5} parent=11 // pred_region
        _
      $region16: #{residual_block.5} parent=11 // pred_fallthru
        _
      // Predicated region
      $region17: #{residual_block.5} parent=11 // pred_check
        %p121 = pneg %p77
      $region18: #{residual_block.5} parent=11 // pred_check_branch
        %123 = sbr.rel (%p121) target = $region20
      $region19: #{residual_block.5} parent=11 // pred_region
        _
      $region20: #{residual_block.5} parent=11 // pred_fallthru
        _
    $region12: #{residual_block.5} parent=5 // pred_fallthru
      _
    %p124 = scmp.lt.s32.totalorder %s9, 2
    // Predicated region
    $region21: #{residual_block.5} parent=5 // pred_check
      %p125 = pneg %p124
    $region22: #{residual_block.5} parent=5 // pred_check_branch
      %127 = sbr.rel (%p125) target = $region24
    $region23: #{residual_block.5} parent=5 // pred_region
      // Predicated region
      $region25: #{residual_block.5} parent=23 // pred_check
        %p128 = pneg %p29
      $region26: #{residual_block.5} parent=23 // pred_check_branch
        %130 = sbr.rel (%p128) target = $region28
      $region27: #{residual_block.5} parent=23 // pred_region
        %p131 = scmp.lt.s32.totalorder %s9, 1
        %s132 = scalar_select %p131, %s9, 1
        %s133 = smul.addr %s132, 14
        %s134 = smul.addr %s133, 4
        %s135 = scalar_lea.vmem %s0, %s134
      $region28: #{residual_block.5} parent=23 // pred_fallthru
        _
    $region24: #{residual_block.5} parent=5 // pred_fallthru
      _
    %p136 = scmp.le.s32.totalorder 1, %s9
    %p137 = scmp.lt.s32.totalorder %s9, 3
    %p138 = pnand %p136, %p137
    %p139 = pneg %p138
    // Predicated region
    $region29: #{residual_block.5} parent=5 // pred_check
      _
    $region30: #{residual_block.5} parent=5 // pred_check_branch
      %141 = sbr.rel (%p138) target = $region32
    $region31: #{residual_block.5} parent=5 // pred_region
      %s142 = ssub.s32 %s9, 1
      %p143 = scmp.lt.s32.totalorder %s14, 1
      %s144 = scalar_select %p143, %s14, 1
      %s145 = smul.addr %s144, 14
      %s146 = smul.addr %s145, 4
      %s147 = scalar_lea.vmem %s0, %s146
      %p148 = pneg %p35
      %p149 = pneg %p32
      %p150 = pneg %p56
      %p151 = pneg %p53
      %p152 = pneg %p77
      %p153 = pneg %p74
      %p154 = pneg %p103
      %p155 = pneg %p100
      %p156 = scmp.lt.s32.totalorder %s14, 1
      %s157 = scalar_select %p156, %s14, 1
      %s158 = smul.addr %s157, 14
      %s159 = smul.addr %s158, 4
      %s160 = scalar_lea.vmem %s3, %s159
      %p161 = scmp.lt.s32.totalorder %s14, 1
      %s162 = scalar_select %p161, %s14, 1
      %s163 = smul.addr %s162, 14
      %s164 = smul.addr %s163, 4
      %s165 = scalar_lea.vmem %s0, %s164
      %p166 = scmp.lt.s32.totalorder %s14, 1
      %s167 = scalar_select %p166, %s14, 1
      %s168 = smul.addr %s167, 14
      %s169 = smul.addr %s168, 4
      %s170 = scalar_lea.vmem %s3, %s169
      %v171 = vlaneseq
      %v172 = vshrl.u32 %v171, 7
      %v173 = vadd.s32 %v172, 8
      %v174 = vadd.s32 %v172, 16
      %v175 = vadd.s32 %v172, 24
      %v176 = vadd.s32 %v172, 32
      %v177 = vadd.s32 %v172, 40
      %v178 = vadd.s32 %v172, 48
      %v179 = vadd.s32 %v172, 56
      %v180 = vadd.s32 %v172, 64
      %v181 = vadd.s32 %v172, 72
      %v182 = vadd.s32 %v172, 80
      %v183 = vadd.s32 %v172, 88
      %v184 = vadd.s32 %v172, 96
      %v185 = vadd.s32 %v172, 104
      %vm186 = vcmp.lt.s32.totalorder %v172, 80
      %vm187 = vcmp.lt.s32.totalorder %v173, 80
      %vm188 = vcmp.lt.s32.totalorder %v174, 80
      %vm189 = vcmp.lt.s32.totalorder %v175, 80
      %vm190 = vcmp.lt.s32.totalorder %v176, 80
      %vm191 = vcmp.lt.s32.totalorder %v177, 80
      %vm192 = vcmp.lt.s32.totalorder %v178, 80
      %vm193 = vcmp.lt.s32.totalorder %v179, 80
      %vm194 = vcmp.lt.s32.totalorder %v180, 80
      %vm195 = vcmp.lt.s32.totalorder %v181, 80
      %vm196 = vcmp.lt.s32.totalorder %v182, 80
      %vm197 = vcmp.lt.s32.totalorder %v183, 80
      %vm198 = vcmp.lt.s32.totalorder %v184, 80
      %vm199 = vcmp.lt.s32.totalorder %v185, 80
      %vm200 = vcmp.lt.s32.totalorder %v172, 0
      %v201 = vsub.s32 0, %v172
      %v202 = vsel %vm200, %v201, %v172
      %v203 = vmul.u32.u64.compose %v202, 3435973837
      %v204 = vextract.low.u32 %v203
      %v205 = vextract.high.u32 %v203
      %v206 = vshrl.u32 %v205, 3
      %v207 = vmul.u32 %v206, 10
      %v208 = vsub.s32 %v202, %v207
      %v209 = vsub.s32 0, %v208
      %v210 = vsel %vm200, %v209, %v208
      %vm211 = vcmp.lt.s32.totalorder %v173, 0
      %v212 = vsub.s32 0, %v173
      %v213 = vsel %vm211, %v212, %v173
      %v214 = vmul.u32.u64.compose %v213, 3435973837
      %v215 = vextract.low.u32 %v214
      %v216 = vextract.high.u32 %v214
      %v217 = vshrl.u32 %v216, 3
      %v218 = vmul.u32 %v217, 10
      %v219 = vsub.s32 %v213, %v218
      %v220 = vsub.s32 0, %v219
      %v221 = vsel %vm211, %v220, %v219
      %vm222 = vcmp.lt.s32.totalorder %v174, 0
      %v223 = vsub.s32 0, %v174
      %v224 = vsel %vm222, %v223, %v174
      %v225 = vmul.u32.u64.compose %v224, 3435973837
      %v226 = vextract.low.u32 %v225
      %v227 = vextract.high.u32 %v225
      %v228 = vshrl.u32 %v227, 3
      %v229 = vmul.u32 %v228, 10
      %v230 = vsub.s32 %v224, %v229
      %v231 = vsub.s32 0, %v230
      %v232 = vsel %vm222, %v231, %v230
      %vm233 = vcmp.lt.s32.totalorder %v175, 0
      %v234 = vsub.s32 0, %v175
      %v235 = vsel %vm233, %v234, %v175
      %v236 = vmul.u32.u64.compose %v235, 3435973837
      %v237 = vextract.low.u32 %v236
      %v238 = vextract.high.u32 %v236
      %v239 = vshrl.u32 %v238, 3
      %v240 = vmul.u32 %v239, 10
      %v241 = vsub.s32 %v235, %v240
      %v242 = vsub.s32 0, %v241
      %v243 = vsel %vm233, %v242, %v241
      %vm244 = vcmp.lt.s32.totalorder %v176, 0
      %v245 = vsub.s32 0, %v176
      %v246 = vsel %vm244, %v245, %v176
      %v247 = vmul.u32.u64.compose %v246, 3435973837
      %v248 = vextract.low.u32 %v247
      %v249 = vextract.high.u32 %v247
      %v250 = vshrl.u32 %v249, 3
      %v251 = vmul.u32 %v250, 10
      %v252 = vsub.s32 %v246, %v251
      %v253 = vsub.s32 0, %v252
      %v254 = vsel %vm244, %v253, %v252
      %vm255 = vcmp.lt.s32.totalorder %v177, 0
      %v256 = vsub.s32 0, %v177
      %v257 = vsel %vm255, %v256, %v177
      %v258 = vmul.u32.u64.compose %v257, 3435973837
      %v259 = vextract.low.u32 %v258
      %v260 = vextract.high.u32 %v258
      %v261 = vshrl.u32 %v260, 3
      %v262 = vmul.u32 %v261, 10
      %v263 = vsub.s32 %v257, %v262
      %v264 = vsub.s32 0, %v263
      %v265 = vsel %vm255, %v264, %v263
      %vm266 = vcmp.lt.s32.totalorder %v178, 0
      %v267 = vsub.s32 0, %v178
      %v268 = vsel %vm266, %v267, %v178
      %v269 = vmul.u32.u64.compose %v268, 3435973837
      %v270 = vextract.low.u32 %v269
      %v271 = vextract.high.u32 %v269
      %v272 = vshrl.u32 %v271, 3
      %v273 = vmul.u32 %v272, 10
      %v274 = vsub.s32 %v268, %v273
      %v275 = vsub.s32 0, %v274
      %v276 = vsel %vm266, %v275, %v274
      %vm277 = vcmp.lt.s32.totalorder %v179, 0
      %v278 = vsub.s32 0, %v179
      %v279 = vsel %vm277, %v278, %v179
      %v280 = vmul.u32.u64.compose %v279, 3435973837
      %v281 = vextract.low.u32 %v280
      %v282 = vextract.high.u32 %v280
      %v283 = vshrl.u32 %v282, 3
      %v284 = vmul.u32 %v283, 10
      %v285 = vsub.s32 %v279, %v284
      %v286 = vsub.s32 0, %v285
      %v287 = vsel %vm277, %v286, %v285
      %vm288 = vcmp.lt.s32.totalorder %v180, 0
      %v289 = vsub.s32 0, %v180
      %v290 = vsel %vm288, %v289, %v180
      %v291 = vmul.u32.u64.compose %v290, 3435973837
      %v292 = vextract.low.u32 %v291
      %v293 = vextract.high.u32 %v291
      %v294 = vshrl.u32 %v293, 3
      %v295 = vmul.u32 %v294, 10
      %v296 = vsub.s32 %v290, %v295
      %v297 = vsub.s32 0, %v296
      %v298 = vsel %vm288, %v297, %v296
      %vm299 = vcmp.lt.s32.totalorder %v181, 0
      %v300 = vsub.s32 0, %v181
      %v301 = vsel %vm299, %v300, %v181
      %v302 = vmul.u32.u64.compose %v301, 3435973837
      %v303 = vextract.low.u32 %v302
      %v304 = vextract.high.u32 %v302
      %v305 = vshrl.u32 %v304, 3
      %v306 = vmul.u32 %v305, 10
      %v307 = vsub.s32 %v301, %v306
      %v308 = vsub.s32 0, %v307
      %v309 = vsel %vm299, %v308, %v307
      %vm310 = vcmp.lt.s32.totalorder %v182, 0
      %v311 = vsub.s32 0, %v182
      %v312 = vsel %vm310, %v311, %v182
      %v313 = vmul.u32.u64.compose %v312, 3435973837
      %v314 = vextract.low.u32 %v313
      %v315 = vextract.high.u32 %v313
      %v316 = vshrl.u32 %v315, 3
      %v317 = vmul.u32 %v316, 10
      %v318 = vsub.s32 %v312, %v317
      %v319 = vsub.s32 0, %v318
      %v320 = vsel %vm310, %v319, %v318
      %vm321 = vcmp.lt.s32.totalorder %v183, 0
      %v322 = vsub.s32 0, %v183
      %v323 = vsel %vm321, %v322, %v183
      %v324 = vmul.u32.u64.compose %v323, 3435973837
      %v325 = vextract.low.u32 %v324
      %v326 = vextract.high.u32 %v324
      %v327 = vshrl.u32 %v326, 3
      %v328 = vmul.u32 %v327, 10
      %v329 = vsub.s32 %v323, %v328
      %v330 = vsub.s32 0, %v329
      %v331 = vsel %vm321, %v330, %v329
      %vm332 = vcmp.lt.s32.totalorder %v184, 0
      %v333 = vsub.s32 0, %v184
      %v334 = vsel %vm332, %v333, %v184
      %v335 = vmul.u32.u64.compose %v334, 3435973837
      %v336 = vextract.low.u32 %v335
      %v337 = vextract.high.u32 %v335
      %v338 = vshrl.u32 %v337, 3
      %v339 = vmul.u32 %v338, 10
      %v340 = vsub.s32 %v334, %v339
      %v341 = vsub.s32 0, %v340
      %v342 = vsel %vm332, %v341, %v340
      %vm343 = vcmp.lt.s32.totalorder %v185, 0
      %v344 = vsub.s32 0, %v185
      %v345 = vsel %vm343, %v344, %v185
      %v346 = vmul.u32.u64.compose %v345, 3435973837
      %v347 = vextract.low.u32 %v346
      %v348 = vextract.high.u32 %v346
      %v349 = vshrl.u32 %v348, 3
      %v350 = vmul.u32 %v349, 10
      %v351 = vsub.s32 %v345, %v350
      %v352 = vsub.s32 0, %v351
      %v353 = vsel %vm343, %v352, %v351
      %vm354 = vcmp.ne.s32.totalorder %v210, 0
      %vm355 = vcmp.ne.s32.totalorder %v221, 0
      %vm356 = vcmp.ne.s32.totalorder %v232, 0
      %vm357 = vcmp.ne.s32.totalorder %v243, 0
      %vm358 = vcmp.ne.s32.totalorder %v254, 0
      %vm359 = vcmp.ne.s32.totalorder %v265, 0
      %vm360 = vcmp.ne.s32.totalorder %v276, 0
      %vm361 = vcmp.ne.s32.totalorder %v287, 0
      %vm362 = vcmp.ne.s32.totalorder %v298, 0
      %vm363 = vcmp.ne.s32.totalorder %v309, 0
      %vm364 = vcmp.ne.s32.totalorder %v320, 0
      %vm365 = vcmp.ne.s32.totalorder %v331, 0
      %vm366 = vcmp.ne.s32.totalorder %v342, 0
      %vm367 = vcmp.ne.s32.totalorder %v353, 0
      %vm368 = vcmp.lt.s32.totalorder %v210, 0
      %vm369 = vcmp.lt.s32.totalorder %v221, 0
      %vm370 = vcmp.lt.s32.totalorder %v232, 0
      %vm371 = vcmp.lt.s32.totalorder %v243, 0
      %vm372 = vcmp.lt.s32.totalorder %v254, 0
      %vm373 = vcmp.lt.s32.totalorder %v265, 0
      %vm374 = vcmp.lt.s32.totalorder %v276, 0
      %vm375 = vcmp.lt.s32.totalorder %v287, 0
      %vm376 = vcmp.lt.s32.totalorder %v298, 0
      %vm377 = vcmp.lt.s32.totalorder %v309, 0
      %vm378 = vcmp.lt.s32.totalorder %v320, 0
      %vm379 = vcmp.lt.s32.totalorder %v331, 0
      %vm380 = vcmp.lt.s32.totalorder %v342, 0
      %vm381 = vcmp.lt.s32.totalorder %v353, 0
      %vm382 = vmand %vm368, %vm354
      %vm383 = vmand %vm369, %vm355
      %vm384 = vmand %vm370, %vm356
      %vm385 = vmand %vm371, %vm357
      %vm386 = vmand %vm372, %vm358
      %vm387 = vmand %vm373, %vm359
      %vm388 = vmand %vm374, %vm360
      %vm389 = vmand %vm375, %vm361
      %vm390 = vmand %vm376, %vm362
      %vm391 = vmand %vm377, %vm363
      %vm392 = vmand %vm378, %vm364
      %vm393 = vmand %vm379, %vm365
      %vm394 = vmand %vm380, %vm366
      %vm395 = vmand %vm381, %vm367
      %v396 = vadd.s32 %v210, 10
      %v397 = vadd.s32 %v221, 10
      %v398 = vadd.s32 %v232, 10
      %v399 = vadd.s32 %v243, 10
      %v400 = vadd.s32 %v254, 10
      %v401 = vadd.s32 %v265, 10
      %v402 = vadd.s32 %v276, 10
      %v403 = vadd.s32 %v287, 10
      %v404 = vadd.s32 %v298, 10
      %v405 = vadd.s32 %v309, 10
      %v406 = vadd.s32 %v320, 10
      %v407 = vadd.s32 %v331, 10
      %v408 = vadd.s32 %v342, 10
      %v409 = vadd.s32 %v353, 10
      %v410 = vsel %vm382, %v396, %v210
      %v411 = vsel %vm383, %v397, %v221
      %v412 = vsel %vm384, %v398, %v232
      %v413 = vsel %vm385, %v399, %v243
      %v414 = vsel %vm386, %v400, %v254
      %v415 = vsel %vm387, %v401, %v265
      %v416 = vsel %vm388, %v402, %v276
      %v417 = vsel %vm389, %v403, %v287
      %v418 = vsel %vm390, %v404, %v298
      %v419 = vsel %vm391, %v405, %v309
      %v420 = vsel %vm392, %v406, %v320
      %v421 = vsel %vm393, %v407, %v331
      %v422 = vsel %vm394, %v408, %v342
      %v423 = vsel %vm395, %v409, %v353
      %vm424 = vcmp.lt.s32.totalorder %v410, 8
      %vm425 = vcmp.lt.s32.totalorder %v411, 8
      %vm426 = vcmp.lt.s32.totalorder %v412, 8
      %vm427 = vcmp.lt.s32.totalorder %v413, 8
      %vm428 = vcmp.lt.s32.totalorder %v414, 8
      %vm429 = vcmp.lt.s32.totalorder %v415, 8
      %vm430 = vcmp.lt.s32.totalorder %v416, 8
      %vm431 = vcmp.lt.s32.totalorder %v417, 8
      %vm432 = vcmp.lt.s32.totalorder %v418, 8
      %vm433 = vcmp.lt.s32.totalorder %v419, 8
      %vm434 = vcmp.lt.s32.totalorder %v420, 8
      %vm435 = vcmp.lt.s32.totalorder %v421, 8
      %vm436 = vcmp.lt.s32.totalorder %v422, 8
      %vm437 = vcmp.lt.s32.totalorder %v423, 8
      %vm438 = vmand %vm186, %vm424
      %vm439 = vmand %vm187, %vm425
      %vm440 = vmand %vm188, %vm426
      %vm441 = vmand %vm189, %vm427
      %vm442 = vmand %vm190, %vm428
      %vm443 = vmand %vm191, %vm429
      %vm444 = vmand %vm192, %vm430
      %vm445 = vmand %vm193, %vm431
      %vm446 = vmand %vm194, %vm432
      %vm447 = vmand %vm195, %vm433
      %vm448 = vmand %vm196, %vm434
      %vm449 = vmand %vm197, %vm435
      %vm450 = vmand %vm198, %vm436
      %vm451 = vmand %vm199, %vm437
      %v452 = vld [vmem:[%s1] sm:$0x1]
      %v453 = vld [vmem:[%s2] sm:$0x1]
      %v454 = vld [vmem:[%s165] sm:$0xf]
      %v455 = vld [vmem:[%s165 + $0x4] sm:$0xf]
      %v456 = vld [vmem:[%s165 + $0x8] sm:$0xf]
      %v457 = vld [vmem:[%s165 + $0xc] sm:$0xf]
      %v458 = vld [vmem:[%s165 + $0x10] sm:$0xf]
      %v459 = vld [vmem:[%s165 + $0x14] sm:$0xf]
      %v460 = vld [vmem:[%s165 + $0x18] sm:$0xf]
      %v461 = vld [vmem:[%s165 + $0x1c] sm:$0xf]
      %v462 = vld [vmem:[%s165 + $0x20] sm:$0xf]
      %v463 = vld [vmem:[%s165 + $0x24] sm:$0xf]
      %v464 = vld [vmem:[%s165 + $0x28] sm:$0xf]
      %v465 = vld [vmem:[%s165 + $0x2c] sm:$0xf]
      %v466 = vld [vmem:[%s165 + $0x30] sm:$0xf]
      %v467 = vld [vmem:[%s165 + $0x34] sm:$0xf]
      %v468 = vunpack.c.l.bf16 %v454
      %v469 = vunpack.c.l.bf16 %v455
      %v470 = vunpack.c.l.bf16 %v456
      %v471 = vunpack.c.l.bf16 %v457
      %v472 = vunpack.c.l.bf16 %v458
      %v473 = vunpack.c.l.bf16 %v459
      %v474 = vunpack.c.l.bf16 %v460
      %v475 = vunpack.c.l.bf16 %v461
      %v476 = vunpack.c.l.bf16 %v462
      %v477 = vunpack.c.l.bf16 %v463
      %v478 = vunpack.c.l.bf16 %v464
      %v479 = vunpack.c.l.bf16 %v465
      %v480 = vunpack.c.l.bf16 %v466
      %v481 = vunpack.c.l.bf16 %v467
      %v483 = vlaneseq
      %v484 = vshrl.u32 %v483, 7
      %v485 = vsub.s32 0, %v484
      %v486 = vrot.slane %v452, %v485
      %v488 = vmul.f32 %v468, %v486
      %v489 = vmul.f32 %v469, %v486
      %v490 = vmul.f32 %v470, %v486
      %v491 = vmul.f32 %v471, %v486
      %v492 = vmul.f32 %v472, %v486
      %v493 = vmul.f32 %v473, %v486
      %v494 = vmul.f32 %v474, %v486
      %v495 = vmul.f32 %v475, %v486
      %v496 = vmul.f32 %v476, %v486
      %v497 = vmul.f32 %v477, %v486
      %v498 = vmul.f32 %v478, %v486
      %v499 = vmul.f32 %v479, %v486
      %v500 = vmul.f32 %v480, %v486
      %v501 = vmul.f32 %v481, %v486
      %v503 = vlaneseq
      %v504 = vshrl.u32 %v503, 7
      %v505 = vsub.s32 0, %v504
      %v506 = vrot.slane %v453, %v505
      %v508 = vadd.f32 %v488, %v506
      %v509 = vadd.f32 %v489, %v506
      %v510 = vadd.f32 %v490, %v506
      %v511 = vadd.f32 %v491, %v506
      %v512 = vadd.f32 %v492, %v506
      %v513 = vadd.f32 %v493, %v506
      %v514 = vadd.f32 %v494, %v506
      %v515 = vadd.f32 %v495, %v506
      %v516 = vadd.f32 %v496, %v506
      %v517 = vadd.f32 %v497, %v506
      %v518 = vadd.f32 %v498, %v506
      %v519 = vadd.f32 %v499, %v506
      %v520 = vadd.f32 %v500, %v506
      %v521 = vadd.f32 %v501, %v506
      %v522 = vmax.f32 %v508, 0.0
      %v523 = vmax.f32 %v509, 0.0
      %v524 = vmax.f32 %v510, 0.0
      %v525 = vmax.f32 %v511, 0.0
      %v526 = vmax.f32 %v512, 0.0
      %v527 = vmax.f32 %v513, 0.0
      %v528 = vmax.f32 %v514, 0.0
      %v529 = vmax.f32 %v515, 0.0
      %v530 = vmax.f32 %v516, 0.0
      %v531 = vmax.f32 %v517, 0.0
      %v532 = vmax.f32 %v518, 0.0
      %v533 = vmax.f32 %v519, 0.0
      %v534 = vmax.f32 %v520, 0.0
      %v535 = vmax.f32 %v521, 0.0
      %v536 = vsel %vm438, %v522, 0.0
      %v537 = vsel %vm439, %v523, 0.0
      %v538 = vsel %vm440, %v524, 0.0
      %v539 = vsel %vm441, %v525, 0.0
      %v540 = vsel %vm442, %v526, 0.0
      %v541 = vsel %vm443, %v527, 0.0
      %v542 = vsel %vm444, %v528, 0.0
      %v543 = vsel %vm445, %v529, 0.0
      %v544 = vsel %vm446, %v530, 0.0
      %v545 = vsel %vm447, %v531, 0.0
      %v546 = vsel %vm448, %v532, 0.0
      %v547 = vsel %vm449, %v533, 0.0
      %v548 = vsel %vm450, %v534, 0.0
      %v549 = vsel %vm451, %v535, 0.0
      %v550 = vrot.slane %v536, 5
      %v551 = vrot.slane %v537, 5
      %v552 = vrot.slane %v538, 5
      %v553 = vrot.slane %v539, 5
      %v554 = vrot.slane %v540, 5
      %v555 = vrot.slane %v541, 5
      %v556 = vrot.slane %v542, 5
      %v557 = vrot.slane %v543, 5
      %v558 = vrot.slane %v544, 5
      %v559 = vrot.slane %v545, 5
      %v560 = vrot.slane %v546, 5
      %v561 = vrot.slane %v547, 5
      %v562 = vrot.slane %v548, 5
      %v563 = vrot.slane %v549, 5
      %vm564 = vcmp.lt.s32.totalorder %v172, 3
      %v565 = vsel %vm564, %v562, %v563
      %v566 = vsel %vm564, %v561, %v562
      %v567 = vsel %vm564, %v560, %v561
      %v568 = vsel %vm564, %v559, %v560
      %v569 = vsel %vm564, %v558, %v559
      %v570 = vsel %vm564, %v557, %v558
      %v571 = vsel %vm564, %v556, %v557
      %v572 = vsel %vm564, %v555, %v556
      %v573 = vsel %vm564, %v554, %v555
      %v574 = vsel %vm564, %v553, %v554
      %v575 = vsel %vm564, %v552, %v553
      %v576 = vsel %vm564, %v551, %v552
      %v577 = vsel %vm564, %v550, %v551
      %v578 = vsel %vm564, %v563, %v550
      %v579 = vpack.c.bf16 %v578, %v565
      %v580 = vpack.c.bf16 %v576, %v577
      %v581 = vpack.c.bf16 %v574, %v575
      %v582 = vpack.c.bf16 %v572, %v573
      %v583 = vpack.c.bf16 %v570, %v571
      %v584 = vpack.c.bf16 %v568, %v569
      %v585 = vpack.c.bf16 %v566, %v567
      %v593 = vunpack.c.l.b16 %v579
      %v594 = vunpack.c.h.b16 %v579
      %v595 = vunpack.c.l.b16 %v580
      %v596 = vunpack.c.h.b16 %v580
      %v597 = vunpack.c.l.b16 %v581
      %v598 = vunpack.c.h.b16 %v581
      %v599 = vunpack.c.l.b16 %v582
      %v600 = vunpack.c.h.b16 %v582
      %v601 = vunpack.c.l.b16 %v583
      %v602 = vunpack.c.h.b16 %v583
      %v603 = vunpack.c.l.b16 %v584
      %v604 = vunpack.c.h.b16 %v584
      %v605 = vunpack.c.l.b16 %v585
      %v606 = vunpack.c.h.b16 %v585
      %v607 = vpack.c.b16 %v593, %v593
      %v608 = vpack.c.b16 %v594, %v594
      %v609 = vpack.c.b16 %v595, %v595
      %v610 = vpack.c.b16 %v596, %v596
      %v611 = vpack.c.b16 %v597, %v597
      %v612 = vpack.c.b16 %v598, %v598
      %v613 = vpack.c.b16 %v599, %v599
      %v614 = vpack.c.b16 %v600, %v600
      %v615 = vpack.c.b16 %v601, %v601
      %v616 = vpack.c.b16 %v602, %v602
      %v617 = vpack.c.b16 %v603, %v603
      %v618 = vpack.c.b16 %v604, %v604
      %v619 = vpack.c.b16 %v605, %v605
      %v620 = vpack.c.b16 %v606, %v606
      %635 = vst [vmem:[%s170] sm:$0xf] %v607
      %636 = vst [vmem:[%s170 + $0x4] sm:$0xf] %v608
      %637 = vst [vmem:[%s170 + $0x8] sm:$0xf] %v609
      %638 = vst [vmem:[%s170 + $0xc] sm:$0xf] %v610
      %639 = vst [vmem:[%s170 + $0x10] sm:$0xf] %v611
      %640 = vst [vmem:[%s170 + $0x14] sm:$0xf] %v612
      %641 = vst [vmem:[%s170 + $0x18] sm:$0xf] %v613
      %642 = vst [vmem:[%s170 + $0x1c] sm:$0xf] %v614
      %643 = vst [vmem:[%s170 + $0x20] sm:$0xf] %v615
      %644 = vst [vmem:[%s170 + $0x24] sm:$0xf] %v616
      %645 = vst [vmem:[%s170 + $0x28] sm:$0xf] %v617
      %646 = vst [vmem:[%s170 + $0x2c] sm:$0xf] %v618
      %647 = vst [vmem:[%s170 + $0x30] sm:$0xf] %v619
      %648 = vst [vmem:[%s170 + $0x34] sm:$0xf] %v620
      %p649 = scmp.lt.s32.totalorder %s14, 1
      %s650 = scalar_select %p649, %s14, 1
      %s651 = smul.addr %s650, 14
      %s652 = smul.addr %s651, 4
      %s653 = scalar_lea.vmem %s3, %s652
      // Predicated region
      $region33: #{residual_block.5} parent=31 // pred_check
        %p654 = pneg %p100
      $region34: #{residual_block.5} parent=31 // pred_check_branch
        %656 = sbr.rel (%p654) target = $region36
      $region35: #{residual_block.5} parent=31 // pred_region
        _
      $region36: #{residual_block.5} parent=31 // pred_fallthru
        _
    $region32: #{residual_block.5} parent=5 // pred_fallthru
      _
    %p657 = scmp.le.s32.totalorder 2, %s9
    // Predicated region
    $region37: #{residual_block.5} parent=5 // pred_check
      %p658 = pneg %p657
    $region38: #{residual_block.5} parent=5 // pred_check_branch
      %660 = sbr.rel (%p658) target = $region40
    $region39: #{residual_block.5} parent=5 // pred_region
      %s661 = ssub.s32 %s9, 2
      // Predicated region
      $region41: #{residual_block.5} parent=39 // pred_check
        %p662 = pneg %p106
      $region42: #{residual_block.5} parent=39 // pred_check_branch
        %664 = sbr.rel (%p662) target = $region44
      $region43: #{residual_block.5} parent=39 // pred_region
        %p665 = scmp.lt.s32.totalorder %s15, 1
        %s666 = scalar_select %p665, %s15, 1
        %s667 = smul.addr %s666, 14
        %s668 = smul.addr %s667, 4
        %s669 = scalar_lea.vmem %s3, %s668
      $region44: #{residual_block.5} parent=39 // pred_fallthru
        _
    $region40: #{residual_block.5} parent=5 // pred_fallthru
      _
  $region6: #{residual_block.5} parent=0 // loop_footer
    %s13 = sadd.s32 1, %s9
  $region7: #{residual_block.5} parent=0 // loop_footer_branch
    %8 = sbr.rel target = $region3
  $region8: #{residual_block.5} parent=0 // loop_exit
    _

// kernel: residual_block.7
$region0: #{residual_block.7}
  #allocation0 [shape = 'u32[]', space=smem, size = 0x4, offset = 0x4, fixed_abs, tag = 'smem constant byte address 0x4 - core index']
  #allocation1 [shape = 'u32[144,128]{1,0:T(1,128)}', space=vmem, size = 0x12000, scoped, tag = 'internal scratch']
  %s0 = inlined_call_operand.vmem [shape: bf16[2,112,128], index: 0, kind: input, shape index: {}]
  %s1 = inlined_call_operand.vmem [shape: bf16[2,112,128], index: 1, kind: input, shape index: {}]
  %s2 = inlined_call_operand.vmem [shape: f32[1,128], index: 2, kind: input, shape index: {}]
  %s3 = inlined_call_operand.vmem [shape: f32[1,128], index: 3, kind: input, shape index: {}]
  %s4 = inlined_call_operand.vmem [shape: f32[2,112,128], index: 4, kind: output, shape index: {}]
  %s5 = sld [smem:[#allocation0]]
  $region49: #{residual_block.7} parent=0
    _
  %s7 = ssub.s32 1, %s5
  %s8 = scalar_select 0, %s7, %s5
  loop: start=0, step=1, limit=4
  $region2: #{residual_block.7} parent=0 // loop_pre_header
    _
  $region3: #{residual_block.7} parent=0 // loop_header
    %s10 = sphi 0, %s14
    %p11 = scmp.ge.s32.totalorder %s10, 4
    %s20 = sphi 0, %s22
    %s23 = sphi 0, %s20
    %s24 = sphi 0, %s23
    %s40 = sphi 0, %s24
    %s46 = sphi 0, %s48
    %s49 = sphi 0, %s46
    %s50 = sphi 0, %s49
    %s66 = sphi 0, %s50
    %s70 = sphi 0, %s70
    %s72 = sphi 0, %s70
    %s73 = sphi 0, %s72
    %s87 = sphi 0, %s73
    %s91 = sphi 0, %s91
    %s93 = sphi 0, %s91
    %s94 = sphi 0, %s93
    %s108 = sphi 0, %s94
    %s114 = sphi 0, %s116
    %s117 = sphi 0, %s114
    %s118 = sphi 0, %s117
    %s134 = sphi 0, %s118
  $region4: #{residual_block.7} parent=0 // loop_header_branch
    %13 = sbr.rel (%p11) target = $region8
  $region5: #{residual_block.7} parent=0 // loop_body
    %s15 = ssub.s32 %s10, 1
    %s16 = ssub.s32 %s10, 2
    %s17 = sadd.s32 %s10, 1
    %s18 = ssub.s32 %s10, %s17
    %p19 = scmp.eq.s32.totalorder %s18, 0
    %s21 = sadd.s32 %s20, 1
    %s22 = scalar_select %p19, %s20, %s21
    %p25 = pneg %p19
    %p26 = scmp.eq.s32.totalorder %s10, 1
    %p27 = por %p25, %p26
    %p28 = scmp.ne.s32.totalorder %s20, %s23
    %p29 = scmp.eq.s32.totalorder %s10, 0
    %p30 = por %p28, %p29
    %p31 = scmp.ne.s32.totalorder %s20, %s23
    %p32 = scmp.eq.s32.totalorder %s15, 1
    %p33 = por %p31, %p32
    %p34 = scmp.ne.s32.totalorder %s23, %s24
    %p35 = scmp.eq.s32.totalorder %s15, 0
    %p36 = por %p34, %p35
    %p37 = scmp.ne.s32.totalorder %s23, %s24
    %p38 = scmp.eq.s32.totalorder %s16, 1
    %p39 = por %p37, %p38
    %p41 = scmp.ne.s32.totalorder %s24, %s40
    %p42 = scmp.eq.s32.totalorder %s16, 0
    %p43 = por %p41, %p42
    %s44 = ssub.s32 %s10, %s17
    %p45 = scmp.eq.s32.totalorder %s44, 0
    %s47 = sadd.s32 %s46, 1
    %s48 = scalar_select %p45, %s46, %s47
    %p51 = pneg %p45
    %p52 = scmp.eq.s32.totalorder %s10, 1
    %p53 = por %p51, %p52
    %p54 = scmp.ne.s32.totalorder %s46, %s49
    %p55 = scmp.eq.s32.totalorder %s10, 0
    %p56 = por %p54, %p55
    %p57 = scmp.ne.s32.totalorder %s46, %s49
    %p58 = scmp.eq.s32.totalorder %s15, 1
    %p59 = por %p57, %p58
    %p60 = scmp.ne.s32.totalorder %s49, %s50
    %p61 = scmp.eq.s32.totalorder %s15, 0
    %p62 = por %p60, %p61
    %p63 = scmp.ne.s32.totalorder %s49, %s50
    %p64 = scmp.eq.s32.totalorder %s16, 1
    %p65 = por %p63, %p64
    %p67 = scmp.ne.s32.totalorder %s50, %s66
    %p68 = scmp.eq.s32.totalorder %s16, 0
    %p69 = por %p67, %p68
    %s71 = sadd.s32 %s70, 1
    %p74 = scmp.eq.s32.totalorder %s10, 1
    %p75 = scmp.ne.s32.totalorder %s70, %s72
    %p76 = scmp.eq.s32.totalorder %s10, 0
    %p77 = por %p75, %p76
    %p78 = scmp.ne.s32.totalorder %s70, %s72
    %p79 = scmp.eq.s32.totalorder %s15, 1
    %p80 = por %p78, %p79
    %p81 = scmp.ne.s32.totalorder %s72, %s73
    %p82 = scmp.eq.s32.totalorder %s15, 0
    %p83 = por %p81, %p82
    %p84 = scmp.ne.s32.totalorder %s72, %s73
    %p85 = scmp.eq.s32.totalorder %s16, 1
    %p86 = por %p84, %p85
    %p88 = scmp.ne.s32.totalorder %s73, %s87
    %p89 = scmp.eq.s32.totalorder %s16, 0
    %p90 = por %p88, %p89
    %s92 = sadd.s32 %s91, 1
    %p95 = scmp.eq.s32.totalorder %s10, 1
    %p96 = scmp.ne.s32.totalorder %s91, %s93
    %p97 = scmp.eq.s32.totalorder %s10, 0
    %p98 = por %p96, %p97
    %p99 = scmp.ne.s32.totalorder %s91, %s93
    %p100 = scmp.eq.s32.totalorder %s15, 1
    %p101 = por %p99, %p100
    %p102 = scmp.ne.s32.totalorder %s93, %s94
    %p103 = scmp.eq.s32.totalorder %s15, 0
    %p104 = por %p102, %p103
    %p105 = scmp.ne.s32.totalorder %s93, %s94
    %p106 = scmp.eq.s32.totalorder %s16, 1
    %p107 = por %p105, %p106
    %p109 = scmp.ne.s32.totalorder %s94, %s108
    %p110 = scmp.eq.s32.totalorder %s16, 0
    %p111 = por %p109, %p110
    %s112 = ssub.s32 %s10, %s17
    %p113 = scmp.eq.s32.totalorder %s112, 0
    %s115 = sadd.s32 %s114, 1
    %s116 = scalar_select %p113, %s114, %s115
    %p119 = pneg %p113
    %p120 = scmp.eq.s32.totalorder %s10, 1
    %p121 = por %p119, %p120
    %p122 = scmp.ne.s32.totalorder %s114, %s117
    %p123 = scmp.eq.s32.totalorder %s10, 0
    %p124 = por %p122, %p123
    %p125 = scmp.ne.s32.totalorder %s114, %s117
    %p126 = scmp.eq.s32.totalorder %s15, 1
    %p127 = por %p125, %p126
    %p128 = scmp.ne.s32.totalorder %s117, %s118
    %p129 = scmp.eq.s32.totalorder %s15, 0
    %p130 = por %p128, %p129
    %p131 = scmp.ne.s32.totalorder %s117, %s118
    %p132 = scmp.eq.s32.totalorder %s16, 1
    %p133 = por %p131, %p132
    %p135 = scmp.ne.s32.totalorder %s118, %s134
    %p136 = scmp.eq.s32.totalorder %s16, 0
    %p137 = por %p135, %p136
    %p138 = scmp.le.s32.totalorder 1, %s10
    %p139 = scmp.lt.s32.totalorder %s10, 3
    %p140 = pnand %p138, %p139
    %p141 = pneg %p140
    // Predicated region
    $region9: #{residual_block.7} parent=5 // pred_check
      _
    $region10: #{residual_block.7} parent=5 // pred_check_branch
      %143 = sbr.rel (%p140) target = $region12
    $region11: #{residual_block.7} parent=5 // pred_region
      %s144 = ssub.s32 %s10, 1
      // Predicated region
      $region13: #{residual_block.7} parent=11 // pred_check
        %p145 = pneg %p83
      $region14: #{residual_block.7} parent=11 // pred_check_branch
        %147 = sbr.rel (%p145) target = $region16
      $region15: #{residual_block.7} parent=11 // pred_region
        _
      $region16: #{residual_block.7} parent=11 // pred_fallthru
        _
      // Predicated region
      $region17: #{residual_block.7} parent=11 // pred_check
        %p148 = pneg %p104
      $region18: #{residual_block.7} parent=11 // pred_check_branch
        %150 = sbr.rel (%p148) target = $region20
      $region19: #{residual_block.7} parent=11 // pred_region
        _
      $region20: #{residual_block.7} parent=11 // pred_fallthru
        _
    $region12: #{residual_block.7} parent=5 // pred_fallthru
      _
    %p151 = scmp.lt.s32.totalorder %s10, 2
    // Predicated region
    $region21: #{residual_block.7} parent=5 // pred_check
      %p152 = pneg %p151
    $region22: #{residual_block.7} parent=5 // pred_check_branch
      %154 = sbr.rel (%p152) target = $region24
    $region23: #{residual_block.7} parent=5 // pred_region
      // Predicated region
      $region25: #{residual_block.7} parent=23 // pred_check
        %p155 = pneg %p30
      $region26: #{residual_block.7} parent=23 // pred_check_branch
        %157 = sbr.rel (%p155) target = $region28
      $region27: #{residual_block.7} parent=23 // pred_region
        %p158 = scmp.lt.s32.totalorder %s10, 1
        %s159 = scalar_select %p158, %s10, 1
        %s160 = smul.addr %s159, 14
        %s161 = smul.addr %s160, 4
        %s162 = scalar_lea.vmem %s0, %s161
      $region28: #{residual_block.7} parent=23 // pred_fallthru
        _
      // Predicated region
      $region29: #{residual_block.7} parent=23 // pred_check
        %p163 = pneg %p56
      $region30: #{residual_block.7} parent=23 // pred_check_branch
        %165 = sbr.rel (%p163) target = $region32
      $region31: #{residual_block.7} parent=23 // pred_region
        %p166 = scmp.lt.s32.totalorder %s10, 1
        %s167 = scalar_select %p166, %s10, 1
        %s168 = smul.addr %s167, 14
        %s169 = smul.addr %s168, 4
        %s170 = scalar_lea.vmem %s1, %s169
      $region32: #{residual_block.7} parent=23 // pred_fallthru
        _
    $region24: #{residual_block.7} parent=5 // pred_fallthru
      _
    %p171 = scmp.le.s32.totalorder 1, %s10
    %p172 = scmp.lt.s32.totalorder %s10, 3
    %p173 = pnand %p171, %p172
    %p174 = pneg %p173
    // Predicated region
    $region33: #{residual_block.7} parent=5 // pred_check
      _
    $region34: #{residual_block.7} parent=5 // pred_check_branch
      %176 = sbr.rel (%p173) target = $region36
    $region35: #{residual_block.7} parent=5 // pred_region
      %s177 = ssub.s32 %s10, 1
      %p178 = scmp.lt.s32.totalorder %s15, 1
      %s179 = scalar_select %p178, %s15, 1
      %s180 = smul.addr %s179, 14
      %s181 = smul.addr %s180, 4
      %s182 = scalar_lea.vmem %s0, %s181
      %p183 = pneg %p36
      %p184 = pneg %p33
      %p185 = scmp.lt.s32.totalorder %s15, 1
      %s186 = scalar_select %p185, %s15, 1
      %s187 = smul.addr %s186, 14
      %s188 = smul.addr %s187, 4
      %s189 = scalar_lea.vmem %s1, %s188
      %p190 = pneg %p62
      %p191 = pneg %p59
      %p192 = pneg %p83
      %p193 = pneg %p80
      %p194 = pneg %p104
      %p195 = pneg %p101
      %p196 = pneg %p130
      %p197 = pneg %p127
      %p198 = scmp.lt.s32.totalorder %s15, 1
      %s199 = scalar_select %p198, %s15, 1
      %s200 = smul.addr %s199, 14
      %s201 = smul.addr %s200, 8
      %s202 = scalar_lea.vmem %s4, %s201
      %p203 = scmp.lt.s32.totalorder %s15, 1
      %s204 = scalar_select %p203, %s15, 1
      %s205 = smul.addr %s204, 14
      %s206 = smul.addr %s205, 4
      %s207 = scalar_lea.vmem %s0, %s206
      %p208 = scmp.lt.s32.totalorder %s15, 1
      %s209 = scalar_select %p208, %s15, 1
      %s210 = smul.addr %s209, 14
      %s211 = smul.addr %s210, 4
      %s212 = scalar_lea.vmem %s1, %s211
      %p213 = scmp.lt.s32.totalorder %s15, 1
      %s214 = scalar_select %p213, %s15, 1
      %s215 = smul.addr %s214, 14
      %s216 = smul.addr %s215, 8
      %s217 = scalar_lea.vmem %s4, %s216
      %v218 = vld [vmem:[%s2] sm:$0x1]
      %v219 = vld [vmem:[%s3] sm:$0x1]
      %v220 = vld [vmem:[%s212] sm:$0xf]
      %v221 = vld [vmem:[%s212 + $0x4] sm:$0xf]
      %v222 = vld [vmem:[%s212 + $0x8] sm:$0xf]
      %v223 = vld [vmem:[%s212 + $0xc] sm:$0xf]
      %v224 = vld [vmem:[%s212 + $0x10] sm:$0xf]
      %v225 = vld [vmem:[%s212 + $0x14] sm:$0xf]
      %v226 = vld [vmem:[%s212 + $0x18] sm:$0xf]
      %v227 = vld [vmem:[%s212 + $0x1c] sm:$0xf]
      %v228 = vld [vmem:[%s212 + $0x20] sm:$0xf]
      %v229 = vld [vmem:[%s212 + $0x24] sm:$0xf]
      %v230 = vld [vmem:[%s212 + $0x28] sm:$0xf]
      %v231 = vld [vmem:[%s212 + $0x2c] sm:$0xf]
      %v232 = vld [vmem:[%s212 + $0x30] sm:$0xf]
      %v233 = vld [vmem:[%s212 + $0x34] sm:$0xf]
      %v234 = vunpack.c.l.bf16 %v220
      %v235 = vunpack.c.l.bf16 %v221
      %v236 = vunpack.c.l.bf16 %v222
      %v237 = vunpack.c.l.bf16 %v223
      %v238 = vunpack.c.l.bf16 %v224
      %v239 = vunpack.c.l.bf16 %v225
      %v240 = vunpack.c.l.bf16 %v226
      %v241 = vunpack.c.l.bf16 %v227
      %v242 = vunpack.c.l.bf16 %v228
      %v243 = vunpack.c.l.bf16 %v229
      %v244 = vunpack.c.l.bf16 %v230
      %v245 = vunpack.c.l.bf16 %v231
      %v246 = vunpack.c.l.bf16 %v232
      %v247 = vunpack.c.l.bf16 %v233
      %v248 = vrot.slane %v234, 3
      %v249 = vrot.slane %v235, 3
      %v250 = vrot.slane %v236, 3
      %v251 = vrot.slane %v237, 3
      %v252 = vrot.slane %v238, 3
      %v253 = vrot.slane %v239, 3
      %v254 = vrot.slane %v240, 3
      %v255 = vrot.slane %v241, 3
      %v256 = vrot.slane %v242, 3
      %v257 = vrot.slane %v243, 3
      %v258 = vrot.slane %v244, 3
      %v259 = vrot.slane %v245, 3
      %v260 = vrot.slane %v246, 3
      %v261 = vrot.slane %v247, 3
      %v262 = vlaneseq
      %v263 = vshrl.u32 %v262, 7
      %vm264 = vcmp.lt.s32.totalorder %v263, 5
      %v265 = vsel %vm264, %v260, %v261
      %v266 = vsel %vm264, %v259, %v260
      %v267 = vsel %vm264, %v258, %v259
      %v268 = vsel %vm264, %v257, %v258
      %v269 = vsel %vm264, %v256, %v257
      %v270 = vsel %vm264, %v255, %v256
      %v271 = vsel %vm264, %v254, %v255
      %v272 = vsel %vm264, %v253, %v254
      %v273 = vsel %vm264, %v252, %v253
      %v274 = vsel %vm264, %v251, %v252
      %v275 = vsel %vm264, %v250, %v251
      %v276 = vsel %vm264, %v249, %v250
      %v277 = vsel %vm264, %v248, %v249
      %v278 = vsel %vm264, %v261, %v248
      %v279 = vld [vmem:[%s207] sm:$0xf]
      %v280 = vld [vmem:[%s207 + $0x4] sm:$0xf]
      %v281 = vld [vmem:[%s207 + $0x8] sm:$0xf]
      %v282 = vld [vmem:[%s207 + $0xc] sm:$0xf]
      %v283 = vld [vmem:[%s207 + $0x10] sm:$0xf]
      %v284 = vld [vmem:[%s207 + $0x14] sm:$0xf]
      %v285 = vld [vmem:[%s207 + $0x18] sm:$0xf]
      %v286 = vld [vmem:[%s207 + $0x1c] sm:$0xf]
      %v287 = vld [vmem:[%s207 + $0x20] sm:$0xf]
      %v288 = vld [vmem:[%s207 + $0x24] sm:$0xf]
      %v289 = vld [vmem:[%s207 + $0x28] sm:$0xf]
      %v290 = vld [vmem:[%s207 + $0x2c] sm:$0xf]
      %v291 = vld [vmem:[%s207 + $0x30] sm:$0xf]
      %v292 = vld [vmem:[%s207 + $0x34] sm:$0xf]
      %v293 = vunpack.c.l.bf16 %v279
      %v294 = vunpack.c.l.bf16 %v280
      %v295 = vunpack.c.l.bf16 %v281
      %v296 = vunpack.c.l.bf16 %v282
      %v297 = vunpack.c.l.bf16 %v283
      %v298 = vunpack.c.l.bf16 %v284
      %v299 = vunpack.c.l.bf16 %v285
      %v300 = vunpack.c.l.bf16 %v286
      %v301 = vunpack.c.l.bf16 %v287
      %v302 = vunpack.c.l.bf16 %v288
      %v303 = vunpack.c.l.bf16 %v289
      %v304 = vunpack.c.l.bf16 %v290
      %v305 = vunpack.c.l.bf16 %v291
      %v306 = vunpack.c.l.bf16 %v292
      %v308 = vlaneseq
      %v309 = vshrl.u32 %v308, 7
      %v310 = vsub.s32 0, %v309
      %v311 = vrot.slane %v218, %v310
      %v313 = vmul.f32 %v293, %v311
      %v314 = vmul.f32 %v294, %v311
      %v315 = vmul.f32 %v295, %v311
      %v316 = vmul.f32 %v296, %v311
      %v317 = vmul.f32 %v297, %v311
      %v318 = vmul.f32 %v298, %v311
      %v319 = vmul.f32 %v299, %v311
      %v320 = vmul.f32 %v300, %v311
      %v321 = vmul.f32 %v301, %v311
      %v322 = vmul.f32 %v302, %v311
      %v323 = vmul.f32 %v303, %v311
      %v324 = vmul.f32 %v304, %v311
      %v325 = vmul.f32 %v305, %v311
      %v326 = vmul.f32 %v306, %v311
      %v328 = vlaneseq
      %v329 = vshrl.u32 %v328, 7
      %v330 = vsub.s32 0, %v329
      %v331 = vrot.slane %v219, %v330
      %v333 = vadd.f32 %v313, %v331
      %v334 = vadd.f32 %v314, %v331
      %v335 = vadd.f32 %v315, %v331
      %v336 = vadd.f32 %v316, %v331
      %v337 = vadd.f32 %v317, %v331
      %v338 = vadd.f32 %v318, %v331
      %v339 = vadd.f32 %v319, %v331
      %v340 = vadd.f32 %v320, %v331
      %v341 = vadd.f32 %v321, %v331
      %v342 = vadd.f32 %v322, %v331
      %v343 = vadd.f32 %v323, %v331
      %v344 = vadd.f32 %v324, %v331
      %v345 = vadd.f32 %v325, %v331
      %v346 = vadd.f32 %v326, %v331
      %v347 = vadd.f32 %v333, %v276
      %v348 = vadd.f32 %v334, %v275
      %v349 = vadd.f32 %v335, %v274
      %v350 = vadd.f32 %v336, %v273
      %v351 = vadd.f32 %v337, %v272
      %v352 = vadd.f32 %v338, %v271
      %v353 = vadd.f32 %v339, %v270
      %v354 = vadd.f32 %v340, %v269
      %v355 = vadd.f32 %v341, %v268
      %v356 = vadd.f32 %v342, %v267
      %v357 = vadd.f32 %v343, %v266
      %v358 = vadd.f32 %v344, %v265
      %v359 = vadd.f32 %v345, %v278
      %v360 = vadd.f32 %v346, %v277
      %v361 = vmax.f32 %v347, 0.0
      %v362 = vmax.f32 %v348, 0.0
      %v363 = vmax.f32 %v349, 0.0
      %v364 = vmax.f32 %v350, 0.0
      %v365 = vmax.f32 %v351, 0.0
      %v366 = vmax.f32 %v352, 0.0
      %v367 = vmax.f32 %v353, 0.0
      %v368 = vmax.f32 %v354, 0.0
      %v369 = vmax.f32 %v355, 0.0
      %v370 = vmax.f32 %v356, 0.0
      %v371 = vmax.f32 %v357, 0.0
      %v372 = vmax.f32 %v358, 0.0
      %v373 = vmax.f32 %v359, 0.0
      %v374 = vmax.f32 %v360, 0.0
      %375 = vst [vmem:[%s217] sm:$0xff] %v361
      %376 = vst [vmem:[%s217 + $0x8] sm:$0xff] %v362
      %377 = vst [vmem:[%s217 + $0x10] sm:$0xff] %v363
      %378 = vst [vmem:[%s217 + $0x18] sm:$0xff] %v364
      %379 = vst [vmem:[%s217 + $0x20] sm:$0xff] %v365
      %380 = vst [vmem:[%s217 + $0x28] sm:$0xff] %v366
      %381 = vst [vmem:[%s217 + $0x30] sm:$0xff] %v367
      %382 = vst [vmem:[%s217 + $0x38] sm:$0xff] %v368
      %383 = vst [vmem:[%s217 + $0x40] sm:$0xff] %v369
      %384 = vst [vmem:[%s217 + $0x48] sm:$0xff] %v370
      %385 = vst [vmem:[%s217 + $0x50] sm:$0xff] %v371
      %386 = vst [vmem:[%s217 + $0x58] sm:$0xff] %v372
      %387 = vst [vmem:[%s217 + $0x60] sm:$0xff] %v373
      %388 = vst [vmem:[%s217 + $0x68] sm:$0xff] %v374
      %p389 = scmp.lt.s32.totalorder %s15, 1
      %s390 = scalar_select %p389, %s15, 1
      %s391 = smul.addr %s390, 14
      %s392 = smul.addr %s391, 8
      %s393 = scalar_lea.vmem %s4, %s392
      // Predicated region
      $region37: #{residual_block.7} parent=35 // pred_check
        %p394 = pneg %p127
      $region38: #{residual_block.7} parent=35 // pred_check_branch
        %396 = sbr.rel (%p394) target = $region40
      $region39: #{residual_block.7} parent=35 // pred_region
        _
      $region40: #{residual_block.7} parent=35 // pred_fallthru
        _
    $region36: #{residual_block.7} parent=5 // pred_fallthru
      _
    %p397 = scmp.le.s32.totalorder 2, %s10
    // Predicated region
    $region41: #{residual_block.7} parent=5 // pred_check
      %p398 = pneg %p397
    $region42: #{residual_block.7} parent=5 // pred_check_branch
      %400 = sbr.rel (%p398) target = $region44
    $region43: #{residual_block.7} parent=5 // pred_region
      %s401 = ssub.s32 %s10, 2
      // Predicated region
      $region45: #{residual_block.7} parent=43 // pred_check
        %p402 = pneg %p133
      $region46: #{residual_block.7} parent=43 // pred_check_branch
        %404 = sbr.rel (%p402) target = $region48
      $region47: #{residual_block.7} parent=43 // pred_region
        %p405 = scmp.lt.s32.totalorder %s16, 1
        %s406 = scalar_select %p405, %s16, 1
        %s407 = smul.addr %s406, 14
        %s408 = smul.addr %s407, 8
        %s409 = scalar_lea.vmem %s4, %s408
      $region48: #{residual_block.7} parent=43 // pred_fallthru
        _
    $region44: #{residual_block.7} parent=5 // pred_fallthru
      _
  $region6: #{residual_block.7} parent=0 // loop_footer
    %s14 = sadd.s32 1, %s10
  $region7: #{residual_block.7} parent=0 // loop_footer_branch
    %9 = sbr.rel target = $region3
  $region8: #{residual_block.7} parent=0 // loop_exit
    _

// kernel: residual_block.4
$region0: #{residual_block.4}
  #allocation0 [shape = 'u32[]', space=smem, size = 0x4, offset = 0x4, fixed_abs, tag = 'smem constant byte address 0x4 - core index']
  #allocation1 [shape = 'u32[144,128]{1,0:T(1,128)}', space=vmem, size = 0x12000, scoped, tag = 'internal scratch']
  #allocation2 [shape = 'f32[112,128]{1,0:T(8,128)}', space=vmem, size = 0xe000, scoped, tag = 'scratch operand']
  %s0 = inlined_call_operand.vmem [shape: bf16[2,112,128], index: 0, kind: input, shape index: {}]
  %s1 = inlined_call_operand.vmem [shape: bf16[9,128,128], index: 1, kind: input, shape index: {}]
  %s2 = inlined_call_operand.vmem [shape: bf16[2,112,128], index: 2, kind: output, shape index: {0}]
  %s3 = inlined_call_operand.vmem [shape: f32[2,8,128], index: 3, kind: output, shape index: {1}]
  %4 = xla_tuple %s2, %s3
  %s5 = sld [smem:[#allocation0]]
  $region49: #{residual_block.4} parent=0
    _
  %s7 = ssub.s32 1, %s5
  %s8 = scalar_select 0, %s7, %s5
  loop: start=0, step=1, limit=4
  $region2: #{residual_block.4} parent=0 // loop_pre_header
    _
  $region3: #{residual_block.4} parent=0 // loop_header
    %s10 = sphi 0, %s14
    %p11 = scmp.ge.s32.totalorder %s10, 4
    %s20 = sphi 0, %s22
    %s23 = sphi 0, %s20
    %s24 = sphi 0, %s23
    %s40 = sphi 0, %s24
    %s44 = sphi 0, %s44
    %s46 = sphi 0, %s44
    %s47 = sphi 0, %s46
    %s61 = sphi 0, %s47
    %s67 = sphi 0, %s69
    %s70 = sphi 0, %s67
    %s71 = sphi 0, %s70
    %s87 = sphi 0, %s71
    %s93 = sphi 0, %s95
    %s96 = sphi 0, %s93
    %s97 = sphi 0, %s96
    %s113 = sphi 0, %s97
  $region4: #{residual_block.4} parent=0 // loop_header_branch
    %13 = sbr.rel (%p11) target = $region8
  $region5: #{residual_block.4} parent=0 // loop_body
    %s15 = ssub.s32 %s10, 1
    %s16 = ssub.s32 %s10, 2
    %s17 = sadd.s32 %s10, 1
    %s18 = ssub.s32 %s10, %s17
    %p19 = scmp.eq.s32.totalorder %s18, 0
    %s21 = sadd.s32 %s20, 1
    %s22 = scalar_select %p19, %s20, %s21
    %p25 = pneg %p19
    %p26 = scmp.eq.s32.totalorder %s10, 1
    %p27 = por %p25, %p26
    %p28 = scmp.ne.s32.totalorder %s20, %s23
    %p29 = scmp.eq.s32.totalorder %s10, 0
    %p30 = por %p28, %p29
    %p31 = scmp.ne.s32.totalorder %s20, %s23
    %p32 = scmp.eq.s32.totalorder %s15, 1
    %p33 = por %p31, %p32
    %p34 = scmp.ne.s32.totalorder %s23, %s24
    %p35 = scmp.eq.s32.totalorder %s15, 0
    %p36 = por %p34, %p35
    %p37 = scmp.ne.s32.totalorder %s23, %s24
    %p38 = scmp.eq.s32.totalorder %s16, 1
    %p39 = por %p37, %p38
    %p41 = scmp.ne.s32.totalorder %s24, %s40
    %p42 = scmp.eq.s32.totalorder %s16, 0
    %p43 = por %p41, %p42
    %s45 = sadd.s32 %s44, 1
    %p48 = scmp.eq.s32.totalorder %s10, 1
    %p49 = scmp.ne.s32.totalorder %s44, %s46
    %p50 = scmp.eq.s32.totalorder %s10, 0
    %p51 = por %p49, %p50
    %p52 = scmp.ne.s32.totalorder %s44, %s46
    %p53 = scmp.eq.s32.totalorder %s15, 1
    %p54 = por %p52, %p53
    %p55 = scmp.ne.s32.totalorder %s46, %s47
    %p56 = scmp.eq.s32.totalorder %s15, 0
    %p57 = por %p55, %p56
    %p58 = scmp.ne.s32.totalorder %s46, %s47
    %p59 = scmp.eq.s32.totalorder %s16, 1
    %p60 = por %p58, %p59
    %p62 = scmp.ne.s32.totalorder %s47, %s61
    %p63 = scmp.eq.s32.totalorder %s16, 0
    %p64 = por %p62, %p63
    %s65 = ssub.s32 %s10, %s17
    %p66 = scmp.eq.s32.totalorder %s65, 0
    %s68 = sadd.s32 %s67, 1
    %s69 = scalar_select %p66, %s67, %s68
    %p72 = pneg %p66
    %p73 = scmp.eq.s32.totalorder %s10, 1
    %p74 = por %p72, %p73
    %p75 = scmp.ne.s32.totalorder %s67, %s70
    %p76 = scmp.eq.s32.totalorder %s10, 0
    %p77 = por %p75, %p76
    %p78 = scmp.ne.s32.totalorder %s67, %s70
    %p79 = scmp.eq.s32.totalorder %s15, 1
    %p80 = por %p78, %p79
    %p81 = scmp.ne.s32.totalorder %s70, %s71
    %p82 = scmp.eq.s32.totalorder %s15, 0
    %p83 = por %p81, %p82
    %p84 = scmp.ne.s32.totalorder %s70, %s71
    %p85 = scmp.eq.s32.totalorder %s16, 1
    %p86 = por %p84, %p85
    %p88 = scmp.ne.s32.totalorder %s71, %s87
    %p89 = scmp.eq.s32.totalorder %s16, 0
    %p90 = por %p88, %p89
    %s91 = ssub.s32 %s10, %s17
    %p92 = scmp.eq.s32.totalorder %s91, 0
    %s94 = sadd.s32 %s93, 1
    %s95 = scalar_select %p92, %s93, %s94
    %p98 = pneg %p92
    %p99 = scmp.eq.s32.totalorder %s10, 1
    %p100 = por %p98, %p99
    %p101 = scmp.ne.s32.totalorder %s93, %s96
    %p102 = scmp.eq.s32.totalorder %s10, 0
    %p103 = por %p101, %p102
    %p104 = scmp.ne.s32.totalorder %s93, %s96
    %p105 = scmp.eq.s32.totalorder %s15, 1
    %p106 = por %p104, %p105
    %p107 = scmp.ne.s32.totalorder %s96, %s97
    %p108 = scmp.eq.s32.totalorder %s15, 0
    %p109 = por %p107, %p108
    %p110 = scmp.ne.s32.totalorder %s96, %s97
    %p111 = scmp.eq.s32.totalorder %s16, 1
    %p112 = por %p110, %p111
    %p114 = scmp.ne.s32.totalorder %s97, %s113
    %p115 = scmp.eq.s32.totalorder %s16, 0
    %p116 = por %p114, %p115
    %p117 = scmp.le.s32.totalorder 1, %s10
    %p118 = scmp.lt.s32.totalorder %s10, 3
    %p119 = pnand %p117, %p118
    %p120 = pneg %p119
    // Predicated region
    $region9: #{residual_block.4} parent=5 // pred_check
      _
    $region10: #{residual_block.4} parent=5 // pred_check_branch
      %122 = sbr.rel (%p119) target = $region12
    $region11: #{residual_block.4} parent=5 // pred_region
      %s123 = ssub.s32 %s10, 1
      // Predicated region
      $region13: #{residual_block.4} parent=11 // pred_check
        %p124 = pneg %p57
      $region14: #{residual_block.4} parent=11 // pred_check_branch
        %126 = sbr.rel (%p124) target = $region16
      $region15: #{residual_block.4} parent=11 // pred_region
        _
      $region16: #{residual_block.4} parent=11 // pred_fallthru
        _
    $region12: #{residual_block.4} parent=5 // pred_fallthru
      _
    %p127 = scmp.lt.s32.totalorder %s10, 2
    // Predicated region
    $region17: #{residual_block.4} parent=5 // pred_check
      %p128 = pneg %p127
    $region18: #{residual_block.4} parent=5 // pred_check_branch
      %130 = sbr.rel (%p128) target = $region20
    $region19: #{residual_block.4} parent=5 // pred_region
      // Predicated region
      $region21: #{residual_block.4} parent=19 // pred_check
        %p131 = pneg %p30
      $region22: #{residual_block.4} parent=19 // pred_check_branch
        %133 = sbr.rel (%p131) target = $region24
      $region23: #{residual_block.4} parent=19 // pred_region
        %p134 = scmp.lt.s32.totalorder %s10, 1
        %s135 = scalar_select %p134, %s10, 1
        %s136 = smul.addr %s135, 14
        %s137 = smul.addr %s136, 4
        %s138 = scalar_lea.vmem %s0, %s137
      $region24: #{residual_block.4} parent=19 // pred_fallthru
        _
    $region20: #{residual_block.4} parent=5 // pred_fallthru
      _
    %p139 = scmp.le.s32.totalorder 1, %s10
    %p140 = scmp.lt.s32.totalorder %s10, 3
    %p141 = pnand %p139, %p140
    %p142 = pneg %p141
    // Predicated region
    $region25: #{residual_block.4} parent=5 // pred_check
      _
    $region26: #{residual_block.4} parent=5 // pred_check_branch
      %144 = sbr.rel (%p141) target = $region28
    $region27: #{residual_block.4} parent=5 // pred_region
      %s145 = ssub.s32 %s10, 1
      %p146 = scmp.lt.s32.totalorder %s15, 1
      %s147 = scalar_select %p146, %s15, 1
      %s148 = smul.addr %s147, 14
      %s149 = smul.addr %s148, 4
      %s150 = scalar_lea.vmem %s0, %s149
      %p151 = pneg %p36
      %p152 = pneg %p33
      %p153 = pneg %p57
      %p154 = pneg %p54
      %p155 = pneg %p83
      %p156 = pneg %p80
      %p157 = scmp.lt.s32.totalorder %s15, 1
      %s158 = scalar_select %p157, %s15, 1
      %s159 = smul.addr %s158, 14
      %s160 = smul.addr %s159, 4
      %s161 = scalar_lea.vmem %s2, %s160
      %p162 = pneg %p109
      %p163 = pneg %p106
      %p164 = scmp.lt.s32.totalorder %s15, 1
      %s165 = scalar_select %p164, %s15, 1
      %s166 = smul.addr %s165, 8
      %s167 = scalar_lea.vmem %s3, %s166
      %p168 = scmp.lt.s32.totalorder %s15, 1
      %s169 = scalar_select %p168, %s15, 1
      %s170 = smul.addr %s169, 14
      %s171 = smul.addr %s170, 4
      %s172 = scalar_lea.vmem %s0, %s171
      %p173 = scmp.lt.s32.totalorder %s15, 1
      %s174 = scalar_select %p173, %s15, 1
      %s175 = smul.addr %s174, 14
      %s176 = smul.addr %s175, 4
      %s177 = scalar_lea.vmem %s2, %s176
      %p178 = scmp.lt.s32.totalorder %s15, 1
      %s179 = scalar_select %p178, %s15, 1
      %s180 = smul.addr %s179, 8
      %s181 = scalar_lea.vmem %s3, %s180
      %v183 = vlaneseq
      %v184 = vshrl.u32 %v183, 7
      %v185 = vadd.s32 %v184, 8
      %v186 = vadd.s32 %v184, 16
      %v187 = vadd.s32 %v184, 24
      %v188 = vadd.s32 %v184, 32
      %v189 = vadd.s32 %v184, 40
      %v190 = vadd.s32 %v184, 48
      %v191 = vadd.s32 %v184, 56
      %v192 = vadd.s32 %v184, 64
      %v193 = vadd.s32 %v184, 72
      %v194 = vadd.s32 %v184, 80
      %v195 = vadd.s32 %v184, 88
      %v196 = vadd.s32 %v184, 96
      %v197 = vadd.s32 %v184, 104
      %vm198 = vcmp.lt.s32.totalorder %v184, 80
      %vm199 = vcmp.lt.s32.totalorder %v185, 80
      %vm200 = vcmp.lt.s32.totalorder %v186, 80
      %vm201 = vcmp.lt.s32.totalorder %v187, 80
      %vm202 = vcmp.lt.s32.totalorder %v188, 80
      %vm203 = vcmp.lt.s32.totalorder %v189, 80
      %vm204 = vcmp.lt.s32.totalorder %v190, 80
      %vm205 = vcmp.lt.s32.totalorder %v191, 80
      %vm206 = vcmp.lt.s32.totalorder %v192, 80
      %vm207 = vcmp.lt.s32.totalorder %v193, 80
      %vm208 = vcmp.lt.s32.totalorder %v194, 80
      %vm209 = vcmp.lt.s32.totalorder %v195, 80
      %vm210 = vcmp.lt.s32.totalorder %v196, 80
      %vm211 = vcmp.lt.s32.totalorder %v197, 80
      %vm212 = vcmp.lt.s32.totalorder %v184, 0
      %v213 = vsub.s32 0, %v184
      %v214 = vsel %vm212, %v213, %v184
      %v215 = vmul.u32.u64.compose %v214, 3435973837
      %v216 = vextract.low.u32 %v215
      %v217 = vextract.high.u32 %v215
      %v218 = vshrl.u32 %v217, 3
      %v219 = vmul.u32 %v218, 10
      %v220 = vsub.s32 %v214, %v219
      %v221 = vsub.s32 0, %v220
      %v222 = vsel %vm212, %v221, %v220
      %vm223 = vcmp.lt.s32.totalorder %v185, 0
      %v224 = vsub.s32 0, %v185
      %v225 = vsel %vm223, %v224, %v185
      %v226 = vmul.u32.u64.compose %v225, 3435973837
      %v227 = vextract.low.u32 %v226
      %v228 = vextract.high.u32 %v226
      %v229 = vshrl.u32 %v228, 3
      %v230 = vmul.u32 %v229, 10
      %v231 = vsub.s32 %v225, %v230
      %v232 = vsub.s32 0, %v231
      %v233 = vsel %vm223, %v232, %v231
      %vm234 = vcmp.lt.s32.totalorder %v186, 0
      %v235 = vsub.s32 0, %v186
      %v236 = vsel %vm234, %v235, %v186
      %v237 = vmul.u32.u64.compose %v236, 3435973837
      %v238 = vextract.low.u32 %v237
      %v239 = vextract.high.u32 %v237
      %v240 = vshrl.u32 %v239, 3
      %v241 = vmul.u32 %v240, 10
      %v242 = vsub.s32 %v236, %v241
      %v243 = vsub.s32 0, %v242
      %v244 = vsel %vm234, %v243, %v242
      %vm245 = vcmp.lt.s32.totalorder %v187, 0
      %v246 = vsub.s32 0, %v187
      %v247 = vsel %vm245, %v246, %v187
      %v248 = vmul.u32.u64.compose %v247, 3435973837
      %v249 = vextract.low.u32 %v248
      %v250 = vextract.high.u32 %v248
      %v251 = vshrl.u32 %v250, 3
      %v252 = vmul.u32 %v251, 10
      %v253 = vsub.s32 %v247, %v252
      %v254 = vsub.s32 0, %v253
      %v255 = vsel %vm245, %v254, %v253
      %vm256 = vcmp.lt.s32.totalorder %v188, 0
      %v257 = vsub.s32 0, %v188
      %v258 = vsel %vm256, %v257, %v188
      %v259 = vmul.u32.u64.compose %v258, 3435973837
      %v260 = vextract.low.u32 %v259
      %v261 = vextract.high.u32 %v259
      %v262 = vshrl.u32 %v261, 3
      %v263 = vmul.u32 %v262, 10
      %v264 = vsub.s32 %v258, %v263
      %v265 = vsub.s32 0, %v264
      %v266 = vsel %vm256, %v265, %v264
      %vm267 = vcmp.lt.s32.totalorder %v189, 0
      %v268 = vsub.s32 0, %v189
      %v269 = vsel %vm267, %v268, %v189
      %v270 = vmul.u32.u64.compose %v269, 3435973837
      %v271 = vextract.low.u32 %v270
      %v272 = vextract.high.u32 %v270
      %v273 = vshrl.u32 %v272, 3
      %v274 = vmul.u32 %v273, 10
      %v275 = vsub.s32 %v269, %v274
      %v276 = vsub.s32 0, %v275
      %v277 = vsel %vm267, %v276, %v275
      %vm278 = vcmp.lt.s32.totalorder %v190, 0
      %v279 = vsub.s32 0, %v190
      %v280 = vsel %vm278, %v279, %v190
      %v281 = vmul.u32.u64.compose %v280, 3435973837
      %v282 = vextract.low.u32 %v281
      %v283 = vextract.high.u32 %v281
      %v284 = vshrl.u32 %v283, 3
      %v285 = vmul.u32 %v284, 10
      %v286 = vsub.s32 %v280, %v285
      %v287 = vsub.s32 0, %v286
      %v288 = vsel %vm278, %v287, %v286
      %vm289 = vcmp.lt.s32.totalorder %v191, 0
      %v290 = vsub.s32 0, %v191
      %v291 = vsel %vm289, %v290, %v191
      %v292 = vmul.u32.u64.compose %v291, 3435973837
      %v293 = vextract.low.u32 %v292
      %v294 = vextract.high.u32 %v292
      %v295 = vshrl.u32 %v294, 3
      %v296 = vmul.u32 %v295, 10
      %v297 = vsub.s32 %v291, %v296
      %v298 = vsub.s32 0, %v297
      %v299 = vsel %vm289, %v298, %v297
      %vm300 = vcmp.lt.s32.totalorder %v192, 0
      %v301 = vsub.s32 0, %v192
      %v302 = vsel %vm300, %v301, %v192
      %v303 = vmul.u32.u64.compose %v302, 3435973837
      %v304 = vextract.low.u32 %v303
      %v305 = vextract.high.u32 %v303
      %v306 = vshrl.u32 %v305, 3
      %v307 = vmul.u32 %v306, 10
      %v308 = vsub.s32 %v302, %v307
      %v309 = vsub.s32 0, %v308
      %v310 = vsel %vm300, %v309, %v308
      %vm311 = vcmp.lt.s32.totalorder %v193, 0
      %v312 = vsub.s32 0, %v193
      %v313 = vsel %vm311, %v312, %v193
      %v314 = vmul.u32.u64.compose %v313, 3435973837
      %v315 = vextract.low.u32 %v314
      %v316 = vextract.high.u32 %v314
      %v317 = vshrl.u32 %v316, 3
      %v318 = vmul.u32 %v317, 10
      %v319 = vsub.s32 %v313, %v318
      %v320 = vsub.s32 0, %v319
      %v321 = vsel %vm311, %v320, %v319
      %vm322 = vcmp.lt.s32.totalorder %v194, 0
      %v323 = vsub.s32 0, %v194
      %v324 = vsel %vm322, %v323, %v194
      %v325 = vmul.u32.u64.compose %v324, 3435973837
      %v326 = vextract.low.u32 %v325
      %v327 = vextract.high.u32 %v325
      %v328 = vshrl.u32 %v327, 3
      %v329 = vmul.u32 %v328, 10
      %v330 = vsub.s32 %v324, %v329
      %v331 = vsub.s32 0, %v330
      %v332 = vsel %vm322, %v331, %v330
      %vm333 = vcmp.lt.s32.totalorder %v195, 0
      %v334 = vsub.s32 0, %v195
      %v335 = vsel %vm333, %v334, %v195
      %v336 = vmul.u32.u64.compose %v335, 3435973837
      %v337 = vextract.low.u32 %v336
      %v338 = vextract.high.u32 %v336
      %v339 = vshrl.u32 %v338, 3
      %v340 = vmul.u32 %v339, 10
      %v341 = vsub.s32 %v335, %v340
      %v342 = vsub.s32 0, %v341
      %v343 = vsel %vm333, %v342, %v341
      %vm344 = vcmp.lt.s32.totalorder %v196, 0
      %v345 = vsub.s32 0, %v196
      %v346 = vsel %vm344, %v345, %v196
      %v347 = vmul.u32.u64.compose %v346, 3435973837
      %v348 = vextract.low.u32 %v347
      %v349 = vextract.high.u32 %v347
      %v350 = vshrl.u32 %v349, 3
      %v351 = vmul.u32 %v350, 10
      %v352 = vsub.s32 %v346, %v351
      %v353 = vsub.s32 0, %v352
      %v354 = vsel %vm344, %v353, %v352
      %vm355 = vcmp.lt.s32.totalorder %v197, 0
      %v356 = vsub.s32 0, %v197
      %v357 = vsel %vm355, %v356, %v197
      %v358 = vmul.u32.u64.compose %v357, 3435973837
      %v359 = vextract.low.u32 %v358
      %v360 = vextract.high.u32 %v358
      %v361 = vshrl.u32 %v360, 3
      %v362 = vmul.u32 %v361, 10
      %v363 = vsub.s32 %v357, %v362
      %v364 = vsub.s32 0, %v363
      %v365 = vsel %vm355, %v364, %v363
      %vm366 = vcmp.ne.s32.totalorder %v222, 0
      %vm367 = vcmp.ne.s32.totalorder %v233, 0
      %vm368 = vcmp.ne.s32.totalorder %v244, 0
      %vm369 = vcmp.ne.s32.totalorder %v255, 0
      %vm370 = vcmp.ne.s32.totalorder %v266, 0
      %vm371 = vcmp.ne.s32.totalorder %v277, 0
      %vm372 = vcmp.ne.s32.totalorder %v288, 0
      %vm373 = vcmp.ne.s32.totalorder %v299, 0
      %vm374 = vcmp.ne.s32.totalorder %v310, 0
      %vm375 = vcmp.ne.s32.totalorder %v321, 0
      %vm376 = vcmp.ne.s32.totalorder %v332, 0
      %vm377 = vcmp.ne.s32.totalorder %v343, 0
      %vm378 = vcmp.ne.s32.totalorder %v354, 0
      %vm379 = vcmp.ne.s32.totalorder %v365, 0
      %vm380 = vcmp.lt.s32.totalorder %v222, 0
      %vm381 = vcmp.lt.s32.totalorder %v233, 0
      %vm382 = vcmp.lt.s32.totalorder %v244, 0
      %vm383 = vcmp.lt.s32.totalorder %v255, 0
      %vm384 = vcmp.lt.s32.totalorder %v266, 0
      %vm385 = vcmp.lt.s32.totalorder %v277, 0
      %vm386 = vcmp.lt.s32.totalorder %v288, 0
      %vm387 = vcmp.lt.s32.totalorder %v299, 0
      %vm388 = vcmp.lt.s32.totalorder %v310, 0
      %vm389 = vcmp.lt.s32.totalorder %v321, 0
      %vm390 = vcmp.lt.s32.totalorder %v332, 0
      %vm391 = vcmp.lt.s32.totalorder %v343, 0
      %vm392 = vcmp.lt.s32.totalorder %v354, 0
      %vm393 = vcmp.lt.s32.totalorder %v365, 0
      %vm394 = vmand %vm380, %vm366
      %vm395 = vmand %vm381, %vm367
      %vm396 = vmand %vm382, %vm368
      %vm397 = vmand %vm383, %vm369
      %vm398 = vmand %vm384, %vm370
      %vm399 = vmand %vm385, %vm371
      %vm400 = vmand %vm386, %vm372
      %vm401 = vmand %vm387, %vm373
      %vm402 = vmand %vm388, %vm374
      %vm403 = vmand %vm389, %vm375
      %vm404 = vmand %vm390, %vm376
      %vm405 = vmand %vm391, %vm377
      %vm406 = vmand %vm392, %vm378
      %vm407 = vmand %vm393, %vm379
      %v408 = vadd.s32 %v222, 10
      %v409 = vadd.s32 %v233, 10
      %v410 = vadd.s32 %v244, 10
      %v411 = vadd.s32 %v255, 10
      %v412 = vadd.s32 %v266, 10
      %v413 = vadd.s32 %v277, 10
      %v414 = vadd.s32 %v288, 10
      %v415 = vadd.s32 %v299, 10
      %v416 = vadd.s32 %v310, 10
      %v417 = vadd.s32 %v321, 10
      %v418 = vadd.s32 %v332, 10
      %v419 = vadd.s32 %v343, 10
      %v420 = vadd.s32 %v354, 10
      %v421 = vadd.s32 %v365, 10
      %v422 = vsel %vm394, %v408, %v222
      %v423 = vsel %vm395, %v409, %v233
      %v424 = vsel %vm396, %v410, %v244
      %v425 = vsel %vm397, %v411, %v255
      %v426 = vsel %vm398, %v412, %v266
      %v427 = vsel %vm399, %v413, %v277
      %v428 = vsel %vm400, %v414, %v288
      %v429 = vsel %vm401, %v415, %v299
      %v430 = vsel %vm402, %v416, %v310
      %v431 = vsel %vm403, %v417, %v321
      %v432 = vsel %vm404, %v418, %v332
      %v433 = vsel %vm405, %v419, %v343
      %v434 = vsel %vm406, %v420, %v354
      %v435 = vsel %vm407, %v421, %v365
      %vm436 = vcmp.lt.s32.totalorder %v422, 8
      %vm437 = vcmp.lt.s32.totalorder %v423, 8
      %vm438 = vcmp.lt.s32.totalorder %v424, 8
      %vm439 = vcmp.lt.s32.totalorder %v425, 8
      %vm440 = vcmp.lt.s32.totalorder %v426, 8
      %vm441 = vcmp.lt.s32.totalorder %v427, 8
      %vm442 = vcmp.lt.s32.totalorder %v428, 8
      %vm443 = vcmp.lt.s32.totalorder %v429, 8
      %vm444 = vcmp.lt.s32.totalorder %v430, 8
      %vm445 = vcmp.lt.s32.totalorder %v431, 8
      %vm446 = vcmp.lt.s32.totalorder %v432, 8
      %vm447 = vcmp.lt.s32.totalorder %v433, 8
      %vm448 = vcmp.lt.s32.totalorder %v434, 8
      %vm449 = vcmp.lt.s32.totalorder %v435, 8
      %vm450 = vmand %vm198, %vm436
      %vm451 = vmand %vm199, %vm437
      %vm452 = vmand %vm200, %vm438
      %vm453 = vmand %vm201, %vm439
      %vm454 = vmand %vm202, %vm440
      %vm455 = vmand %vm203, %vm441
      %vm456 = vmand %vm204, %vm442
      %vm457 = vmand %vm205, %vm443
      %vm458 = vmand %vm206, %vm444
      %vm459 = vmand %vm207, %vm445
      %vm460 = vmand %vm208, %vm446
      %vm461 = vmand %vm209, %vm447
      %vm462 = vmand %vm210, %vm448
      %vm463 = vmand %vm211, %vm449
      %v464 = vld [vmem:[%s172] sm:$0xf]
      %v465 = vld [vmem:[%s172 + $0x4] sm:$0xf]
      %v466 = vld [vmem:[%s172 + $0x8] sm:$0xf]
      %v467 = vld [vmem:[%s172 + $0xc] sm:$0xf]
      %v468 = vld [vmem:[%s172 + $0x10] sm:$0xf]
      %v469 = vld [vmem:[%s172 + $0x14] sm:$0xf]
      %v470 = vld [vmem:[%s172 + $0x18] sm:$0xf]
      %v471 = vld [vmem:[%s172 + $0x1c] sm:$0xf]
      %v472 = vld [vmem:[%s172 + $0x20] sm:$0xf]
      %v473 = vld [vmem:[%s172 + $0x24] sm:$0xf]
      %v474 = vld [vmem:[%s172 + $0x28] sm:$0xf]
      %v475 = vld [vmem:[%s172 + $0x2c] sm:$0xf]
      %v476 = vld [vmem:[%s172 + $0x30] sm:$0xf]
      %v477 = vld [vmem:[%s172 + $0x34] sm:$0xf]
      %v478 = vld [vmem:[%s1] sm:$0xf]
      %v479 = vld [vmem:[%s1 + $0x4] sm:$0xf]
      %v480 = vld [vmem:[%s1 + $0x8] sm:$0xf]
      %v481 = vld [vmem:[%s1 + $0xc] sm:$0xf]
      %v482 = vld [vmem:[%s1 + $0x10] sm:$0xf]
      %v483 = vld [vmem:[%s1 + $0x14] sm:$0xf]
      %v484 = vld [vmem:[%s1 + $0x18] sm:$0xf]
      %v485 = vld [vmem:[%s1 + $0x1c] sm:$0xf]
      %v486 = vld [vmem:[%s1 + $0x20] sm:$0xf]
      %v487 = vld [vmem:[%s1 + $0x24] sm:$0xf]
      %v488 = vld [vmem:[%s1 + $0x28] sm:$0xf]
      %v489 = vld [vmem:[%s1 + $0x2c] sm:$0xf]
      %v490 = vld [vmem:[%s1 + $0x30] sm:$0xf]
      %v491 = vld [vmem:[%s1 + $0x34] sm:$0xf]
      %v492 = vld [vmem:[%s1 + $0x38] sm:$0xf]
      %v493 = vld [vmem:[%s1 + $0x3c] sm:$0xf]
      %s494 = scalar_lea.vmem %s1, 64
      %v495 = vld [vmem:[%s494] sm:$0xf]
      %v496 = vld [vmem:[%s494 + $0x4] sm:$0xf]
      %v497 = vld [vmem:[%s494 + $0x8] sm:$0xf]
      %v498 = vld [vmem:[%s494 + $0xc] sm:$0xf]
      %v499 = vld [vmem:[%s494 + $0x10] sm:$0xf]
      %v500 = vld [vmem:[%s494 + $0x14] sm:$0xf]
      %v501 = vld [vmem:[%s494 + $0x18] sm:$0xf]
      %v502 = vld [vmem:[%s494 + $0x1c] sm:$0xf]
      %v503 = vld [vmem:[%s494 + $0x20] sm:$0xf]
      %v504 = vld [vmem:[%s494 + $0x24] sm:$0xf]
      %v505 = vld [vmem:[%s494 + $0x28] sm:$0xf]
      %v506 = vld [vmem:[%s494 + $0x2c] sm:$0xf]
      %v507 = vld [vmem:[%s494 + $0x30] sm:$0xf]
      %v508 = vld [vmem:[%s494 + $0x34] sm:$0xf]
      %v509 = vld [vmem:[%s494 + $0x38] sm:$0xf]
      %v510 = vld [vmem:[%s494 + $0x3c] sm:$0xf]
      %v525 = vunpack.c.l.b16 %v464
      %v526 = vunpack.c.l.b16 %v465
      %v527 = vunpack.c.l.b16 %v466
      %v528 = vunpack.c.l.b16 %v467
      %v529 = vunpack.c.l.b16 %v468
      %v530 = vunpack.c.l.b16 %v469
      %v531 = vunpack.c.l.b16 %v470
      %v532 = vunpack.c.l.b16 %v471
      %v533 = vunpack.c.l.b16 %v472
      %v534 = vunpack.c.l.b16 %v473
      %v535 = vunpack.c.l.b16 %v474
      %v536 = vunpack.c.l.b16 %v475
      %v537 = vunpack.c.l.b16 %v476
      %v538 = vunpack.c.l.b16 %v477
      %v539 = vpack.c.b16 %v526, %v525
      %v540 = vpack.c.b16 %v528, %v527
      %v541 = vpack.c.b16 %v530, %v529
      %v542 = vpack.c.b16 %v532, %v531
      %v543 = vpack.c.b16 %v534, %v533
      %v544 = vpack.c.b16 %v536, %v535
      %v545 = vpack.c.b16 %v538, %v537
      %v569 = vunpack.c.l.b16 %v495
      %v570 = vunpack.c.l.b16 %v496
      %v571 = vunpack.c.l.b16 %v497
      %v572 = vunpack.c.l.b16 %v498
      %v573 = vunpack.c.l.b16 %v499
      %v574 = vunpack.c.l.b16 %v500
      %v575 = vunpack.c.l.b16 %v501
      %v576 = vunpack.c.l.b16 %v502
      %v577 = vunpack.c.l.b16 %v503
      %v578 = vunpack.c.l.b16 %v504
      %v579 = vunpack.c.l.b16 %v505
      %v580 = vunpack.c.l.b16 %v506
      %v581 = vunpack.c.l.b16 %v507
      %v582 = vunpack.c.l.b16 %v508
      %v583 = vunpack.c.l.b16 %v509
      %v584 = vunpack.c.l.b16 %v510
      %v585 = vpack.c.b16 %v570, %v569
      %v586 = vpack.c.b16 %v572, %v571
      %v587 = vpack.c.b16 %v574, %v573
      %v588 = vpack.c.b16 %v576, %v575
      %v589 = vpack.c.b16 %v578, %v577
      %v590 = vpack.c.b16 %v580, %v579
      %v591 = vpack.c.b16 %v582, %v581
      %v592 = vpack.c.b16 %v584, %v583
      %601 = vmatprep.subr.bf16.mxu0 0
      %602 = vmatpush1.bf16.msra.mxu0 %v585
      %603 = vmatprep.subr.bf16.mxu0 0
      %604 = vmatpush1.bf16.msra.mxu0 %v586
      %605 = vmatprep.subr.bf16.mxu0 0
      %606 = vmatpush1.bf16.msra.mxu0 %v587
      %607 = vmatprep.subr.bf16.mxu0 0
      %608 = vmatpush1.bf16.msra.mxu0 %v588
      %609 = vmatprep.subr.bf16.mxu0 0
      %610 = vmatpush1.bf16.msra.mxu0 %v589
      %611 = vmatprep.subr.bf16.mxu0 0
      %612 = vmatpush1.bf16.msra.mxu0 %v590
      %613 = vmatprep.subr.bf16.mxu0 0
      %614 = vmatpush1.bf16.msra.mxu0 %v591
      %615 = vmatprep.subr.bf16.mxu0 0
      %616 = vmatpush1.bf16.msra.mxu0 %v592
      %617 = vmatprep.subr.bf16.mxu0 0
      %618 = vmatpush1.bf16.msra.mxu0 0
      %619 = vmatprep.subr.bf16.mxu0 0
      %620 = vmatpush1.bf16.msra.mxu0 0
      %621 = vmatprep.subr.bf16.mxu0 0
      %622 = vmatpush1.bf16.msra.mxu0 0
      %623 = vmatprep.subr.bf16.mxu0 0
      %624 = vmatpush1.bf16.msra.mxu0 0
      %625 = vmatprep.subr.bf16.mxu0 0
      %626 = vmatpush1.bf16.msra.mxu0 0
      %627 = vmatprep.subr.bf16.mxu0 0
      %628 = vmatpush1.bf16.msra.mxu0 0
      %629 = vmatprep.subr.bf16.mxu0 0
      %630 = vmatpush1.bf16.msra.mxu0 0
      %631 = vmatprep.subr.bf16.mxu0 0
      %632 = vmatpush1.bf16.msra.mxu0 0
      %633 = vmatprep.mubr.bf16.mxu0 0
      %634 = vmatmul.mubr.bf16.gmra.mrb[0].mxu0 %v539
      %v635 = vpop.f32.mrb[0].mxu0
      %v636 = vadd.f32 0.0, %v635
      %v637 = vpop.f32.mrb[0].mxu0
      %v638 = vpop.f32.mrb[0].mxu0
      %v639 = vadd.f32 0.0, %v638
      %v640 = vpop.f32.mrb[0].mxu0
      %641 = vmatprep.mubr.bf16.mxu0 0
      %642 = vmatmul.mubr.bf16.gmra.mrb[0].mxu0 %v540
      %v643 = vpop.f32.mrb[0].mxu0
      %v644 = vadd.f32 0.0, %v643
      %v645 = vpop.f32.mrb[0].mxu0
      %v646 = vpop.f32.mrb[0].mxu0
      %v647 = vadd.f32 0.0, %v646
      %v648 = vpop.f32.mrb[0].mxu0
      %649 = vmatprep.mubr.bf16.mxu0 0
      %650 = vmatmul.mubr.bf16.gmra.mrb[0].mxu0 %v541
      %v651 = vpop.f32.mrb[0].mxu0
      %v652 = vadd.f32 0.0, %v651
      %v653 = vpop.f32.mrb[0].mxu0
      %v654 = vpop.f32.mrb[0].mxu0
      %v655 = vadd.f32 0.0, %v654
      %v656 = vpop.f32.mrb[0].mxu0
      %657 = vmatprep.mubr.bf16.mxu0 0
      %658 = vmatmul.mubr.bf16.gmra.mrb[0].mxu0 %v542
      %v659 = vpop.f32.mrb[0].mxu0
      %v660 = vadd.f32 0.0, %v659
      %v661 = vpop.f32.mrb[0].mxu0
      %v662 = vpop.f32.mrb[0].mxu0
      %v663 = vadd.f32 0.0, %v662
      %v664 = vpop.f32.mrb[0].mxu0
      %665 = vmatprep.mubr.bf16.mxu0 0
      %666 = vmatmul.mubr.bf16.gmra.mrb[0].mxu0 %v543
      %v667 = vpop.f32.mrb[0].mxu0
      %v668 = vadd.f32 0.0, %v667
      %v669 = vpop.f32.mrb[0].mxu0
      %v670 = vpop.f32.mrb[0].mxu0
      %v671 = vadd.f32 0.0, %v670
      %v672 = vpop.f32.mrb[0].mxu0
      %673 = vmatprep.mubr.bf16.mxu0 0
      %674 = vmatmul.mubr.bf16.gmra.mrb[0].mxu0 %v544
      %v675 = vpop.f32.mrb[0].mxu0
      %v676 = vadd.f32 0.0, %v675
      %v677 = vpop.f32.mrb[0].mxu0
      %v678 = vpop.f32.mrb[0].mxu0
      %v679 = vadd.f32 0.0, %v678
      %v680 = vpop.f32.mrb[0].mxu0
      %681 = vmatprep.mubr.bf16.mxu0 0
      %682 = vmatmul.mubr.bf16.gmra.mrb[0].mxu0 %v545
      %v683 = vpop.f32.mrb[0].mxu0
      %v684 = vadd.f32 0.0, %v683
      %v685 = vpop.f32.mrb[0].mxu0
      %v686 = vpop.f32.mrb[0].mxu0
      %v687 = vadd.f32 0.0, %v686
      %v688 = vpop.f32.mrb[0].mxu0
      %689 = vdwg.mxu0
      %v690 = vrot.slane %v636, 1
      %v691 = vrot.slane %v639, 1
      %v692 = vrot.slane %v644, 1
      %v693 = vrot.slane %v647, 1
      %v694 = vrot.slane %v652, 1
      %v695 = vrot.slane %v655, 1
      %v696 = vrot.slane %v660, 1
      %v697 = vrot.slane %v663, 1
      %v698 = vrot.slane %v668, 1
      %v699 = vrot.slane %v671, 1
      %v700 = vrot.slane %v676, 1
      %v701 = vrot.slane %v679, 1
      %v702 = vrot.slane %v684, 1
      %v703 = vrot.slane %v687, 1
      %vm704 = vcmp.lt.s32.totalorder %v184, 7
      %v705 = vsel %vm704, %v702, %v703
      %v706 = vsel %vm704, %v701, %v702
      %v707 = vsel %vm704, %v700, %v701
      %v708 = vsel %vm704, %v699, %v700
      %v709 = vsel %vm704, %v698, %v699
      %v710 = vsel %vm704, %v697, %v698
      %v711 = vsel %vm704, %v696, %v697
      %v712 = vsel %vm704, %v695, %v696
      %v713 = vsel %vm704, %v694, %v695
      %v714 = vsel %vm704, %v693, %v694
      %v715 = vsel %vm704, %v692, %v693
      %v716 = vsel %vm704, %v691, %v692
      %v717 = vsel %vm704, %v690, %v691
      %v718 = vsel %vm704, %v703, %v690
      %v735 = vunpack.c.l.b16 %v478
      %v736 = vunpack.c.l.b16 %v479
      %v737 = vunpack.c.l.b16 %v480
      %v738 = vunpack.c.l.b16 %v481
      %v739 = vunpack.c.l.b16 %v482
      %v740 = vunpack.c.l.b16 %v483
      %v741 = vunpack.c.l.b16 %v484
      %v742 = vunpack.c.l.b16 %v485
      %v743 = vunpack.c.l.b16 %v486
      %v744 = vunpack.c.l.b16 %v487
      %v745 = vunpack.c.l.b16 %v488
      %v746 = vunpack.c.l.b16 %v489
      %v747 = vunpack.c.l.b16 %v490
      %v748 = vunpack.c.l.b16 %v491
      %v749 = vunpack.c.l.b16 %v492
      %v750 = vunpack.c.l.b16 %v493
      %v751 = vpack.c.b16 %v736, %v735
      %v752 = vpack.c.b16 %v738, %v737
      %v753 = vpack.c.b16 %v740, %v739
      %v754 = vpack.c.b16 %v742, %v741
      %v755 = vpack.c.b16 %v744, %v743
      %v756 = vpack.c.b16 %v746, %v745
      %v757 = vpack.c.b16 %v748, %v747
      %v758 = vpack.c.b16 %v750, %v749
      %767 = vmatprep.subr.bf16.mxu0 0
      %768 = vmatpush1.bf16.msra.mxu0 %v751
      %769 = vmatprep.subr.bf16.mxu0 0
      %770 = vmatpush1.bf16.msra.mxu0 %v752
      %771 = vmatprep.subr.bf16.mxu0 0
      %772 = vmatpush1.bf16.msra.mxu0 %v753
      %773 = vmatprep.subr.bf16.mxu0 0
      %774 = vmatpush1.bf16.msra.mxu0 %v754
      %775 = vmatprep.subr.bf16.mxu0 0
      %776 = vmatpush1.bf16.msra.mxu0 %v755
      %777 = vmatprep.subr.bf16.mxu0 0
      %778 = vmatpush1.bf16.msra.mxu0 %v756
      %779 = vmatprep.subr.bf16.mxu0 0
      %780 = vmatpush1.bf16.msra.mxu0 %v757
      %781 = vmatprep.subr.bf16.mxu0 0
      %782 = vmatpush1.bf16.msra.mxu0 %v758
      %783 = vmatprep.subr.bf16.mxu0 0
      %784 = vmatpush1.bf16.msra.mxu0 0
      %785 = vmatprep.subr.bf16.mxu0 0
      %786 = vmatpush1.bf16.msra.mxu0 0
      %787 = vmatprep.subr.bf16.mxu0 0
      %788 = vmatpush1.bf16.msra.mxu0 0
      %789 = vmatprep.subr.bf16.mxu0 0
      %790 = vmatpush1.bf16.msra.mxu0 0
      %791 = vmatprep.subr.bf16.mxu0 0
      %792 = vmatpush1.bf16.msra.mxu0 0
      %793 = vmatprep.subr.bf16.mxu0 0
      %794 = vmatpush1.bf16.msra.mxu0 0
      %795 = vmatprep.subr.bf16.mxu0 0
      %796 = vmatpush1.bf16.msra.mxu0 0
      %797 = vmatprep.subr.bf16.mxu0 0
      %798 = vmatpush1.bf16.msra.mxu0 0
      %799 = vmatprep.mubr.bf16.mxu0 0
      %800 = vmatmul.mubr.bf16.gmra.mrb[0].mxu0 %v539
      %v801 = vpop.f32.mrb[0].mxu0
      %v802 = vadd.f32 %v717, %v801
      %v803 = vpop.f32.mrb[0].mxu0
      %v804 = vpop.f32.mrb[0].mxu0
      %v805 = vadd.f32 %v716, %v804
      %v806 = vpop.f32.mrb[0].mxu0
      %807 = vmatprep.mubr.bf16.mxu0 0
      %808 = vmatmul.mubr.bf16.gmra.mrb[0].mxu0 %v540
      %v809 = vpop.f32.mrb[0].mxu0
      %v810 = vadd.f32 %v715, %v809
      %v811 = vpop.f32.mrb[0].mxu0
      %v812 = vpop.f32.mrb[0].mxu0
      %v813 = vadd.f32 %v714, %v812
      %v814 = vpop.f32.mrb[0].mxu0
      %815 = vmatprep.mubr.bf16.mxu0 0
      %816 = vmatmul.mubr.bf16.gmra.mrb[0].mxu0 %v541
      %v817 = vpop.f32.mrb[0].mxu0
      %v818 = vadd.f32 %v713, %v817
      %v819 = vpop.f32.mrb[0].mxu0
      %v820 = vpop.f32.mrb[0].mxu0
      %v821 = vadd.f32 %v712, %v820
      %v822 = vpop.f32.mrb[0].mxu0
      %823 = vmatprep.mubr.bf16.mxu0 0
      %824 = vmatmul.mubr.bf16.gmra.mrb[0].mxu0 %v542
      %v825 = vpop.f32.mrb[0].mxu0
      %v826 = vadd.f32 %v711, %v825
      %v827 = vpop.f32.mrb[0].mxu0
      %v828 = vpop.f32.mrb[0].mxu0
      %v829 = vadd.f32 %v710, %v828
      %v830 = vpop.f32.mrb[0].mxu0
      %831 = vmatprep.mubr.bf16.mxu0 0
      %832 = vmatmul.mubr.bf16.gmra.mrb[0].mxu0 %v543
      %v833 = vpop.f32.mrb[0].mxu0
      %v834 = vadd.f32 %v709, %v833
      %v835 = vpop.f32.mrb[0].mxu0
      %v836 = vpop.f32.mrb[0].mxu0
      %v837 = vadd.f32 %v708, %v836
      %v838 = vpop.f32.mrb[0].mxu0
      %839 = vmatprep.mubr.bf16.mxu0 0
      %840 = vmatmul.mubr.bf16.gmra.mrb[0].mxu0 %v544
      %v841 = vpop.f32.mrb[0].mxu0
      %v842 = vadd.f32 %v707, %v841
      %v843 = vpop.f32.mrb[0].mxu0
      %v844 = vpop.f32.mrb[0].mxu0
      %v845 = vadd.f32 %v706, %v844
      %v846 = vpop.f32.mrb[0].mxu0
      %847 = vmatprep.mubr.bf16.mxu0 0
      %848 = vmatmul.mubr.bf16.gmra.mrb[0].mxu0 %v545
      %v849 = vpop.f32.mrb[0].mxu0
      %v850 = vadd.f32 %v705, %v849
      %v851 = vpop.f32.mrb[0].mxu0
      %v852 = vpop.f32.mrb[0].mxu0
      %v853 = vadd.f32 %v718, %v852
      %v854 = vpop.f32.mrb[0].mxu0
      %855 = vdwg.mxu0
      %s856 = scalar_lea.vmem %s1, 128
      %v857 = vld [vmem:[%s856] sm:$0xf]
      %v858 = vld [vmem:[%s856 + $0x4] sm:$0xf]
      %v859 = vld [vmem:[%s856 + $0x8] sm:$0xf]
      %v860 = vld [vmem:[%s856 + $0xc] sm:$0xf]
      %v861 = vld [vmem:[%s856 + $0x10] sm:$0xf]
      %v862 = vld [vmem:[%s856 + $0x14] sm:$0xf]
      %v863 = vld [vmem:[%s856 + $0x18] sm:$0xf]
      %v864 = vld [vmem:[%s856 + $0x1c] sm:$0xf]
      %v865 = vld [vmem:[%s856 + $0x20] sm:$0xf]
      %v866 = vld [vmem:[%s856 + $0x24] sm:$0xf]
      %v867 = vld [vmem:[%s856 + $0x28] sm:$0xf]
      %v868 = vld [vmem:[%s856 + $0x2c] sm:$0xf]
      %v869 = vld [vmem:[%s856 + $0x30] sm:$0xf]
      %v870 = vld [vmem:[%s856 + $0x34] sm:$0xf]
      %v871 = vld [vmem:[%s856 + $0x38] sm:$0xf]
      %v872 = vld [vmem:[%s856 + $0x3c] sm:$0xf]
      %v889 = vunpack.c.l.b16 %v857
      %v890 = vunpack.c.l.b16 %v858
      %v891 = vunpack.c.l.b16 %v859
      %v892 = vunpack.c.l.b16 %v860
      %v893 = vunpack.c.l.b16 %v861
      %v894 = vunpack.c.l.b16 %v862
      %v895 = vunpack.c.l.b16 %v863
      %v896 = vunpack.c.l.b16 %v864
      %v897 = vunpack.c.l.b16 %v865
      %v898 = vunpack.c.l.b16 %v866
      %v899 = vunpack.c.l.b16 %v867
      %v900 = vunpack.c.l.b16 %v868
      %v901 = vunpack.c.l.b16 %v869
      %v902 = vunpack.c.l.b16 %v870
      %v903 = vunpack.c.l.b16 %v871
      %v904 = vunpack.c.l.b16 %v872
      %v905 = vpack.c.b16 %v890, %v889
      %v906 = vpack.c.b16 %v892, %v891
      %v907 = vpack.c.b16 %v894, %v893
      %v908 = vpack.c.b16 %v896, %v895
      %v909 = vpack.c.b16 %v898, %v897
      %v910 = vpack.c.b16 %v900, %v899
      %v911 = vpack.c.b16 %v902, %v901
      %v912 = vpack.c.b16 %v904, %v903
      %921 = vmatprep.subr.bf16.mxu0 0
      %922 = vmatpush1.bf16.msra.mxu0 %v905
      %923 = vmatprep.subr.bf16.mxu0 0
      %924 = vmatpush1.bf16.msra.mxu0 %v906
      %925 = vmatprep.subr.bf16.mxu0 0
      %926 = vmatpush1.bf16.msra.mxu0 %v907
      %927 = vmatprep.subr.bf16.mxu0 0
      %928 = vmatpush1.bf16.msra.mxu0 %v908
      %929 = vmatprep.subr.bf16.mxu0 0
      %930 = vmatpush1.bf16.msra.mxu0 %v909
      %931 = vmatprep.subr.bf16.mxu0 0
      %932 = vmatpush1.bf16.msra.mxu0 %v910
      %933 = vmatprep.subr.bf16.mxu0 0
      %934 = vmatpush1.bf16.msra.mxu0 %v911
      %935 = vmatprep.subr.bf16.mxu0 0
      %936 = vmatpush1.bf16.msra.mxu0 %v912
      %937 = vmatprep.subr.bf16.mxu0 0
      %938 = vmatpush1.bf16.msra.mxu0 0
      %939 = vmatprep.subr.bf16.mxu0 0
      %940 = vmatpush1.bf16.msra.mxu0 0
      %941 = vmatprep.subr.bf16.mxu0 0
      %942 = vmatpush1.bf16.msra.mxu0 0
      %943 = vmatprep.subr.bf16.mxu0 0
      %944 = vmatpush1.bf16.msra.mxu0 0
      %945 = vmatprep.subr.bf16.mxu0 0
      %946 = vmatpush1.bf16.msra.mxu0 0
      %947 = vmatprep.subr.bf16.mxu0 0
      %948 = vmatpush1.bf16.msra.mxu0 0
      %949 = vmatprep.subr.bf16.mxu0 0
      %950 = vmatpush1.bf16.msra.mxu0 0
      %951 = vmatprep.subr.bf16.mxu0 0
      %952 = vmatpush1.bf16.msra.mxu0 0
      %953 = vmatprep.mubr.bf16.mxu0 0
      %954 = vmatmul.mubr.bf16.gmra.mrb[0].mxu0 %v539
      %v955 = vpop.f32.mrb[0].mxu0
      %v956 = vadd.f32 0.0, %v955
      %v957 = vpop.f32.mrb[0].mxu0
      %v958 = vpop.f32.mrb[0].mxu0
      %v959 = vadd.f32 0.0, %v958
      %v960 = vpop.f32.mrb[0].mxu0
      %961 = vmatprep.mubr.bf16.mxu0 0
      %962 = vmatmul.mubr.bf16.gmra.mrb[0].mxu0 %v540
      %v963 = vpop.f32.mrb[0].mxu0
      %v964 = vadd.f32 0.0, %v963
      %v965 = vpop.f32.mrb[0].mxu0
      %v966 = vpop.f32.mrb[0].mxu0
      %v967 = vadd.f32 0.0, %v966
      %v968 = vpop.f32.mrb[0].mxu0
      %969 = vmatprep.mubr.bf16.mxu0 0
      %970 = vmatmul.mubr.bf16.gmra.mrb[0].mxu0 %v541
      %v971 = vpop.f32.mrb[0].mxu0
      %v972 = vadd.f32 0.0, %v971
      %v973 = vpop.f32.mrb[0].mxu0
      %v974 = vpop.f32.mrb[0].mxu0
      %v975 = vadd.f32 0.0, %v974
      %v976 = vpop.f32.mrb[0].mxu0
      %977 = vmatprep.mubr.bf16.mxu0 0
      %978 = vmatmul.mubr.bf16.gmra.mrb[0].mxu0 %v542
      %v979 = vpop.f32.mrb[0].mxu0
      %v980 = vadd.f32 0.0, %v979
      %v981 = vpop.f32.mrb[0].mxu0
      %v982 = vpop.f32.mrb[0].mxu0
      %v983 = vadd.f32 0.0, %v982
      %v984 = vpop.f32.mrb[0].mxu0
      %985 = vmatprep.mubr.bf16.mxu0 0
      %986 = vmatmul.mubr.bf16.gmra.mrb[0].mxu0 %v543
      %v987 = vpop.f32.mrb[0].mxu0
      %v988 = vadd.f32 0.0, %v987
      %v989 = vpop.f32.mrb[0].mxu0
      %v990 = vpop.f32.mrb[0].mxu0
      %v991 = vadd.f32 0.0, %v990
      %v992 = vpop.f32.mrb[0].mxu0
      %993 = vmatprep.mubr.bf16.mxu0 0
      %994 = vmatmul.mubr.bf16.gmra.mrb[0].mxu0 %v544
      %v995 = vpop.f32.mrb[0].mxu0
      %v996 = vadd.f32 0.0, %v995
      %v997 = vpop.f32.mrb[0].mxu0
      %v998 = vpop.f32.mrb[0].mxu0
      %v999 = vadd.f32 0.0, %v998
      %v1000 = vpop.f32.mrb[0].mxu0
      %1001 = vmatprep.mubr.bf16.mxu0 0
      %1002 = vmatmul.mubr.bf16.gmra.mrb[0].mxu0 %v545
      %v1003 = vpop.f32.mrb[0].mxu0
      %v1004 = vadd.f32 0.0, %v1003
      %v1005 = vpop.f32.mrb[0].mxu0
      %v1006 = vpop.f32.mrb[0].mxu0
      %v1007 = vadd.f32 0.0, %v1006
      %v1008 = vpop.f32.mrb[0].mxu0
      %1009 = vdwg.mxu0
      %v1010 = vrot.slane %v956, 2
      %v1011 = vrot.slane %v959, 2
      %v1012 = vrot.slane %v964, 2
      %v1013 = vrot.slane %v967, 2
      %v1014 = vrot.slane %v972, 2
      %v1015 = vrot.slane %v975, 2
      %v1016 = vrot.slane %v980, 2
      %v1017 = vrot.slane %v983, 2
      %v1018 = vrot.slane %v988, 2
      %v1019 = vrot.slane %v991, 2
      %v1020 = vrot.slane %v996, 2
      %v1021 = vrot.slane %v999, 2
      %v1022 = vrot.slane %v1004, 2
      %v1023 = vrot.slane %v1007, 2
      %vm1024 = vcmp.lt.s32.totalorder %v184, 6
      %v1025 = vsel %vm1024, %v1022, %v1023
      %v1026 = vsel %vm1024, %v1021, %v1022
      %v1027 = vsel %vm1024, %v1020, %v1021
      %v1028 = vsel %vm1024, %v1019, %v1020
      %v1029 = vsel %vm1024, %v1018, %v1019
      %v1030 = vsel %vm1024, %v1017, %v1018
      %v1031 = vsel %vm1024, %v1016, %v1017
      %v1032 = vsel %vm1024, %v1015, %v1016
      %v1033 = vsel %vm1024, %v1014, %v1015
      %v1034 = vsel %vm1024, %v1013, %v1014
      %v1035 = vsel %vm1024, %v1012, %v1013
      %v1036 = vsel %vm1024, %v1011, %v1012
      %v1037 = vsel %vm1024, %v1010, %v1011
      %v1038 = vsel %vm1024, %v1023, %v1010
      %v1039 = vadd.f32 %v802, %v1037
      %v1040 = vadd.f32 %v805, %v1036
      %v1041 = vadd.f32 %v810, %v1035
      %v1042 = vadd.f32 %v813, %v1034
      %v1043 = vadd.f32 %v818, %v1033
      %v1044 = vadd.f32 %v821, %v1032
      %v1045 = vadd.f32 %v826, %v1031
      %v1046 = vadd.f32 %v829, %v1030
      %v1047 = vadd.f32 %v834, %v1029
      %v1048 = vadd.f32 %v837, %v1028
      %v1049 = vadd.f32 %v842, %v1027
      %v1050 = vadd.f32 %v845, %v1026
      %v1051 = vadd.f32 %v850, %v1025
      %v1052 = vadd.f32 %v853, %v1038
      %1053 = vst [vmem:[#allocation2] sm:$0xff] %v1039
      %1054 = vst [vmem:[#allocation2 + $0x8] sm:$0xff] %v1040
      %1055 = vst [vmem:[#allocation2 + $0x10] sm:$0xff] %v1041
      %1056 = vst [vmem:[#allocation2 + $0x18] sm:$0xff] %v1042
      %1057 = vst [vmem:[#allocation2 + $0x20] sm:$0xff] %v1043
      %1058 = vst [vmem:[#allocation2 + $0x28] sm:$0xff] %v1044
      %1059 = vst [vmem:[#allocation2 + $0x30] sm:$0xff] %v1045
      %1060 = vst [vmem:[#allocation2 + $0x38] sm:$0xff] %v1046
      %1061 = vst [vmem:[#allocation2 + $0x40] sm:$0xff] %v1047
      %1062 = vst [vmem:[#allocation2 + $0x48] sm:$0xff] %v1048
      %1063 = vst [vmem:[#allocation2 + $0x50] sm:$0xff] %v1049
      %1064 = vst [vmem:[#allocation2 + $0x58] sm:$0xff] %v1050
      %1065 = vst [vmem:[#allocation2 + $0x60] sm:$0xff] %v1051
      %1066 = vst [vmem:[#allocation2 + $0x68] sm:$0xff] %v1052
      %s1067 = scalar_lea.vmem %s1, 192
      %v1068 = vld [vmem:[%s1067] sm:$0xf]
      %v1069 = vld [vmem:[%s1067 + $0x4] sm:$0xf]
      %v1070 = vld [vmem:[%s1067 + $0x8] sm:$0xf]
      %v1071 = vld [vmem:[%s1067 + $0xc] sm:$0xf]
      %v1072 = vld [vmem:[%s1067 + $0x10] sm:$0xf]
      %v1073 = vld [vmem:[%s1067 + $0x14] sm:$0xf]
      %v1074 = vld [vmem:[%s1067 + $0x18] sm:$0xf]
      %v1075 = vld [vmem:[%s1067 + $0x1c] sm:$0xf]
      %v1076 = vld [vmem:[%s1067 + $0x20] sm:$0xf]
      %v1077 = vld [vmem:[%s1067 + $0x24] sm:$0xf]
      %v1078 = vld [vmem:[%s1067 + $0x28] sm:$0xf]
      %v1079 = vld [vmem:[%s1067 + $0x2c] sm:$0xf]
      %v1080 = vld [vmem:[%s1067 + $0x30] sm:$0xf]
      %v1081 = vld [vmem:[%s1067 + $0x34] sm:$0xf]
      %v1082 = vld [vmem:[%s1067 + $0x38] sm:$0xf]
      %v1083 = vld [vmem:[%s1067 + $0x3c] sm:$0xf]
      %v1100 = vunpack.c.l.b16 %v1068
      %v1101 = vunpack.c.l.b16 %v1069
      %v1102 = vunpack.c.l.b16 %v1070
      %v1103 = vunpack.c.l.b16 %v1071
      %v1104 = vunpack.c.l.b16 %v1072
      %v1105 = vunpack.c.l.b16 %v1073
      %v1106 = vunpack.c.l.b16 %v1074
      %v1107 = vunpack.c.l.b16 %v1075
      %v1108 = vunpack.c.l.b16 %v1076
      %v1109 = vunpack.c.l.b16 %v1077
      %v1110 = vunpack.c.l.b16 %v1078
      %v1111 = vunpack.c.l.b16 %v1079
      %v1112 = vunpack.c.l.b16 %v1080
      %v1113 = vunpack.c.l.b16 %v1081
      %v1114 = vunpack.c.l.b16 %v1082
      %v1115 = vunpack.c.l.b16 %v1083
      %v1116 = vpack.c.b16 %v1101, %v1100
      %v1117 = vpack.c.b16 %v1103, %v1102
      %v1118 = vpack.c.b16 %v1105, %v1104
      %v1119 = vpack.c.b16 %v1107, %v1106
      %v1120 = vpack.c.b16 %v1109, %v1108
      %v1121 = vpack.c.b16 %v1111, %v1110
      %v1122 = vpack.c.b16 %v1113, %v1112
      %v1123 = vpack.c.b16 %v1115, %v1114
      %1132 = vmatprep.subr.bf16.mxu0 0
      %1133 = vmatpush1.bf16.msra.mxu0 %v1116
      %1134 = vmatprep.subr.bf16.mxu0 0
      %1135 = vmatpush1.bf16.msra.mxu0 %v1117
      %1136 = vmatprep.subr.bf16.mxu0 0
      %1137 = vmatpush1.bf16.msra.mxu0 %v1118
      %1138 = vmatprep.subr.bf16.mxu0 0
      %1139 = vmatpush1.bf16.msra.mxu0 %v1119
      %1140 = vmatprep.subr.bf16.mxu0 0
      %1141 = vmatpush1.bf16.msra.mxu0 %v1120
      %1142 = vmatprep.subr.bf16.mxu0 0
      %1143 = vmatpush1.bf16.msra.mxu0 %v1121
      %1144 = vmatprep.subr.bf16.mxu0 0
      %1145 = vmatpush1.bf16.msra.mxu0 %v1122
      %1146 = vmatprep.subr.bf16.mxu0 0
      %1147 = vmatpush1.bf16.msra.mxu0 %v1123
      %1148 = vmatprep.subr.bf16.mxu0 0
      %1149 = vmatpush1.bf16.msra.mxu0 0
      %1150 = vmatprep.subr.bf16.mxu0 0
      %1151 = vmatpush1.bf16.msra.mxu0 0
      %1152 = vmatprep.subr.bf16.mxu0 0
      %1153 = vmatpush1.bf16.msra.mxu0 0
      %1154 = vmatprep.subr.bf16.mxu0 0
      %1155 = vmatpush1.bf16.msra.mxu0 0
      %1156 = vmatprep.subr.bf16.mxu0 0
      %1157 = vmatpush1.bf16.msra.mxu0 0
      %1158 = vmatprep.subr.bf16.mxu0 0
      %1159 = vmatpush1.bf16.msra.mxu0 0
      %1160 = vmatprep.subr.bf16.mxu0 0
      %1161 = vmatpush1.bf16.msra.mxu0 0
      %1162 = vmatprep.subr.bf16.mxu0 0
      %1163 = vmatpush1.bf16.msra.mxu0 0
      %1164 = vmatprep.mubr.bf16.mxu0 0
      %1165 = vmatmul.mubr.bf16.gmra.mrb[0].mxu0 %v539
      %v1166 = vpop.f32.mrb[0].mxu0
      %v1167 = vadd.f32 0.0, %v1166
      %v1168 = vpop.f32.mrb[0].mxu0
      %v1169 = vpop.f32.mrb[0].mxu0
      %v1170 = vadd.f32 0.0, %v1169
      %v1171 = vpop.f32.mrb[0].mxu0
      %1172 = vmatprep.mubr.bf16.mxu0 0
      %1173 = vmatmul.mubr.bf16.gmra.mrb[0].mxu0 %v540
      %v1174 = vpop.f32.mrb[0].mxu0
      %v1175 = vadd.f32 0.0, %v1174
      %v1176 = vpop.f32.mrb[0].mxu0
      %v1177 = vpop.f32.mrb[0].mxu0
      %v1178 = vadd.f32 0.0, %v1177
      %v1179 = vpop.f32.mrb[0].mxu0
      %1180 = vmatprep.mubr.bf16.mxu0 0
      %1181 = vmatmul.mubr.bf16.gmra.mrb[0].mxu0 %v541
      %v1182 = vpop.f32.mrb[0].mxu0
      %v1183 = vadd.f32 0.0, %v1182
      %v1184 = vpop.f32.mrb[0].mxu0
      %v1185 = vpop.f32.mrb[0].mxu0
      %v1186 = vadd.f32 0.0, %v1185
      %v1187 = vpop.f32.mrb[0].mxu0
      %1188 = vmatprep.mubr.bf16.mxu0 0
      %1189 = vmatmul.mubr.bf16.gmra.mrb[0].mxu0 %v542
      %v1190 = vpop.f32.mrb[0].mxu0
      %v1191 = vadd.f32 0.0, %v1190
      %v1192 = vpop.f32.mrb[0].mxu0
      %v1193 = vpop.f32.mrb[0].mxu0
      %v1194 = vadd.f32 0.0, %v1193
      %v1195 = vpop.f32.mrb[0].mxu0
      %1196 = vmatprep.mubr.bf16.mxu0 0
      %1197 = vmatmul.mubr.bf16.gmra.mrb[0].mxu0 %v543
      %v1198 = vpop.f32.mrb[0].mxu0
      %v1199 = vadd.f32 0.0, %v1198
      %v1200 = vpop.f32.mrb[0].mxu0
      %v1201 = vpop.f32.mrb[0].mxu0
      %v1202 = vadd.f32 0.0, %v1201
      %v1203 = vpop.f32.mrb[0].mxu0
      %1204 = vmatprep.mubr.bf16.mxu0 0
      %1205 = vmatmul.mubr.bf16.gmra.mrb[0].mxu0 %v544
      %v1206 = vpop.f32.mrb[0].mxu0
      %v1207 = vadd.f32 0.0, %v1206
      %v1208 = vpop.f32.mrb[0].mxu0
      %v1209 = vpop.f32.mrb[0].mxu0
      %v1210 = vadd.f32 0.0, %v1209
      %v1211 = vpop.f32.mrb[0].mxu0
      %1212 = vmatprep.mubr.bf16.mxu0 0
      %1213 = vmatmul.mubr.bf16.gmra.mrb[0].mxu0 %v545
      %v1214 = vpop.f32.mrb[0].mxu0
      %v1215 = vadd.f32 0.0, %v1214
      %v1216 = vpop.f32.mrb[0].mxu0
      %v1217 = vpop.f32.mrb[0].mxu0
      %v1218 = vadd.f32 0.0, %v1217
      %v1219 = vpop.f32.mrb[0].mxu0
      %1220 = vdwg.mxu0
      %v1221 = vrot.slane %v1167, 2
      %v1222 = vrot.slane %v1170, 2
      %v1223 = vrot.slane %v1175, 2
      %v1224 = vrot.slane %v1178, 2
      %v1225 = vrot.slane %v1183, 2
      %v1226 = vrot.slane %v1186, 2
      %v1227 = vrot.slane %v1191, 2
      %v1228 = vrot.slane %v1194, 2
      %v1229 = vrot.slane %v1199, 2
      %v1230 = vrot.slane %v1202, 2
      %v1231 = vrot.slane %v1207, 2
      %v1232 = vrot.slane %v1210, 2
      %v1233 = vrot.slane %v1215, 2
      %v1234 = vrot.slane %v1218, 2
      %v1235 = vsel %vm1024, %v1233, %v1234
      %v1236 = vsel %vm1024, %v1232, %v1233
      %v1237 = vsel %vm1024, %v1231, %v1232
      %v1238 = vsel %vm1024, %v1230, %v1231
      %v1239 = vsel %vm1024, %v1229, %v1230
      %v1240 = vsel %vm1024, %v1228, %v1229
      %v1241 = vsel %vm1024, %v1227, %v1228
      %v1242 = vsel %vm1024, %v1226, %v1227
      %v1243 = vsel %vm1024, %v1225, %v1226
      %v1244 = vsel %vm1024, %v1224, %v1225
      %v1245 = vsel %vm1024, %v1223, %v1224
      %v1246 = vsel %vm1024, %v1222, %v1223
      %v1247 = vsel %vm1024, %v1221, %v1222
      %v1248 = vsel %vm1024, %v1234, %v1221
      %s1249 = scalar_lea.vmem %s1, 256
      %v1250 = vld [vmem:[%s1249] sm:$0xf]
      %v1251 = vld [vmem:[%s1249 + $0x4] sm:$0xf]
      %v1252 = vld [vmem:[%s1249 + $0x8] sm:$0xf]
      %v1253 = vld [vmem:[%s1249 + $0xc] sm:$0xf]
      %v1254 = vld [vmem:[%s1249 + $0x10] sm:$0xf]
      %v1255 = vld [vmem:[%s1249 + $0x14] sm:$0xf]
      %v1256 = vld [vmem:[%s1249 + $0x18] sm:$0xf]
      %v1257 = vld [vmem:[%s1249 + $0x1c] sm:$0xf]
      %v1258 = vld [vmem:[%s1249 + $0x20] sm:$0xf]
      %v1259 = vld [vmem:[%s1249 + $0x24] sm:$0xf]
      %v1260 = vld [vmem:[%s1249 + $0x28] sm:$0xf]
      %v1261 = vld [vmem:[%s1249 + $0x2c] sm:$0xf]
      %v1262 = vld [vmem:[%s1249 + $0x30] sm:$0xf]
      %v1263 = vld [vmem:[%s1249 + $0x34] sm:$0xf]
      %v1264 = vld [vmem:[%s1249 + $0x38] sm:$0xf]
      %v1265 = vld [vmem:[%s1249 + $0x3c] sm:$0xf]
      %v1282 = vunpack.c.l.b16 %v1250
      %v1283 = vunpack.c.l.b16 %v1251
      %v1284 = vunpack.c.l.b16 %v1252
      %v1285 = vunpack.c.l.b16 %v1253
      %v1286 = vunpack.c.l.b16 %v1254
      %v1287 = vunpack.c.l.b16 %v1255
      %v1288 = vunpack.c.l.b16 %v1256
      %v1289 = vunpack.c.l.b16 %v1257
      %v1290 = vunpack.c.l.b16 %v1258
      %v1291 = vunpack.c.l.b16 %v1259
      %v1292 = vunpack.c.l.b16 %v1260
      %v1293 = vunpack.c.l.b16 %v1261
      %v1294 = vunpack.c.l.b16 %v1262
      %v1295 = vunpack.c.l.b16 %v1263
      %v1296 = vunpack.c.l.b16 %v1264
      %v1297 = vunpack.c.l.b16 %v1265
      %v1298 = vpack.c.b16 %v1283, %v1282
      %v1299 = vpack.c.b16 %v1285, %v1284
      %v1300 = vpack.c.b16 %v1287, %v1286
      %v1301 = vpack.c.b16 %v1289, %v1288
      %v1302 = vpack.c.b16 %v1291, %v1290
      %v1303 = vpack.c.b16 %v1293, %v1292
      %v1304 = vpack.c.b16 %v1295, %v1294
      %v1305 = vpack.c.b16 %v1297, %v1296
      %1314 = vmatprep.subr.bf16.mxu0 0
      %1315 = vmatpush1.bf16.msra.mxu0 %v1298
      %1316 = vmatprep.subr.bf16.mxu0 0
      %1317 = vmatpush1.bf16.msra.mxu0 %v1299
      %1318 = vmatprep.subr.bf16.mxu0 0
      %1319 = vmatpush1.bf16.msra.mxu0 %v1300
      %1320 = vmatprep.subr.bf16.mxu0 0
      %1321 = vmatpush1.bf16.msra.mxu0 %v1301
      %1322 = vmatprep.subr.bf16.mxu0 0
      %1323 = vmatpush1.bf16.msra.mxu0 %v1302
      %1324 = vmatprep.subr.bf16.mxu0 0
      %1325 = vmatpush1.bf16.msra.mxu0 %v1303
      %1326 = vmatprep.subr.bf16.mxu0 0
      %1327 = vmatpush1.bf16.msra.mxu0 %v1304
      %1328 = vmatprep.subr.bf16.mxu0 0
      %1329 = vmatpush1.bf16.msra.mxu0 %v1305
      %1330 = vmatprep.subr.bf16.mxu0 0
      %1331 = vmatpush1.bf16.msra.mxu0 0
      %1332 = vmatprep.subr.bf16.mxu0 0
      %1333 = vmatpush1.bf16.msra.mxu0 0
      %1334 = vmatprep.subr.bf16.mxu0 0
      %1335 = vmatpush1.bf16.msra.mxu0 0
      %1336 = vmatprep.subr.bf16.mxu0 0
      %1337 = vmatpush1.bf16.msra.mxu0 0
      %1338 = vmatprep.subr.bf16.mxu0 0
      %1339 = vmatpush1.bf16.msra.mxu0 0
      %1340 = vmatprep.subr.bf16.mxu0 0
      %1341 = vmatpush1.bf16.msra.mxu0 0
      %1342 = vmatprep.subr.bf16.mxu0 0
      %1343 = vmatpush1.bf16.msra.mxu0 0
      %1344 = vmatprep.subr.bf16.mxu0 0
      %1345 = vmatpush1.bf16.msra.mxu0 0
      %1346 = vmatprep.mubr.bf16.mxu0 0
      %1347 = vmatmul.mubr.bf16.gmra.mrb[0].mxu0 %v539
      %v1348 = vpop.f32.mrb[0].mxu0
      %v1349 = vadd.f32 0.0, %v1348
      %v1350 = vpop.f32.mrb[0].mxu0
      %v1351 = vpop.f32.mrb[0].mxu0
      %v1352 = vadd.f32 0.0, %v1351
      %v1353 = vpop.f32.mrb[0].mxu0
      %1354 = vmatprep.mubr.bf16.mxu0 0
      %1355 = vmatmul.mubr.bf16.gmra.mrb[0].mxu0 %v540
      %v1356 = vpop.f32.mrb[0].mxu0
      %v1357 = vadd.f32 0.0, %v1356
      %v1358 = vpop.f32.mrb[0].mxu0
      %v1359 = vpop.f32.mrb[0].mxu0
      %v1360 = vadd.f32 0.0, %v1359
      %v1361 = vpop.f32.mrb[0].mxu0
      %1362 = vmatprep.mubr.bf16.mxu0 0
      %1363 = vmatmul.mubr.bf16.gmra.mrb[0].mxu0 %v541
      %v1364 = vpop.f32.mrb[0].mxu0
      %v1365 = vadd.f32 0.0, %v1364
      %v1366 = vpop.f32.mrb[0].mxu0
      %v1367 = vpop.f32.mrb[0].mxu0
      %v1368 = vadd.f32 0.0, %v1367
      %v1369 = vpop.f32.mrb[0].mxu0
      %1370 = vmatprep.mubr.bf16.mxu0 0
      %1371 = vmatmul.mubr.bf16.gmra.mrb[0].mxu0 %v542
      %v1372 = vpop.f32.mrb[0].mxu0
      %v1373 = vadd.f32 0.0, %v1372
      %v1374 = vpop.f32.mrb[0].mxu0
      %v1375 = vpop.f32.mrb[0].mxu0
      %v1376 = vadd.f32 0.0, %v1375
      %v1377 = vpop.f32.mrb[0].mxu0
      %1378 = vmatprep.mubr.bf16.mxu0 0
      %1379 = vmatmul.mubr.bf16.gmra.mrb[0].mxu0 %v543
      %v1380 = vpop.f32.mrb[0].mxu0
      %v1381 = vadd.f32 0.0, %v1380
      %v1382 = vpop.f32.mrb[0].mxu0
      %v1383 = vpop.f32.mrb[0].mxu0
      %v1384 = vadd.f32 0.0, %v1383
      %v1385 = vpop.f32.mrb[0].mxu0
      %1386 = vmatprep.mubr.bf16.mxu0 0
      %1387 = vmatmul.mubr.bf16.gmra.mrb[0].mxu0 %v544
      %v1388 = vpop.f32.mrb[0].mxu0
      %v1389 = vadd.f32 0.0, %v1388
      %v1390 = vpop.f32.mrb[0].mxu0
      %v1391 = vpop.f32.mrb[0].mxu0
      %v1392 = vadd.f32 0.0, %v1391
      %v1393 = vpop.f32.mrb[0].mxu0
      %1394 = vmatprep.mubr.bf16.mxu0 0
      %1395 = vmatmul.mubr.bf16.gmra.mrb[0].mxu0 %v545
      %v1396 = vpop.f32.mrb[0].mxu0
      %v1397 = vadd.f32 0.0, %v1396
      %v1398 = vpop.f32.mrb[0].mxu0
      %v1399 = vpop.f32.mrb[0].mxu0
      %v1400 = vadd.f32 0.0, %v1399
      %v1401 = vpop.f32.mrb[0].mxu0
      %1402 = vdwg.mxu0
      %v1403 = vrot.slane %v1349, 3
      %v1404 = vrot.slane %v1352, 3
      %v1405 = vrot.slane %v1357, 3
      %v1406 = vrot.slane %v1360, 3
      %v1407 = vrot.slane %v1365, 3
      %v1408 = vrot.slane %v1368, 3
      %v1409 = vrot.slane %v1373, 3
      %v1410 = vrot.slane %v1376, 3
      %v1411 = vrot.slane %v1381, 3
      %v1412 = vrot.slane %v1384, 3
      %v1413 = vrot.slane %v1389, 3
      %v1414 = vrot.slane %v1392, 3
      %v1415 = vrot.slane %v1397, 3
      %v1416 = vrot.slane %v1400, 3
      %vm1417 = vcmp.lt.s32.totalorder %v184, 5
      %v1418 = vsel %vm1417, %v1415, %v1416
      %v1419 = vsel %vm1417, %v1414, %v1415
      %v1420 = vsel %vm1417, %v1413, %v1414
      %v1421 = vsel %vm1417, %v1412, %v1413
      %v1422 = vsel %vm1417, %v1411, %v1412
      %v1423 = vsel %vm1417, %v1410, %v1411
      %v1424 = vsel %vm1417, %v1409, %v1410
      %v1425 = vsel %vm1417, %v1408, %v1409
      %v1426 = vsel %vm1417, %v1407, %v1408
      %v1427 = vsel %vm1417, %v1406, %v1407
      %v1428 = vsel %vm1417, %v1405, %v1406
      %v1429 = vsel %vm1417, %v1404, %v1405
      %v1430 = vsel %vm1417, %v1403, %v1404
      %v1431 = vsel %vm1417, %v1416, %v1403
      %v1432 = vadd.f32 %v1246, %v1429
      %v1433 = vadd.f32 %v1245, %v1428
      %v1434 = vadd.f32 %v1244, %v1427
      %v1435 = vadd.f32 %v1243, %v1426
      %v1436 = vadd.f32 %v1242, %v1425
      %v1437 = vadd.f32 %v1241, %v1424
      %v1438 = vadd.f32 %v1240, %v1423
      %v1439 = vadd.f32 %v1239, %v1422
      %v1440 = vadd.f32 %v1238, %v1421
      %v1441 = vadd.f32 %v1237, %v1420
      %v1442 = vadd.f32 %v1236, %v1419
      %v1443 = vadd.f32 %v1235, %v1418
      %v1444 = vadd.f32 %v1248, %v1431
      %v1445 = vadd.f32 %v1247, %v1430
      %s1446 = scalar_lea.vmem %s1, 320
      %v1447 = vld [vmem:[%s1446] sm:$0xf]
      %v1448 = vld [vmem:[%s1446 + $0x4] sm:$0xf]
      %v1449 = vld [vmem:[%s1446 + $0x8] sm:$0xf]
      %v1450 = vld [vmem:[%s1446 + $0xc] sm:$0xf]
      %v1451 = vld [vmem:[%s1446 + $0x10] sm:$0xf]
      %v1452 = vld [vmem:[%s1446 + $0x14] sm:$0xf]
      %v1453 = vld [vmem:[%s1446 + $0x18] sm:$0xf]
      %v1454 = vld [vmem:[%s1446 + $0x1c] sm:$0xf]
      %v1455 = vld [vmem:[%s1446 + $0x20] sm:$0xf]
      %v1456 = vld [vmem:[%s1446 + $0x24] sm:$0xf]
      %v1457 = vld [vmem:[%s1446 + $0x28] sm:$0xf]
      %v1458 = vld [vmem:[%s1446 + $0x2c] sm:$0xf]
      %v1459 = vld [vmem:[%s1446 + $0x30] sm:$0xf]
      %v1460 = vld [vmem:[%s1446 + $0x34] sm:$0xf]
      %v1461 = vld [vmem:[%s1446 + $0x38] sm:$0xf]
      %v1462 = vld [vmem:[%s1446 + $0x3c] sm:$0xf]
      %v1479 = vunpack.c.l.b16 %v1447
      %v1480 = vunpack.c.l.b16 %v1448
      %v1481 = vunpack.c.l.b16 %v1449
      %v1482 = vunpack.c.l.b16 %v1450
      %v1483 = vunpack.c.l.b16 %v1451
      %v1484 = vunpack.c.l.b16 %v1452
      %v1485 = vunpack.c.l.b16 %v1453
      %v1486 = vunpack.c.l.b16 %v1454
      %v1487 = vunpack.c.l.b16 %v1455
      %v1488 = vunpack.c.l.b16 %v1456
      %v1489 = vunpack.c.l.b16 %v1457
      %v1490 = vunpack.c.l.b16 %v1458
      %v1491 = vunpack.c.l.b16 %v1459
      %v1492 = vunpack.c.l.b16 %v1460
      %v1493 = vunpack.c.l.b16 %v1461
      %v1494 = vunpack.c.l.b16 %v1462
      %v1495 = vpack.c.b16 %v1480, %v1479
      %v1496 = vpack.c.b16 %v1482, %v1481
      %v1497 = vpack.c.b16 %v1484, %v1483
      %v1498 = vpack.c.b16 %v1486, %v1485
      %v1499 = vpack.c.b16 %v1488, %v1487
      %v1500 = vpack.c.b16 %v1490, %v1489
      %v1501 = vpack.c.b16 %v1492, %v1491
      %v1502 = vpack.c.b16 %v1494, %v1493
      %1511 = vmatprep.subr.bf16.mxu0 0
      %1512 = vmatpush1.bf16.msra.mxu0 %v1495
      %1513 = vmatprep.subr.bf16.mxu0 0
      %1514 = vmatpush1.bf16.msra.mxu0 %v1496
      %1515 = vmatprep.subr.bf16.mxu0 0
      %1516 = vmatpush1.bf16.msra.mxu0 %v1497
      %1517 = vmatprep.subr.bf16.mxu0 0
      %1518 = vmatpush1.bf16.msra.mxu0 %v1498
      %1519 = vmatprep.subr.bf16.mxu0 0
      %1520 = vmatpush1.bf16.msra.mxu0 %v1499
      %1521 = vmatprep.subr.bf16.mxu0 0
      %1522 = vmatpush1.bf16.msra.mxu0 %v1500
      %1523 = vmatprep.subr.bf16.mxu0 0
      %1524 = vmatpush1.bf16.msra.mxu0 %v1501
      %1525 = vmatprep.subr.bf16.mxu0 0
      %1526 = vmatpush1.bf16.msra.mxu0 %v1502
      %1527 = vmatprep.subr.bf16.mxu0 0
      %1528 = vmatpush1.bf16.msra.mxu0 0
      %1529 = vmatprep.subr.bf16.mxu0 0
      %1530 = vmatpush1.bf16.msra.mxu0 0
      %1531 = vmatprep.subr.bf16.mxu0 0
      %1532 = vmatpush1.bf16.msra.mxu0 0
      %1533 = vmatprep.subr.bf16.mxu0 0
      %1534 = vmatpush1.bf16.msra.mxu0 0
      %1535 = vmatprep.subr.bf16.mxu0 0
      %1536 = vmatpush1.bf16.msra.mxu0 0
      %1537 = vmatprep.subr.bf16.mxu0 0
      %1538 = vmatpush1.bf16.msra.mxu0 0
      %1539 = vmatprep.subr.bf16.mxu0 0
      %1540 = vmatpush1.bf16.msra.mxu0 0
      %1541 = vmatprep.subr.bf16.mxu0 0
      %1542 = vmatpush1.bf16.msra.mxu0 0
      %1543 = vmatprep.mubr.bf16.mxu0 0
      %1544 = vmatmul.mubr.bf16.gmra.mrb[0].mxu0 %v539
      %v1545 = vpop.f32.mrb[0].mxu0
      %v1546 = vadd.f32 0.0, %v1545
      %v1547 = vpop.f32.mrb[0].mxu0
      %v1548 = vpop.f32.mrb[0].mxu0
      %v1549 = vadd.f32 0.0, %v1548
      %v1550 = vpop.f32.mrb[0].mxu0
      %1551 = vmatprep.mubr.bf16.mxu0 0
      %1552 = vmatmul.mubr.bf16.gmra.mrb[0].mxu0 %v540
      %v1553 = vpop.f32.mrb[0].mxu0
      %v1554 = vadd.f32 0.0, %v1553
      %v1555 = vpop.f32.mrb[0].mxu0
      %v1556 = vpop.f32.mrb[0].mxu0
      %v1557 = vadd.f32 0.0, %v1556
      %v1558 = vpop.f32.mrb[0].mxu0
      %1559 = vmatprep.mubr.bf16.mxu0 0
      %1560 = vmatmul.mubr.bf16.gmra.mrb[0].mxu0 %v541
      %v1561 = vpop.f32.mrb[0].mxu0
      %v1562 = vadd.f32 0.0, %v1561
      %v1563 = vpop.f32.mrb[0].mxu0
      %v1564 = vpop.f32.mrb[0].mxu0
      %v1565 = vadd.f32 0.0, %v1564
      %v1566 = vpop.f32.mrb[0].mxu0
      %1567 = vmatprep.mubr.bf16.mxu0 0
      %1568 = vmatmul.mubr.bf16.gmra.mrb[0].mxu0 %v542
      %v1569 = vpop.f32.mrb[0].mxu0
      %v1570 = vadd.f32 0.0, %v1569
      %v1571 = vpop.f32.mrb[0].mxu0
      %v1572 = vpop.f32.mrb[0].mxu0
      %v1573 = vadd.f32 0.0, %v1572
      %v1574 = vpop.f32.mrb[0].mxu0
      %1575 = vmatprep.mubr.bf16.mxu0 0
      %1576 = vmatmul.mubr.bf16.gmra.mrb[0].mxu0 %v543
      %v1577 = vpop.f32.mrb[0].mxu0
      %v1578 = vadd.f32 0.0, %v1577
      %v1579 = vpop.f32.mrb[0].mxu0
      %v1580 = vpop.f32.mrb[0].mxu0
      %v1581 = vadd.f32 0.0, %v1580
      %v1582 = vpop.f32.mrb[0].mxu0
      %1583 = vmatprep.mubr.bf16.mxu0 0
      %1584 = vmatmul.mubr.bf16.gmra.mrb[0].mxu0 %v544
      %v1585 = vpop.f32.mrb[0].mxu0
      %v1586 = vadd.f32 0.0, %v1585
      %v1587 = vpop.f32.mrb[0].mxu0
      %v1588 = vpop.f32.mrb[0].mxu0
      %v1589 = vadd.f32 0.0, %v1588
      %v1590 = vpop.f32.mrb[0].mxu0
      %1591 = vmatprep.mubr.bf16.mxu0 0
      %1592 = vmatmul.mubr.bf16.gmra.mrb[0].mxu0 %v545
      %v1593 = vpop.f32.mrb[0].mxu0
      %v1594 = vadd.f32 0.0, %v1593
      %v1595 = vpop.f32.mrb[0].mxu0
      %v1596 = vpop.f32.mrb[0].mxu0
      %v1597 = vadd.f32 0.0, %v1596
      %v1598 = vpop.f32.mrb[0].mxu0
      %1599 = vdwg.mxu0
      %v1600 = vrot.slane %v1546, 4
      %v1601 = vrot.slane %v1549, 4
      %v1602 = vrot.slane %v1554, 4
      %v1603 = vrot.slane %v1557, 4
      %v1604 = vrot.slane %v1562, 4
      %v1605 = vrot.slane %v1565, 4
      %v1606 = vrot.slane %v1570, 4
      %v1607 = vrot.slane %v1573, 4
      %v1608 = vrot.slane %v1578, 4
      %v1609 = vrot.slane %v1581, 4
      %v1610 = vrot.slane %v1586, 4
      %v1611 = vrot.slane %v1589, 4
      %v1612 = vrot.slane %v1594, 4
      %v1613 = vrot.slane %v1597, 4
      %vm1614 = vcmp.lt.s32.totalorder %v184, 4
      %v1615 = vsel %vm1614, %v1612, %v1613
      %v1616 = vsel %vm1614, %v1611, %v1612
      %v1617 = vsel %vm1614, %v1610, %v1611
      %v1618 = vsel %vm1614, %v1609, %v1610
      %v1619 = vsel %vm1614, %v1608, %v1609
      %v1620 = vsel %vm1614, %v1607, %v1608
      %v1621 = vsel %vm1614, %v1606, %v1607
      %v1622 = vsel %vm1614, %v1605, %v1606
      %v1623 = vsel %vm1614, %v1604, %v1605
      %v1624 = vsel %vm1614, %v1603, %v1604
      %v1625 = vsel %vm1614, %v1602, %v1603
      %v1626 = vsel %vm1614, %v1601, %v1602
      %v1627 = vsel %vm1614, %v1600, %v1601
      %v1628 = vsel %vm1614, %v1613, %v1600
      %v1629 = vadd.f32 %v1432, %v1626
      %v1630 = vadd.f32 %v1433, %v1625
      %v1631 = vadd.f32 %v1434, %v1624
      %v1632 = vadd.f32 %v1435, %v1623
      %v1633 = vadd.f32 %v1436, %v1622
      %v1634 = vadd.f32 %v1437, %v1621
      %v1635 = vadd.f32 %v1438, %v1620
      %v1636 = vadd.f32 %v1439, %v1619
      %v1637 = vadd.f32 %v1440, %v1618
      %v1638 = vadd.f32 %v1441, %v1617
      %v1639 = vadd.f32 %v1442, %v1616
      %v1640 = vadd.f32 %v1443, %v1615
      %v1641 = vadd.f32 %v1444, %v1628
      %v1642 = vadd.f32 %v1445, %v1627
      %v1643 = vld [vmem:[#allocation2] sm:$0xff]
      %v1644 = vld [vmem:[#allocation2 + $0x8] sm:$0xff]
      %v1645 = vld [vmem:[#allocation2 + $0x10] sm:$0xff]
      %v1646 = vld [vmem:[#allocation2 + $0x18] sm:$0xff]
      %v1647 = vld [vmem:[#allocation2 + $0x20] sm:$0xff]
      %v1648 = vld [vmem:[#allocation2 + $0x28] sm:$0xff]
      %v1649 = vld [vmem:[#allocation2 + $0x30] sm:$0xff]
      %v1650 = vld [vmem:[#allocation2 + $0x38] sm:$0xff]
      %v1651 = vld [vmem:[#allocation2 + $0x40] sm:$0xff]
      %v1652 = vld [vmem:[#allocation2 + $0x48] sm:$0xff]
      %v1653 = vld [vmem:[#allocation2 + $0x50] sm:$0xff]
      %v1654 = vld [vmem:[#allocation2 + $0x58] sm:$0xff]
      %v1655 = vld [vmem:[#allocation2 + $0x60] sm:$0xff]
      %v1656 = vld [vmem:[#allocation2 + $0x68] sm:$0xff]
      %v1657 = vadd.f32 %v1643, %v1629
      %v1658 = vadd.f32 %v1644, %v1630
      %v1659 = vadd.f32 %v1645, %v1631
      %v1660 = vadd.f32 %v1646, %v1632
      %v1661 = vadd.f32 %v1647, %v1633
      %v1662 = vadd.f32 %v1648, %v1634
      %v1663 = vadd.f32 %v1649, %v1635
      %v1664 = vadd.f32 %v1650, %v1636
      %v1665 = vadd.f32 %v1651, %v1637
      %v1666 = vadd.f32 %v1652, %v1638
      %v1667 = vadd.f32 %v1653, %v1639
      %v1668 = vadd.f32 %v1654, %v1640
      %v1669 = vadd.f32 %v1655, %v1641
      %v1670 = vadd.f32 %v1656, %v1642
      %1671 = vst [vmem:[#allocation2] sm:$0xff] %v1657
      %1672 = vst [vmem:[#allocation2 + $0x8] sm:$0xff] %v1658
      %1673 = vst [vmem:[#allocation2 + $0x10] sm:$0xff] %v1659
      %1674 = vst [vmem:[#allocation2 + $0x18] sm:$0xff] %v1660
      %1675 = vst [vmem:[#allocation2 + $0x20] sm:$0xff] %v1661
      %1676 = vst [vmem:[#allocation2 + $0x28] sm:$0xff] %v1662
      %1677 = vst [vmem:[#allocation2 + $0x30] sm:$0xff] %v1663
      %1678 = vst [vmem:[#allocation2 + $0x38] sm:$0xff] %v1664
      %1679 = vst [vmem:[#allocation2 + $0x40] sm:$0xff] %v1665
      %1680 = vst [vmem:[#allocation2 + $0x48] sm:$0xff] %v1666
      %1681 = vst [vmem:[#allocation2 + $0x50] sm:$0xff] %v1667
      %1682 = vst [vmem:[#allocation2 + $0x58] sm:$0xff] %v1668
      %1683 = vst [vmem:[#allocation2 + $0x60] sm:$0xff] %v1669
      %1684 = vst [vmem:[#allocation2 + $0x68] sm:$0xff] %v1670
      %s1685 = scalar_lea.vmem %s1, 384
      %v1686 = vld [vmem:[%s1685] sm:$0xf]
      %v1687 = vld [vmem:[%s1685 + $0x4] sm:$0xf]
      %v1688 = vld [vmem:[%s1685 + $0x8] sm:$0xf]
      %v1689 = vld [vmem:[%s1685 + $0xc] sm:$0xf]
      %v1690 = vld [vmem:[%s1685 + $0x10] sm:$0xf]
      %v1691 = vld [vmem:[%s1685 + $0x14] sm:$0xf]
      %v1692 = vld [vmem:[%s1685 + $0x18] sm:$0xf]
      %v1693 = vld [vmem:[%s1685 + $0x1c] sm:$0xf]
      %v1694 = vld [vmem:[%s1685 + $0x20] sm:$0xf]
      %v1695 = vld [vmem:[%s1685 + $0x24] sm:$0xf]
      %v1696 = vld [vmem:[%s1685 + $0x28] sm:$0xf]
      %v1697 = vld [vmem:[%s1685 + $0x2c] sm:$0xf]
      %v1698 = vld [vmem:[%s1685 + $0x30] sm:$0xf]
      %v1699 = vld [vmem:[%s1685 + $0x34] sm:$0xf]
      %v1700 = vld [vmem:[%s1685 + $0x38] sm:$0xf]
      %v1701 = vld [vmem:[%s1685 + $0x3c] sm:$0xf]
      %v1718 = vunpack.c.l.b16 %v1686
      %v1719 = vunpack.c.l.b16 %v1687
      %v1720 = vunpack.c.l.b16 %v1688
      %v1721 = vunpack.c.l.b16 %v1689
      %v1722 = vunpack.c.l.b16 %v1690
      %v1723 = vunpack.c.l.b16 %v1691
      %v1724 = vunpack.c.l.b16 %v1692
      %v1725 = vunpack.c.l.b16 %v1693
      %v1726 = vunpack.c.l.b16 %v1694
      %v1727 = vunpack.c.l.b16 %v1695
      %v1728 = vunpack.c.l.b16 %v1696
      %v1729 = vunpack.c.l.b16 %v1697
      %v1730 = vunpack.c.l.b16 %v1698
      %v1731 = vunpack.c.l.b16 %v1699
      %v1732 = vunpack.c.l.b16 %v1700
      %v1733 = vunpack.c.l.b16 %v1701
      %v1734 = vpack.c.b16 %v1719, %v1718
      %v1735 = vpack.c.b16 %v1721, %v1720
      %v1736 = vpack.c.b16 %v1723, %v1722
      %v1737 = vpack.c.b16 %v1725, %v1724
      %v1738 = vpack.c.b16 %v1727, %v1726
      %v1739 = vpack.c.b16 %v1729, %v1728
      %v1740 = vpack.c.b16 %v1731, %v1730
      %v1741 = vpack.c.b16 %v1733, %v1732
      %1750 = vmatprep.subr.bf16.mxu0 0
      %1751 = vmatpush1.bf16.msra.mxu0 %v1734
      %1752 = vmatprep.subr.bf16.mxu0 0
      %1753 = vmatpush1.bf16.msra.mxu0 %v1735
      %1754 = vmatprep.subr.bf16.mxu0 0
      %1755 = vmatpush1.bf16.msra.mxu0 %v1736
      %1756 = vmatprep.subr.bf16.mxu0 0
      %1757 = vmatpush1.bf16.msra.mxu0 %v1737
      %1758 = vmatprep.subr.bf16.mxu0 0
      %1759 = vmatpush1.bf16.msra.mxu0 %v1738
      %1760 = vmatprep.subr.bf16.mxu0 0
      %1761 = vmatpush1.bf16.msra.mxu0 %v1739
      %1762 = vmatprep.subr.bf16.mxu0 0
      %1763 = vmatpush1.bf16.msra.mxu0 %v1740
      %1764 = vmatprep.subr.bf16.mxu0 0
      %1765 = vmatpush1.bf16.msra.mxu0 %v1741
      %1766 = vmatprep.subr.bf16.mxu0 0
      %1767 = vmatpush1.bf16.msra.mxu0 0
      %1768 = vmatprep.subr.bf16.mxu0 0
      %1769 = vmatpush1.bf16.msra.mxu0 0
      %1770 = vmatprep.subr.bf16.mxu0 0
      %1771 = vmatpush1.bf16.msra.mxu0 0
      %1772 = vmatprep.subr.bf16.mxu0 0
      %1773 = vmatpush1.bf16.msra.mxu0 0
      %1774 = vmatprep.subr.bf16.mxu0 0
      %1775 = vmatpush1.bf16.msra.mxu0 0
      %1776 = vmatprep.subr.bf16.mxu0 0
      %1777 = vmatpush1.bf16.msra.mxu0 0
      %1778 = vmatprep.subr.bf16.mxu0 0
      %1779 = vmatpush1.bf16.msra.mxu0 0
      %1780 = vmatprep.subr.bf16.mxu0 0
      %1781 = vmatpush1.bf16.msra.mxu0 0
      %1782 = vmatprep.mubr.bf16.mxu0 0
      %1783 = vmatmul.mubr.bf16.gmra.mrb[0].mxu0 %v539
      %v1784 = vpop.f32.mrb[0].mxu0
      %v1785 = vadd.f32 0.0, %v1784
      %v1786 = vpop.f32.mrb[0].mxu0
      %v1787 = vpop.f32.mrb[0].mxu0
      %v1788 = vadd.f32 0.0, %v1787
      %v1789 = vpop.f32.mrb[0].mxu0
      %1790 = vmatprep.mubr.bf16.mxu0 0
      %1791 = vmatmul.mubr.bf16.gmra.mrb[0].mxu0 %v540
      %v1792 = vpop.f32.mrb[0].mxu0
      %v1793 = vadd.f32 0.0, %v1792
      %v1794 = vpop.f32.mrb[0].mxu0
      %v1795 = vpop.f32.mrb[0].mxu0
      %v1796 = vadd.f32 0.0, %v1795
      %v1797 = vpop.f32.mrb[0].mxu0
      %1798 = vmatprep.mubr.bf16.mxu0 0
      %1799 = vmatmul.mubr.bf16.gmra.mrb[0].mxu0 %v541
      %v1800 = vpop.f32.mrb[0].mxu0
      %v1801 = vadd.f32 0.0, %v1800
      %v1802 = vpop.f32.mrb[0].mxu0
      %v1803 = vpop.f32.mrb[0].mxu0
      %v1804 = vadd.f32 0.0, %v1803
      %v1805 = vpop.f32.mrb[0].mxu0
      %1806 = vmatprep.mubr.bf16.mxu0 0
      %1807 = vmatmul.mubr.bf16.gmra.mrb[0].mxu0 %v542
      %v1808 = vpop.f32.mrb[0].mxu0
      %v1809 = vadd.f32 0.0, %v1808
      %v1810 = vpop.f32.mrb[0].mxu0
      %v1811 = vpop.f32.mrb[0].mxu0
      %v1812 = vadd.f32 0.0, %v1811
      %v1813 = vpop.f32.mrb[0].mxu0
      %1814 = vmatprep.mubr.bf16.mxu0 0
      %1815 = vmatmul.mubr.bf16.gmra.mrb[0].mxu0 %v543
      %v1816 = vpop.f32.mrb[0].mxu0
      %v1817 = vadd.f32 0.0, %v1816
      %v1818 = vpop.f32.mrb[0].mxu0
      %v1819 = vpop.f32.mrb[0].mxu0
      %v1820 = vadd.f32 0.0, %v1819
      %v1821 = vpop.f32.mrb[0].mxu0
      %1822 = vmatprep.mubr.bf16.mxu0 0
      %1823 = vmatmul.mubr.bf16.gmra.mrb[0].mxu0 %v544
      %v1824 = vpop.f32.mrb[0].mxu0
      %v1825 = vadd.f32 0.0, %v1824
      %v1826 = vpop.f32.mrb[0].mxu0
      %v1827 = vpop.f32.mrb[0].mxu0
      %v1828 = vadd.f32 0.0, %v1827
      %v1829 = vpop.f32.mrb[0].mxu0
      %1830 = vmatprep.mubr.bf16.mxu0 0
      %1831 = vmatmul.mubr.bf16.gmra.mrb[0].mxu0 %v545
      %v1832 = vpop.f32.mrb[0].mxu0
      %v1833 = vadd.f32 0.0, %v1832
      %v1834 = vpop.f32.mrb[0].mxu0
      %v1835 = vpop.f32.mrb[0].mxu0
      %v1836 = vadd.f32 0.0, %v1835
      %v1837 = vpop.f32.mrb[0].mxu0
      %1838 = vdwg.mxu0
      %v1839 = vrot.slane %v1785, 4
      %v1840 = vrot.slane %v1788, 4
      %v1841 = vrot.slane %v1793, 4
      %v1842 = vrot.slane %v1796, 4
      %v1843 = vrot.slane %v1801, 4
      %v1844 = vrot.slane %v1804, 4
      %v1845 = vrot.slane %v1809, 4
      %v1846 = vrot.slane %v1812, 4
      %v1847 = vrot.slane %v1817, 4
      %v1848 = vrot.slane %v1820, 4
      %v1849 = vrot.slane %v1825, 4
      %v1850 = vrot.slane %v1828, 4
      %v1851 = vrot.slane %v1833, 4
      %v1852 = vrot.slane %v1836, 4
      %v1853 = vsel %vm1614, %v1851, %v1852
      %v1854 = vsel %vm1614, %v1850, %v1851
      %v1855 = vsel %vm1614, %v1849, %v1850
      %v1856 = vsel %vm1614, %v1848, %v1849
      %v1857 = vsel %vm1614, %v1847, %v1848
      %v1858 = vsel %vm1614, %v1846, %v1847
      %v1859 = vsel %vm1614, %v1845, %v1846
      %v1860 = vsel %vm1614, %v1844, %v1845
      %v1861 = vsel %vm1614, %v1843, %v1844
      %v1862 = vsel %vm1614, %v1842, %v1843
      %v1863 = vsel %vm1614, %v1841, %v1842
      %v1864 = vsel %vm1614, %v1840, %v1841
      %v1865 = vsel %vm1614, %v1839, %v1840
      %v1866 = vsel %vm1614, %v1852, %v1839
      %s1867 = scalar_lea.vmem %s1, 448
      %v1868 = vld [vmem:[%s1867] sm:$0xf]
      %v1869 = vld [vmem:[%s1867 + $0x4] sm:$0xf]
      %v1870 = vld [vmem:[%s1867 + $0x8] sm:$0xf]
      %v1871 = vld [vmem:[%s1867 + $0xc] sm:$0xf]
      %v1872 = vld [vmem:[%s1867 + $0x10] sm:$0xf]
      %v1873 = vld [vmem:[%s1867 + $0x14] sm:$0xf]
      %v1874 = vld [vmem:[%s1867 + $0x18] sm:$0xf]
      %v1875 = vld [vmem:[%s1867 + $0x1c] sm:$0xf]
      %v1876 = vld [vmem:[%s1867 + $0x20] sm:$0xf]
      %v1877 = vld [vmem:[%s1867 + $0x24] sm:$0xf]
      %v1878 = vld [vmem:[%s1867 + $0x28] sm:$0xf]
      %v1879 = vld [vmem:[%s1867 + $0x2c] sm:$0xf]
      %v1880 = vld [vmem:[%s1867 + $0x30] sm:$0xf]
      %v1881 = vld [vmem:[%s1867 + $0x34] sm:$0xf]
      %v1882 = vld [vmem:[%s1867 + $0x38] sm:$0xf]
      %v1883 = vld [vmem:[%s1867 + $0x3c] sm:$0xf]
      %v1900 = vunpack.c.l.b16 %v1868
      %v1901 = vunpack.c.l.b16 %v1869
      %v1902 = vunpack.c.l.b16 %v1870
      %v1903 = vunpack.c.l.b16 %v1871
      %v1904 = vunpack.c.l.b16 %v1872
      %v1905 = vunpack.c.l.b16 %v1873
      %v1906 = vunpack.c.l.b16 %v1874
      %v1907 = vunpack.c.l.b16 %v1875
      %v1908 = vunpack.c.l.b16 %v1876
      %v1909 = vunpack.c.l.b16 %v1877
      %v1910 = vunpack.c.l.b16 %v1878
      %v1911 = vunpack.c.l.b16 %v1879
      %v1912 = vunpack.c.l.b16 %v1880
      %v1913 = vunpack.c.l.b16 %v1881
      %v1914 = vunpack.c.l.b16 %v1882
      %v1915 = vunpack.c.l.b16 %v1883
      %v1916 = vpack.c.b16 %v1901, %v1900
      %v1917 = vpack.c.b16 %v1903, %v1902
      %v1918 = vpack.c.b16 %v1905, %v1904
      %v1919 = vpack.c.b16 %v1907, %v1906
      %v1920 = vpack.c.b16 %v1909, %v1908
      %v1921 = vpack.c.b16 %v1911, %v1910
      %v1922 = vpack.c.b16 %v1913, %v1912
      %v1923 = vpack.c.b16 %v1915, %v1914
      %1932 = vmatprep.subr.bf16.mxu0 0
      %1933 = vmatpush1.bf16.msra.mxu0 %v1916
      %1934 = vmatprep.subr.bf16.mxu0 0
      %1935 = vmatpush1.bf16.msra.mxu0 %v1917
      %1936 = vmatprep.subr.bf16.mxu0 0
      %1937 = vmatpush1.bf16.msra.mxu0 %v1918
      %1938 = vmatprep.subr.bf16.mxu0 0
      %1939 = vmatpush1.bf16.msra.mxu0 %v1919
      %1940 = vmatprep.subr.bf16.mxu0 0
      %1941 = vmatpush1.bf16.msra.mxu0 %v1920
      %1942 = vmatprep.subr.bf16.mxu0 0
      %1943 = vmatpush1.bf16.msra.mxu0 %v1921
      %1944 = vmatprep.subr.bf16.mxu0 0
      %1945 = vmatpush1.bf16.msra.mxu0 %v1922
      %1946 = vmatprep.subr.bf16.mxu0 0
      %1947 = vmatpush1.bf16.msra.mxu0 %v1923
      %1948 = vmatprep.subr.bf16.mxu0 0
      %1949 = vmatpush1.bf16.msra.mxu0 0
      %1950 = vmatprep.subr.bf16.mxu0 0
      %1951 = vmatpush1.bf16.msra.mxu0 0
      %1952 = vmatprep.subr.bf16.mxu0 0
      %1953 = vmatpush1.bf16.msra.mxu0 0
      %1954 = vmatprep.subr.bf16.mxu0 0
      %1955 = vmatpush1.bf16.msra.mxu0 0
      %1956 = vmatprep.subr.bf16.mxu0 0
      %1957 = vmatpush1.bf16.msra.mxu0 0
      %1958 = vmatprep.subr.bf16.mxu0 0
      %1959 = vmatpush1.bf16.msra.mxu0 0
      %1960 = vmatprep.subr.bf16.mxu0 0
      %1961 = vmatpush1.bf16.msra.mxu0 0
      %1962 = vmatprep.subr.bf16.mxu0 0
      %1963 = vmatpush1.bf16.msra.mxu0 0
      %1964 = vmatprep.mubr.bf16.mxu0 0
      %1965 = vmatmul.mubr.bf16.gmra.mrb[0].mxu0 %v539
      %v1966 = vpop.f32.mrb[0].mxu0
      %v1967 = vadd.f32 0.0, %v1966
      %v1968 = vpop.f32.mrb[0].mxu0
      %v1969 = vpop.f32.mrb[0].mxu0
      %v1970 = vadd.f32 0.0, %v1969
      %v1971 = vpop.f32.mrb[0].mxu0
      %1972 = vmatprep.mubr.bf16.mxu0 0
      %1973 = vmatmul.mubr.bf16.gmra.mrb[0].mxu0 %v540
      %v1974 = vpop.f32.mrb[0].mxu0
      %v1975 = vadd.f32 0.0, %v1974
      %v1976 = vpop.f32.mrb[0].mxu0
      %v1977 = vpop.f32.mrb[0].mxu0
      %v1978 = vadd.f32 0.0, %v1977
      %v1979 = vpop.f32.mrb[0].mxu0
      %1980 = vmatprep.mubr.bf16.mxu0 0
      %1981 = vmatmul.mubr.bf16.gmra.mrb[0].mxu0 %v541
      %v1982 = vpop.f32.mrb[0].mxu0
      %v1983 = vadd.f32 0.0, %v1982
      %v1984 = vpop.f32.mrb[0].mxu0
      %v1985 = vpop.f32.mrb[0].mxu0
      %v1986 = vadd.f32 0.0, %v1985
      %v1987 = vpop.f32.mrb[0].mxu0
      %1988 = vmatprep.mubr.bf16.mxu0 0
      %1989 = vmatmul.mubr.bf16.gmra.mrb[0].mxu0 %v542
      %v1990 = vpop.f32.mrb[0].mxu0
      %v1991 = vadd.f32 0.0, %v1990
      %v1992 = vpop.f32.mrb[0].mxu0
      %v1993 = vpop.f32.mrb[0].mxu0
      %v1994 = vadd.f32 0.0, %v1993
      %v1995 = vpop.f32.mrb[0].mxu0
      %1996 = vmatprep.mubr.bf16.mxu0 0
      %1997 = vmatmul.mubr.bf16.gmra.mrb[0].mxu0 %v543
      %v1998 = vpop.f32.mrb[0].mxu0
      %v1999 = vadd.f32 0.0, %v1998
      %v2000 = vpop.f32.mrb[0].mxu0
      %v2001 = vpop.f32.mrb[0].mxu0
      %v2002 = vadd.f32 0.0, %v2001
      %v2003 = vpop.f32.mrb[0].mxu0
      %2004 = vmatprep.mubr.bf16.mxu0 0
      %2005 = vmatmul.mubr.bf16.gmra.mrb[0].mxu0 %v544
      %v2006 = vpop.f32.mrb[0].mxu0
      %v2007 = vadd.f32 0.0, %v2006
      %v2008 = vpop.f32.mrb[0].mxu0
      %v2009 = vpop.f32.mrb[0].mxu0
      %v2010 = vadd.f32 0.0, %v2009
      %v2011 = vpop.f32.mrb[0].mxu0
      %2012 = vmatprep.mubr.bf16.mxu0 0
      %2013 = vmatmul.mubr.bf16.gmra.mrb[0].mxu0 %v545
      %v2014 = vpop.f32.mrb[0].mxu0
      %v2015 = vadd.f32 0.0, %v2014
      %v2016 = vpop.f32.mrb[0].mxu0
      %v2017 = vpop.f32.mrb[0].mxu0
      %v2018 = vadd.f32 0.0, %v2017
      %v2019 = vpop.f32.mrb[0].mxu0
      %2020 = vdwg.mxu0
      %v2021 = vrot.slane %v1967, 5
      %v2022 = vrot.slane %v1970, 5
      %v2023 = vrot.slane %v1975, 5
      %v2024 = vrot.slane %v1978, 5
      %v2025 = vrot.slane %v1983, 5
      %v2026 = vrot.slane %v1986, 5
      %v2027 = vrot.slane %v1991, 5
      %v2028 = vrot.slane %v1994, 5
      %v2029 = vrot.slane %v1999, 5
      %v2030 = vrot.slane %v2002, 5
      %v2031 = vrot.slane %v2007, 5
      %v2032 = vrot.slane %v2010, 5
      %v2033 = vrot.slane %v2015, 5
      %v2034 = vrot.slane %v2018, 5
      %vm2035 = vcmp.lt.s32.totalorder %v184, 3
      %v2036 = vsel %vm2035, %v2033, %v2034
      %v2037 = vsel %vm2035, %v2032, %v2033
      %v2038 = vsel %vm2035, %v2031, %v2032
      %v2039 = vsel %vm2035, %v2030, %v2031
      %v2040 = vsel %vm2035, %v2029, %v2030
      %v2041 = vsel %vm2035, %v2028, %v2029
      %v2042 = vsel %vm2035, %v2027, %v2028
      %v2043 = vsel %vm2035, %v2026, %v2027
      %v2044 = vsel %vm2035, %v2025, %v2026
      %v2045 = vsel %vm2035, %v2024, %v2025
      %v2046 = vsel %vm2035, %v2023, %v2024
      %v2047 = vsel %vm2035, %v2022, %v2023
      %v2048 = vsel %vm2035, %v2021, %v2022
      %v2049 = vsel %vm2035, %v2034, %v2021
      %v2050 = vadd.f32 %v1863, %v2046
      %v2051 = vadd.f32 %v1862, %v2045
      %v2052 = vadd.f32 %v1861, %v2044
      %v2053 = vadd.f32 %v1860, %v2043
      %v2054 = vadd.f32 %v1859, %v2042
      %v2055 = vadd.f32 %v1858, %v2041
      %v2056 = vadd.f32 %v1857, %v2040
      %v2057 = vadd.f32 %v1856, %v2039
      %v2058 = vadd.f32 %v1855, %v2038
      %v2059 = vadd.f32 %v1854, %v2037
      %v2060 = vadd.f32 %v1853, %v2036
      %v2061 = vadd.f32 %v1866, %v2049
      %v2062 = vadd.f32 %v1865, %v2048
      %v2063 = vadd.f32 %v1864, %v2047
      %s2064 = scalar_lea.vmem %s1, 512
      %v2065 = vld [vmem:[%s2064] sm:$0xf]
      %v2066 = vld [vmem:[%s2064 + $0x4] sm:$0xf]
      %v2067 = vld [vmem:[%s2064 + $0x8] sm:$0xf]
      %v2068 = vld [vmem:[%s2064 + $0xc] sm:$0xf]
      %v2069 = vld [vmem:[%s2064 + $0x10] sm:$0xf]
      %v2070 = vld [vmem:[%s2064 + $0x14] sm:$0xf]
      %v2071 = vld [vmem:[%s2064 + $0x18] sm:$0xf]
      %v2072 = vld [vmem:[%s2064 + $0x1c] sm:$0xf]
      %v2073 = vld [vmem:[%s2064 + $0x20] sm:$0xf]
      %v2074 = vld [vmem:[%s2064 + $0x24] sm:$0xf]
      %v2075 = vld [vmem:[%s2064 + $0x28] sm:$0xf]
      %v2076 = vld [vmem:[%s2064 + $0x2c] sm:$0xf]
      %v2077 = vld [vmem:[%s2064 + $0x30] sm:$0xf]
      %v2078 = vld [vmem:[%s2064 + $0x34] sm:$0xf]
      %v2079 = vld [vmem:[%s2064 + $0x38] sm:$0xf]
      %v2080 = vld [vmem:[%s2064 + $0x3c] sm:$0xf]
      %v2097 = vunpack.c.l.b16 %v2065
      %v2098 = vunpack.c.l.b16 %v2066
      %v2099 = vunpack.c.l.b16 %v2067
      %v2100 = vunpack.c.l.b16 %v2068
      %v2101 = vunpack.c.l.b16 %v2069
      %v2102 = vunpack.c.l.b16 %v2070
      %v2103 = vunpack.c.l.b16 %v2071
      %v2104 = vunpack.c.l.b16 %v2072
      %v2105 = vunpack.c.l.b16 %v2073
      %v2106 = vunpack.c.l.b16 %v2074
      %v2107 = vunpack.c.l.b16 %v2075
      %v2108 = vunpack.c.l.b16 %v2076
      %v2109 = vunpack.c.l.b16 %v2077
      %v2110 = vunpack.c.l.b16 %v2078
      %v2111 = vunpack.c.l.b16 %v2079
      %v2112 = vunpack.c.l.b16 %v2080
      %v2113 = vpack.c.b16 %v2098, %v2097
      %v2114 = vpack.c.b16 %v2100, %v2099
      %v2115 = vpack.c.b16 %v2102, %v2101
      %v2116 = vpack.c.b16 %v2104, %v2103
      %v2117 = vpack.c.b16 %v2106, %v2105
      %v2118 = vpack.c.b16 %v2108, %v2107
      %v2119 = vpack.c.b16 %v2110, %v2109
      %v2120 = vpack.c.b16 %v2112, %v2111
      %2129 = vmatprep.subr.bf16.mxu0 0
      %2130 = vmatpush1.bf16.msra.mxu0 %v2113
      %2131 = vmatprep.subr.bf16.mxu0 0
      %2132 = vmatpush1.bf16.msra.mxu0 %v2114
      %2133 = vmatprep.subr.bf16.mxu0 0
      %2134 = vmatpush1.bf16.msra.mxu0 %v2115
      %2135 = vmatprep.subr.bf16.mxu0 0
      %2136 = vmatpush1.bf16.msra.mxu0 %v2116
      %2137 = vmatprep.subr.bf16.mxu0 0
      %2138 = vmatpush1.bf16.msra.mxu0 %v2117
      %2139 = vmatprep.subr.bf16.mxu0 0
      %2140 = vmatpush1.bf16.msra.mxu0 %v2118
      %2141 = vmatprep.subr.bf16.mxu0 0
      %2142 = vmatpush1.bf16.msra.mxu0 %v2119
      %2143 = vmatprep.subr.bf16.mxu0 0
      %2144 = vmatpush1.bf16.msra.mxu0 %v2120
      %2145 = vmatprep.subr.bf16.mxu0 0
      %2146 = vmatpush1.bf16.msra.mxu0 0
      %2147 = vmatprep.subr.bf16.mxu0 0
      %2148 = vmatpush1.bf16.msra.mxu0 0
      %2149 = vmatprep.subr.bf16.mxu0 0
      %2150 = vmatpush1.bf16.msra.mxu0 0
      %2151 = vmatprep.subr.bf16.mxu0 0
      %2152 = vmatpush1.bf16.msra.mxu0 0
      %2153 = vmatprep.subr.bf16.mxu0 0
      %2154 = vmatpush1.bf16.msra.mxu0 0
      %2155 = vmatprep.subr.bf16.mxu0 0
      %2156 = vmatpush1.bf16.msra.mxu0 0
      %2157 = vmatprep.subr.bf16.mxu0 0
      %2158 = vmatpush1.bf16.msra.mxu0 0
      %2159 = vmatprep.subr.bf16.mxu0 0
      %2160 = vmatpush1.bf16.msra.mxu0 0
      %2161 = vmatprep.mubr.bf16.mxu0 0
      %2162 = vmatmul.mubr.bf16.gmra.mrb[0].mxu0 %v539
      %v2163 = vpop.f32.mrb[0].mxu0
      %v2164 = vadd.f32 0.0, %v2163
      %v2165 = vpop.f32.mrb[0].mxu0
      %v2166 = vpop.f32.mrb[0].mxu0
      %v2167 = vadd.f32 0.0, %v2166
      %v2168 = vpop.f32.mrb[0].mxu0
      %2169 = vmatprep.mubr.bf16.mxu0 0
      %2170 = vmatmul.mubr.bf16.gmra.mrb[0].mxu0 %v540
      %v2171 = vpop.f32.mrb[0].mxu0
      %v2172 = vadd.f32 0.0, %v2171
      %v2173 = vpop.f32.mrb[0].mxu0
      %v2174 = vpop.f32.mrb[0].mxu0
      %v2175 = vadd.f32 0.0, %v2174
      %v2176 = vpop.f32.mrb[0].mxu0
      %2177 = vmatprep.mubr.bf16.mxu0 0
      %2178 = vmatmul.mubr.bf16.gmra.mrb[0].mxu0 %v541
      %v2179 = vpop.f32.mrb[0].mxu0
      %v2180 = vadd.f32 0.0, %v2179
      %v2181 = vpop.f32.mrb[0].mxu0
      %v2182 = vpop.f32.mrb[0].mxu0
      %v2183 = vadd.f32 0.0, %v2182
      %v2184 = vpop.f32.mrb[0].mxu0
      %2185 = vmatprep.mubr.bf16.mxu0 0
      %2186 = vmatmul.mubr.bf16.gmra.mrb[0].mxu0 %v542
      %v2187 = vpop.f32.mrb[0].mxu0
      %v2188 = vadd.f32 0.0, %v2187
      %v2189 = vpop.f32.mrb[0].mxu0
      %v2190 = vpop.f32.mrb[0].mxu0
      %v2191 = vadd.f32 0.0, %v2190
      %v2192 = vpop.f32.mrb[0].mxu0
      %2193 = vmatprep.mubr.bf16.mxu0 0
      %2194 = vmatmul.mubr.bf16.gmra.mrb[0].mxu0 %v543
      %v2195 = vpop.f32.mrb[0].mxu0
      %v2196 = vadd.f32 0.0, %v2195
      %v2197 = vpop.f32.mrb[0].mxu0
      %v2198 = vpop.f32.mrb[0].mxu0
      %v2199 = vadd.f32 0.0, %v2198
      %v2200 = vpop.f32.mrb[0].mxu0
      %2201 = vmatprep.mubr.bf16.mxu0 0
      %2202 = vmatmul.mubr.bf16.gmra.mrb[0].mxu0 %v544
      %v2203 = vpop.f32.mrb[0].mxu0
      %v2204 = vadd.f32 0.0, %v2203
      %v2205 = vpop.f32.mrb[0].mxu0
      %v2206 = vpop.f32.mrb[0].mxu0
      %v2207 = vadd.f32 0.0, %v2206
      %v2208 = vpop.f32.mrb[0].mxu0
      %2209 = vmatprep.mubr.bf16.mxu0 0
      %2210 = vmatmul.mubr.bf16.gmra.mrb[0].mxu0 %v545
      %v2211 = vpop.f32.mrb[0].mxu0
      %v2212 = vadd.f32 0.0, %v2211
      %v2213 = vpop.f32.mrb[0].mxu0
      %v2214 = vpop.f32.mrb[0].mxu0
      %v2215 = vadd.f32 0.0, %v2214
      %v2216 = vpop.f32.mrb[0].mxu0
      %2217 = vdwg.mxu0
      %v2218 = vrot.slane %v2164, 6
      %v2219 = vrot.slane %v2167, 6
      %v2220 = vrot.slane %v2172, 6
      %v2221 = vrot.slane %v2175, 6
      %v2222 = vrot.slane %v2180, 6
      %v2223 = vrot.slane %v2183, 6
      %v2224 = vrot.slane %v2188, 6
      %v2225 = vrot.slane %v2191, 6
      %v2226 = vrot.slane %v2196, 6
      %v2227 = vrot.slane %v2199, 6
      %v2228 = vrot.slane %v2204, 6
      %v2229 = vrot.slane %v2207, 6
      %v2230 = vrot.slane %v2212, 6
      %v2231 = vrot.slane %v2215, 6
      %vm2232 = vcmp.lt.s32.totalorder %v184, 2
      %v2233 = vsel %vm2232, %v2230, %v2231
      %v2234 = vsel %vm2232, %v2229, %v2230
      %v2235 = vsel %vm2232, %v2228, %v2229
      %v2236 = vsel %vm2232, %v2227, %v2228
      %v2237 = vsel %vm2232, %v2226, %v2227
      %v2238 = vsel %vm2232, %v2225, %v2226
      %v2239 = vsel %vm2232, %v2224, %v2225
      %v2240 = vsel %vm2232, %v2223, %v2224
      %v2241 = vsel %vm2232, %v2222, %v2223
      %v2242 = vsel %vm2232, %v2221, %v2222
      %v2243 = vsel %vm2232, %v2220, %v2221
      %v2244 = vsel %vm2232, %v2219, %v2220
      %v2245 = vsel %vm2232, %v2218, %v2219
      %v2246 = vsel %vm2232, %v2231, %v2218
      %v2247 = vadd.f32 %v2050, %v2243
      %v2248 = vadd.f32 %v2051, %v2242
      %v2249 = vadd.f32 %v2052, %v2241
      %v2250 = vadd.f32 %v2053, %v2240
      %v2251 = vadd.f32 %v2054, %v2239
      %v2252 = vadd.f32 %v2055, %v2238
      %v2253 = vadd.f32 %v2056, %v2237
      %v2254 = vadd.f32 %v2057, %v2236
      %v2255 = vadd.f32 %v2058, %v2235
      %v2256 = vadd.f32 %v2059, %v2234
      %v2257 = vadd.f32 %v2060, %v2233
      %v2258 = vadd.f32 %v2061, %v2246
      %v2259 = vadd.f32 %v2062, %v2245
      %v2260 = vadd.f32 %v2063, %v2244
      %v2261 = vld [vmem:[#allocation2] sm:$0xff]
      %v2262 = vld [vmem:[#allocation2 + $0x8] sm:$0xff]
      %v2263 = vld [vmem:[#allocation2 + $0x10] sm:$0xff]
      %v2264 = vld [vmem:[#allocation2 + $0x18] sm:$0xff]
      %v2265 = vld [vmem:[#allocation2 + $0x20] sm:$0xff]
      %v2266 = vld [vmem:[#allocation2 + $0x28] sm:$0xff]
      %v2267 = vld [vmem:[#allocation2 + $0x30] sm:$0xff]
      %v2268 = vld [vmem:[#allocation2 + $0x38] sm:$0xff]
      %v2269 = vld [vmem:[#allocation2 + $0x40] sm:$0xff]
      %v2270 = vld [vmem:[#allocation2 + $0x48] sm:$0xff]
      %v2271 = vld [vmem:[#allocation2 + $0x50] sm:$0xff]
      %v2272 = vld [vmem:[#allocation2 + $0x58] sm:$0xff]
      %v2273 = vld [vmem:[#allocation2 + $0x60] sm:$0xff]
      %v2274 = vld [vmem:[#allocation2 + $0x68] sm:$0xff]
      %v2275 = vadd.f32 %v2261, %v2247
      %v2276 = vadd.f32 %v2262, %v2248
      %v2277 = vadd.f32 %v2263, %v2249
      %v2278 = vadd.f32 %v2264, %v2250
      %v2279 = vadd.f32 %v2265, %v2251
      %v2280 = vadd.f32 %v2266, %v2252
      %v2281 = vadd.f32 %v2267, %v2253
      %v2282 = vadd.f32 %v2268, %v2254
      %v2283 = vadd.f32 %v2269, %v2255
      %v2284 = vadd.f32 %v2270, %v2256
      %v2285 = vadd.f32 %v2271, %v2257
      %v2286 = vadd.f32 %v2272, %v2258
      %v2287 = vadd.f32 %v2273, %v2259
      %v2288 = vadd.f32 %v2274, %v2260
      %2289 = vst [vmem:[#allocation2] sm:$0xff] %v2275
      %2290 = vst [vmem:[#allocation2 + $0x8] sm:$0xff] %v2276
      %2291 = vst [vmem:[#allocation2 + $0x10] sm:$0xff] %v2277
      %2292 = vst [vmem:[#allocation2 + $0x18] sm:$0xff] %v2278
      %2293 = vst [vmem:[#allocation2 + $0x20] sm:$0xff] %v2279
      %2294 = vst [vmem:[#allocation2 + $0x28] sm:$0xff] %v2280
      %2295 = vst [vmem:[#allocation2 + $0x30] sm:$0xff] %v2281
      %2296 = vst [vmem:[#allocation2 + $0x38] sm:$0xff] %v2282
      %2297 = vst [vmem:[#allocation2 + $0x40] sm:$0xff] %v2283
      %2298 = vst [vmem:[#allocation2 + $0x48] sm:$0xff] %v2284
      %2299 = vst [vmem:[#allocation2 + $0x50] sm:$0xff] %v2285
      %2300 = vst [vmem:[#allocation2 + $0x58] sm:$0xff] %v2286
      %2301 = vst [vmem:[#allocation2 + $0x60] sm:$0xff] %v2287
      %2302 = vst [vmem:[#allocation2 + $0x68] sm:$0xff] %v2288
      %v2303 = vld [vmem:[#allocation2] sm:$0xff]
      %v2304 = vld [vmem:[#allocation2 + $0x8] sm:$0xff]
      %v2305 = vld [vmem:[#allocation2 + $0x10] sm:$0xff]
      %v2306 = vld [vmem:[#allocation2 + $0x18] sm:$0xff]
      %v2307 = vld [vmem:[#allocation2 + $0x20] sm:$0xff]
      %v2308 = vld [vmem:[#allocation2 + $0x28] sm:$0xff]
      %v2309 = vld [vmem:[#allocation2 + $0x30] sm:$0xff]
      %v2310 = vld [vmem:[#allocation2 + $0x38] sm:$0xff]
      %v2311 = vld [vmem:[#allocation2 + $0x40] sm:$0xff]
      %v2312 = vld [vmem:[#allocation2 + $0x48] sm:$0xff]
      %v2313 = vld [vmem:[#allocation2 + $0x50] sm:$0xff]
      %v2314 = vld [vmem:[#allocation2 + $0x58] sm:$0xff]
      %v2315 = vld [vmem:[#allocation2 + $0x60] sm:$0xff]
      %v2316 = vld [vmem:[#allocation2 + $0x68] sm:$0xff]
      %v2317 = vpack.c.bf16 %v2304, %v2303
      %v2318 = vpack.c.bf16 %v2306, %v2305
      %v2319 = vpack.c.bf16 %v2308, %v2307
      %v2320 = vpack.c.bf16 %v2310, %v2309
      %v2321 = vpack.c.bf16 %v2312, %v2311
      %v2322 = vpack.c.bf16 %v2314, %v2313
      %v2323 = vpack.c.bf16 %v2316, %v2315
      %v2331 = vunpack.c.l.b16 %v2317
      %v2332 = vunpack.c.h.b16 %v2317
      %v2333 = vunpack.c.l.b16 %v2318
      %v2334 = vunpack.c.h.b16 %v2318
      %v2335 = vunpack.c.l.b16 %v2319
      %v2336 = vunpack.c.h.b16 %v2319
      %v2337 = vunpack.c.l.b16 %v2320
      %v2338 = vunpack.c.h.b16 %v2320
      %v2339 = vunpack.c.l.b16 %v2321
      %v2340 = vunpack.c.h.b16 %v2321
      %v2341 = vunpack.c.l.b16 %v2322
      %v2342 = vunpack.c.h.b16 %v2322
      %v2343 = vunpack.c.l.b16 %v2323
      %v2344 = vunpack.c.h.b16 %v2323
      %v2345 = vpack.c.b16 %v2331, %v2331
      %v2346 = vpack.c.b16 %v2332, %v2332
      %v2347 = vpack.c.b16 %v2333, %v2333
      %v2348 = vpack.c.b16 %v2334, %v2334
      %v2349 = vpack.c.b16 %v2335, %v2335
      %v2350 = vpack.c.b16 %v2336, %v2336
      %v2351 = vpack.c.b16 %v2337, %v2337
      %v2352 = vpack.c.b16 %v2338, %v2338
      %v2353 = vpack.c.b16 %v2339, %v2339
      %v2354 = vpack.c.b16 %v2340, %v2340
      %v2355 = vpack.c.b16 %v2341, %v2341
      %v2356 = vpack.c.b16 %v2342, %v2342
      %v2357 = vpack.c.b16 %v2343, %v2343
      %v2358 = vpack.c.b16 %v2344, %v2344
      %2373 = vst [vmem:[%s177] sm:$0xf] %v2345
      %2374 = vst [vmem:[%s177 + $0x4] sm:$0xf] %v2346
      %2375 = vst [vmem:[%s177 + $0x8] sm:$0xf] %v2347
      %2376 = vst [vmem:[%s177 + $0xc] sm:$0xf] %v2348
      %2377 = vst [vmem:[%s177 + $0x10] sm:$0xf] %v2349
      %2378 = vst [vmem:[%s177 + $0x14] sm:$0xf] %v2350
      %2379 = vst [vmem:[%s177 + $0x18] sm:$0xf] %v2351
      %2380 = vst [vmem:[%s177 + $0x1c] sm:$0xf] %v2352
      %2381 = vst [vmem:[%s177 + $0x20] sm:$0xf] %v2353
      %2382 = vst [vmem:[%s177 + $0x24] sm:$0xf] %v2354
      %2383 = vst [vmem:[%s177 + $0x28] sm:$0xf] %v2355
      %2384 = vst [vmem:[%s177 + $0x2c] sm:$0xf] %v2356
      %2385 = vst [vmem:[%s177 + $0x30] sm:$0xf] %v2357
      %2386 = vst [vmem:[%s177 + $0x34] sm:$0xf] %v2358
      %v2387 = vsel %vm450, %v2303, 0.0
      %v2388 = vsel %vm451, %v2304, 0.0
      %v2389 = vsel %vm452, %v2305, 0.0
      %v2390 = vsel %vm453, %v2306, 0.0
      %v2391 = vsel %vm454, %v2307, 0.0
      %v2392 = vsel %vm455, %v2308, 0.0
      %v2393 = vsel %vm456, %v2309, 0.0
      %v2394 = vsel %vm457, %v2310, 0.0
      %v2395 = vsel %vm458, %v2311, 0.0
      %v2396 = vsel %vm459, %v2312, 0.0
      %v2397 = vsel %vm460, %v2313, 0.0
      %v2398 = vsel %vm461, %v2314, 0.0
      %v2399 = vsel %vm462, %v2315, 0.0
      %v2400 = vsel %vm463, %v2316, 0.0
      %v2401 = vadd.f32 %v2387, %v2388
      %v2402 = vadd.f32 %v2401, %v2389
      %v2403 = vadd.f32 %v2402, %v2390
      %v2404 = vadd.f32 %v2403, %v2391
      %v2405 = vadd.f32 %v2404, %v2392
      %v2406 = vadd.f32 %v2405, %v2393
      %v2407 = vadd.f32 %v2406, %v2394
      %v2408 = vadd.f32 %v2407, %v2395
      %v2409 = vadd.f32 %v2408, %v2396
      %v2410 = vadd.f32 %v2409, %v2397
      %v2411 = vadd.f32 %v2410, %v2398
      %v2412 = vadd.f32 %v2411, %v2399
      %v2413 = vadd.f32 %v2412, %v2400
      %v2414 = vrot.slane %v2413, 4
      %v2415 = vadd.f32 %v2413, %v2414
      %v2416 = vrot.slane %v2415, 2
      %v2417 = vadd.f32 %v2415, %v2416
      %v2418 = vrot.slane %v2417, 1
      %v2419 = vadd.f32 %v2417, %v2418
      %v2420 = vmul.f32 %v2419, 0.015625
      %v2421 = vsub.f32 %v2303, %v2420
      %v2422 = vsub.f32 %v2304, %v2420
      %v2423 = vsub.f32 %v2305, %v2420
      %v2424 = vsub.f32 %v2306, %v2420
      %v2425 = vsub.f32 %v2307, %v2420
      %v2426 = vsub.f32 %v2308, %v2420
      %v2427 = vsub.f32 %v2309, %v2420
      %v2428 = vsub.f32 %v2310, %v2420
      %v2429 = vsub.f32 %v2311, %v2420
      %v2430 = vsub.f32 %v2312, %v2420
      %v2431 = vsub.f32 %v2313, %v2420
      %v2432 = vsub.f32 %v2314, %v2420
      %v2433 = vsub.f32 %v2315, %v2420
      %v2434 = vsub.f32 %v2316, %v2420
      %v2435 = vmul.f32 %v2421, %v2421
      %v2436 = vmul.f32 %v2422, %v2422
      %v2437 = vmul.f32 %v2423, %v2423
      %v2438 = vmul.f32 %v2424, %v2424
      %v2439 = vmul.f32 %v2425, %v2425
      %v2440 = vmul.f32 %v2426, %v2426
      %v2441 = vmul.f32 %v2427, %v2427
      %v2442 = vmul.f32 %v2428, %v2428
      %v2443 = vmul.f32 %v2429, %v2429
      %v2444 = vmul.f32 %v2430, %v2430
      %v2445 = vmul.f32 %v2431, %v2431
      %v2446 = vmul.f32 %v2432, %v2432
      %v2447 = vmul.f32 %v2433, %v2433
      %v2448 = vmul.f32 %v2434, %v2434
      %v2449 = vsel %vm450, %v2435, 0.0
      %v2450 = vsel %vm451, %v2436, 0.0
      %v2451 = vsel %vm452, %v2437, 0.0
      %v2452 = vsel %vm453, %v2438, 0.0
      %v2453 = vsel %vm454, %v2439, 0.0
      %v2454 = vsel %vm455, %v2440, 0.0
      %v2455 = vsel %vm456, %v2441, 0.0
      %v2456 = vsel %vm457, %v2442, 0.0
      %v2457 = vsel %vm458, %v2443, 0.0
      %v2458 = vsel %vm459, %v2444, 0.0
      %v2459 = vsel %vm460, %v2445, 0.0
      %v2460 = vsel %vm461, %v2446, 0.0
      %v2461 = vsel %vm462, %v2447, 0.0
      %v2462 = vsel %vm463, %v2448, 0.0
      %v2463 = vadd.f32 %v2449, %v2450
      %v2464 = vadd.f32 %v2463, %v2451
      %v2465 = vadd.f32 %v2464, %v2452
      %v2466 = vadd.f32 %v2465, %v2453
      %v2467 = vadd.f32 %v2466, %v2454
      %v2468 = vadd.f32 %v2467, %v2455
      %v2469 = vadd.f32 %v2468, %v2456
      %v2470 = vadd.f32 %v2469, %v2457
      %v2471 = vadd.f32 %v2470, %v2458
      %v2472 = vadd.f32 %v2471, %v2459
      %v2473 = vadd.f32 %v2472, %v2460
      %v2474 = vadd.f32 %v2473, %v2461
      %v2475 = vadd.f32 %v2474, %v2462
      %v2476 = vrot.slane %v2475, 4
      %v2477 = vadd.f32 %v2475, %v2476
      %v2478 = vrot.slane %v2477, 2
      %v2479 = vadd.f32 %v2477, %v2478
      %v2480 = vrot.slane %v2479, 1
      %v2481 = vadd.f32 %v2479, %v2480
      %vm2482 = vcmask 1040384
      %v2483 = vsel %vm2482, %v2419, %v2481
      %vm2484 = vcmask 1041408
      %v2485 = vsel %vm2484, %v2483, 0.0
      %2486 = vst [vmem:[%s181] sm:$0xff] %v2485
      %p2487 = scmp.lt.s32.totalorder %s15, 1
      %s2488 = scalar_select %p2487, %s15, 1
      %s2489 = smul.addr %s2488, 14
      %s2490 = smul.addr %s2489, 4
      %s2491 = scalar_lea.vmem %s2, %s2490
      %p2492 = scmp.lt.s32.totalorder %s15, 1
      %s2493 = scalar_select %p2492, %s15, 1
      %s2494 = smul.addr %s2493, 8
      %s2495 = scalar_lea.vmem %s3, %s2494
      // Predicated region
      $region29: #{residual_block.4} parent=27 // pred_check
        %p2496 = pneg %p80
      $region30: #{residual_block.4} parent=27 // pred_check_branch
        %2498 = sbr.rel (%p2496) target = $region32
      $region31: #{residual_block.4} parent=27 // pred_region
        _
      $region32: #{residual_block.4} parent=27 // pred_fallthru
        _
      // Predicated region
      $region33: #{residual_block.4} parent=27 // pred_check
        %p2499 = pneg %p106
      $region34: #{residual_block.4} parent=27 // pred_check_branch
        %2501 = sbr.rel (%p2499) target = $region36
      $region35: #{residual_block.4} parent=27 // pred_region
        _
      $region36: #{residual_block.4} parent=27 // pred_fallthru
        _
    $region28: #{residual_block.4} parent=5 // pred_fallthru
      _
    %p2502 = scmp.le.s32.totalorder 2, %s10
    // Predicated region
    $region37: #{residual_block.4} parent=5 // pred_check
      %p2503 = pneg %p2502
    $region38: #{residual_block.4} parent=5 // pred_check_branch
      %2505 = sbr.rel (%p2503) target = $region40
    $region39: #{residual_block.4} parent=5 // pred_region
      %s2506 = ssub.s32 %s10, 2
      // Predicated region
      $region41: #{residual_block.4} parent=39 // pred_check
        %p2507 = pneg %p86
      $region42: #{residual_block.4} parent=39 // pred_check_branch
        %2509 = sbr.rel (%p2507) target = $region44
      $region43: #{residual_block.4} parent=39 // pred_region
        %p2510 = scmp.lt.s32.totalorder %s16, 1
        %s2511 = scalar_select %p2510, %s16, 1
        %s2512 = smul.addr %s2511, 14
        %s2513 = smul.addr %s2512, 4
        %s2514 = scalar_lea.vmem %s2, %s2513
      $region44: #{residual_block.4} parent=39 // pred_fallthru
        _
      // Predicated region
      $region45: #{residual_block.4} parent=39 // pred_check
        %p2515 = pneg %p112
      $region46: #{residual_block.4} parent=39 // pred_check_branch
        %2517 = sbr.rel (%p2515) target = $region48
      $region47: #{residual_block.4} parent=39 // pred_region
        %p2518 = scmp.lt.s32.totalorder %s16, 1
        %s2519 = scalar_select %p2518, %s16, 1
        %s2520 = smul.addr %s2519, 8
        %s2521 = scalar_lea.vmem %s3, %s2520
      $region48: #{residual_block.4} parent=39 // pred_fallthru
        _
    $region40: #{residual_block.4} parent=5 // pred_fallthru
      _
  $region6: #{residual_block.4} parent=0 // loop_footer
    %s14 = sadd.s32 1, %s10
  $region7: #{residual_block.4} parent=0 // loop_footer_branch
    %9 = sbr.rel target = $region3
  $region8: #{residual_block.4} parent=0 // loop_exit
    _

</llo_original>
